<compile_context>
chip_gen: v5e
topology: v5e:2x2
jax: 0.10.0
libtpu: 0.0.40
codegen_flags: <defaults>
</compile_context>

<pallas_src>
import functools

import jax
import jax.numpy as jnp
from jax.experimental import pallas as pl
from jax.experimental.pallas import tpu as pltpu


_BN_EPS = 1e-5

# Sub-pixel taps for ConvTranspose2d(kernel=4, stride=2, padding=1):
# output row 2*i + pr = sum over (kh, dh) in _TAPS[pr] of x_pad[i + dh] @ w[kh]
# where x_pad carries 1 leading zero row/col (x_pad[a] == x[a - 1]).
# The same table applies to the column axis.
_TAPS = (((1, 1), (3, 0)),    # phase pr == 0 : (kh, dh)
         ((0, 2), (2, 1)))    # phase pr == 1 : (kh, dh)

_LAT_H = 4                              # FromLatent output is always 4 x 4
_LAT_WP = _LAT_H + 2
_LAT_NFLAT = (_LAT_H + 3) * _LAT_WP     # 42 padded flat spatial positions


def _round_up(x, m):
    return ((x + m - 1) // m) * m


# ----------------------------------------------------------------------------
# Pallas kernels
# ----------------------------------------------------------------------------
def _latent_kernel(x_ref, w_ref, y_ref, sum_ref, sq_ref):
    """Block-diagonal latent GEMM (bf16 MXU operands, f32 accumulation) with
    per-column BatchNorm statistics fused into the epilogue."""
    acc = jnp.dot(x_ref[...], w_ref[...], preferred_element_type=jnp.float32)
    y_ref[...] = acc.astype(y_ref.dtype)
    sum_ref[...] = jnp.sum(acc, axis=0, keepdims=True)[None]
    sq_ref[...] = jnp.sum(acc * acc, axis=0, keepdims=True)[None]


def _make_conv_kernel(H, W, cin, cout, b_tile, n_true, need_elem_mask, *,
                      activation, with_stats):
    """Fused [producer BN+ReLU] + phase-decomposed ConvT(k=4, s=2, p=1)
    [+ BN stats | + tanh] for a tile of b_tile batch elements."""
    wp = W + 2
    nflat = (H + 3) * wp          # rows of the zero-padded flat input slab
    nrows = H * wp                # rows of the phase-packed output slab
    c4 = 4 * cout
    offs = tuple(dh * wp + dw for dh in range(3) for dw in range(3))

    def kernel(x_ref, w_ref, sc_ref, sh_ref, *rest):
        if with_stats:
            y_ref, sum_ref, sq_ref, xb_ref = rest
        else:
            y_ref, xb_ref = rest

        # Validity of every input-slab row: the deferred BN shift must not
        # leak into the zero padding the transposed conv relies on.
        r = jax.lax.broadcasted_iota(jnp.int32, (nflat, 1), 0)
        in_valid = ((r >= wp) & (r < (H + 1) * wp)
                    & (r % wp >= 1) & (r % wp <= W))

        if with_stats:
            # Output columns j in {W, W+1} of every slab row are wrap-around
            # garbage; mask them out of the BN statistics.
            c = jax.lax.broadcasted_iota(jnp.int32, (nrows, 1), 0) % wp
            out_valid = (c < W).astype(jnp.float32)
            s_tot = jnp.zeros((1, c4), jnp.float32)
            q_tot = jnp.zeros((1, c4), jnp.float32)

        for e in range(b_tile):
            # ---- deferred producer BatchNorm + ReLU (applied exactly once
            #      per input element, staged through a VMEM scratch) --------
            x = x_ref[e].astype(jnp.float32)                   # (nflat, cin)
            x = jnp.maximum(x * sc_ref[...] + sh_ref[...], 0.0)
            x = jnp.where(in_valid, x, 0.0)
            xb_ref[...] = x.astype(jnp.bfloat16)

            # ---- 9-window phase-packed transposed conv: one wide MXU dot
            #      per (dh, dw) window, f32 accumulation --------------------
            acc = jnp.zeros((nrows, c4), jnp.float32)
            for widx, off in enumerate(offs):
                acc = acc + jnp.dot(xb_ref[pl.ds(off, nrows), :], w_ref[widx],
                                    preferred_element_type=jnp.float32)
            if activation == "tanh":
                acc = jnp.tanh(acc)                            # fused (EUP)
            y_ref[e] = acc.astype(y_ref.dtype)

            if with_stats:
                m = out_valid
                if need_elem_mask:
                    elem_ok = (pl.program_id(0) * b_tile + e) < n_true
                    m = m * elem_ok.astype(jnp.float32)
                av = acc * m
                s_tot = s_tot + jnp.sum(av, axis=0, keepdims=True)
                q_tot = q_tot + jnp.sum(av * acc, axis=0, keepdims=True)

        if with_stats:
            sum_ref[...] = s_tot[None]
            sq_ref[...] = q_tot[None]

    return kernel


# ----------------------------------------------------------------------------
# Pallas wrappers
# ----------------------------------------------------------------------------
def latent_forward_pallas(x_cat, w_bd):
    """x_cat: (N, K), w_bd: (K, C) -> (N, C) bf16 + per-column (sum, sumsq)."""
    N, K = x_cat.shape
    C = w_bd.shape[1]
    if N <= 512:
        tm, n_pad = N, N
        x_in = x_cat
    else:
        tm = 512
        n_pad = _round_up(N, tm)
        x_in = jnp.pad(x_cat, ((0, n_pad - N), (0, 0)))
    nt = n_pad // tm

    y, s, q = pl.pallas_call(
        _latent_kernel,
        out_shape=(jax.ShapeDtypeStruct((n_pad, C), jnp.bfloat16),
                   jax.ShapeDtypeStruct((nt, 1, C), jnp.float32),
                   jax.ShapeDtypeStruct((nt, 1, C), jnp.float32)),
        grid=(nt,),
        in_specs=[pl.BlockSpec((tm, K), lambda i: (i, 0)),
                  pl.BlockSpec((K, C), lambda i: (0, 0))],
        out_specs=(pl.BlockSpec((tm, C), lambda i: (i, 0)),
                   pl.BlockSpec((1, 1, C), lambda i: (i, 0, 0)),
                   pl.BlockSpec((1, 1, C), lambda i: (i, 0, 0))),
        compiler_params=pltpu.CompilerParams(
            dimension_semantics=("parallel",)),
    )(x_in.astype(jnp.bfloat16), w_bd.astype(jnp.bfloat16))
    return y[:N], s.sum(axis=(0, 1)), q.sum(axis=(0, 1))


def _pick_b_tile(n, nflat, nrows, cin, cout, out_bytes):
    """Batch-tile size: VMEM-budgeted (safe for v7x's 64 MiB) while keeping
    at least two 'parallel' grid steps whenever N >= 2 (v7x megacore)."""
    per_elem = (2 * nflat * cin * 2                    # double-buffered input
                + 2 * nrows * 4 * cout * out_bytes     # double-buffered output
                + nflat * cin * 2                      # BN'd input scratch
                + nrows * 4 * cout * 4)                # f32 accumulator
    budget = 10 * 1024 * 1024
    cap = max(1, budget // max(per_elem, 1))
    target = max(1, (n + 1) // 2)          # >= 2 grid steps whenever n >= 2
    return int(min(cap, target, n))


def conv_block_pallas(x_flat, w_win, scale, shift, H, W, cin, cout, *,
                      with_stats, activation="linear",
                      out_dtype=jnp.bfloat16):
    """Fused [input BN+ReLU] + ConvTranspose2d(k=4, s=2, p=1, bias=False)
    [+ output BN statistics | + tanh].

    x_flat: (N, (H+3)*(W+2), cin) zero-padded flat NHWC slab (bf16) holding
            the *raw* (pre-BN) output of the producer layer.
    w_win:  (9, cin, 4*cout) per-window phase-packed taps (bf16).
    Returns the phase-packed slab (N, H*(W+2), 4*cout) plus per-channel
    (sum, sumsq) over the valid output positions if with_stats.
    """
    N = x_flat.shape[0]
    wp = W + 2
    nflat = (H + 3) * wp
    nrows = H * wp
    c4 = 4 * cout
    assert x_flat.shape[1] == nflat and x_flat.shape[2] == cin
    assert 2 * wp + 2 + nrows <= nflat      # window slices stay in bounds

    out_bytes = jnp.dtype(out_dtype).itemsize
    b_tile = _pick_b_tile(N, nflat, nrows, cin, cout, out_bytes)
    n_pad = _round_up(N, b_tile)
    if n_pad != N:
        x_flat = jnp.pad(x_flat, ((0, n_pad - N), (0, 0), (0, 0)))
    n_steps = n_pad // b_tile

    kernel = _make_conv_kernel(H, W, cin, cout, b_tile, N, n_pad != N,
                               activation=activation, with_stats=with_stats)

    in_specs = [pl.BlockSpec((b_tile, nflat, cin), lambda i: (i, 0, 0)),
                pl.BlockSpec((9, cin, c4), lambda i: (0, 0, 0)),
                pl.BlockSpec((1, cin), lambda i: (0, 0)),
                pl.BlockSpec((1, cin), lambda i: (0, 0))]
    y_shape = jax.ShapeDtypeStruct((n_pad, nrows, c4), out_dtype)
    y_spec = pl.BlockSpec((b_tile, nrows, c4), lambda i: (i, 0, 0))
    scratch = [pltpu.VMEM((nflat, cin), jnp.bfloat16)]
    cparams = pltpu.CompilerParams(dimension_semantics=("parallel",))

    args = (x_flat.astype(jnp.bfloat16), w_win,
            scale.reshape(1, cin).astype(jnp.float32),
            shift.reshape(1, cin).astype(jnp.float32))

    if with_stats:
        st_shape = jax.ShapeDtypeStruct((n_steps, 1, c4), jnp.float32)
        st_spec = pl.BlockSpec((1, 1, c4), lambda i: (i, 0, 0))
        y, s_n, q_n = pl.pallas_call(
            kernel,
            out_shape=(y_shape, st_shape, st_shape),
            grid=(n_steps,),
            in_specs=in_specs,
            out_specs=(y_spec, st_spec, st_spec),
            scratch_shapes=scratch,
            compiler_params=cparams,
        )(*args)
        s = s_n.sum(axis=(0, 1)).reshape(4, cout).sum(axis=0)
        q = q_n.sum(axis=(0, 1)).reshape(4, cout).sum(axis=0)
        return y[:N], s, q

    y = pl.pallas_call(
        kernel,
        out_shape=y_shape,
        grid=(n_steps,),
        in_specs=in_specs,
        out_specs=y_spec,
        scratch_shapes=scratch,
        compiler_params=cparams,
    )(*args)
    return y[:N]


# ----------------------------------------------------------------------------
# Weight packing / layout glue (runs at trace time on the parameters)
# ----------------------------------------------------------------------------
def _window_weights(w):
    """PyTorch ConvTranspose2d weight (cin, cout, 4, 4) -> (9, cin, 4*cout)
    per-(dh, dw)-window taps, each tap placed in its output phase's lane
    block (phase index = 2*pr + pc)."""
    cout = w.shape[1]
    w_win = jnp.zeros((9, w.shape[0], 4 * cout), jnp.float32)
    for pr in range(2):
        for pc in range(2):
            p = 2 * pr + pc
            for kh, dh in _TAPS[pr]:
                for kw, dw in _TAPS[pc]:
                    w_win = w_win.at[dh * 3 + dw, :,
                                     p * cout:(p + 1) * cout].set(w[:, :, kh, kw])
    return w_win.astype(jnp.bfloat16)


def _merged_latent_weight(w_img, w_lab):
    """Block-diagonal weight for the merged in_img / in_lab FromLatent stage.
    Output columns are laid out as the zero-padded flat NHWC slab
    ((4+3)*(4+2) spatial positions x 2*c0 channels) the first conv consumes,
    so no pad/reshape pass is needed between the two kernels."""
    nz, c0 = w_img.shape[0], w_img.shape[1]
    nf = w_lab.shape[0]
    c_cat = 2 * c0
    wi = jnp.transpose(w_img, (0, 2, 3, 1))          # (nz, 4, 4, c0)
    wl = jnp.transpose(w_lab, (0, 2, 3, 1))          # (nf, 4, 4, c0)
    w = jnp.zeros((nz + nf, _LAT_NFLAT, c_cat), jnp.float32)
    for kh in range(4):
        for kw in range(4):
            s = (1 + kh) * _LAT_WP + (1 + kw)        # padded flat position
            w = w.at[:nz, s, :c0].set(wi[:, kh, kw, :])
            w = w.at[nz:, s, c0:].set(wl[:, kh, kw, :])
    return w.reshape(nz + nf, _LAT_NFLAT * c_cat)


def _depth_to_space(y_slab, H, W, cout):
    """(N, H*(W+2), 4*cout) phase-packed slab -> (N, 2H, 2W, cout) NHWC."""
    N = y_slab.shape[0]
    y = y_slab.reshape(N, H, W + 2, 2, 2, cout)[:, :, :W]
    y = jnp.transpose(y, (0, 1, 3, 2, 4, 5))
    return y.reshape(N, 2 * H, 2 * W, cout)


def _slab_to_padded_flat(y_slab, H, W, cout):
    """Raw conv slab -> next layer's zero-padded flat NHWC input slab."""
    y = _depth_to_space(y_slab, H, W, cout)
    y = jnp.pad(y, ((0, 0), (1, 2), (1, 1), (0, 0)))
    return y.reshape(y.shape[0], (2 * H + 3) * (2 * W + 2), cout)


def _bn_scale_shift(s, q, count, gamma, beta):
    mean = s / count
    var = q / count - mean * mean        # biased variance (PyTorch training)
    scale = gamma.astype(jnp.float32) * jax.lax.rsqrt(var + _BN_EPS)
    shift = beta.astype(jnp.float32) - mean * scale
    return scale, shift


# ----------------------------------------------------------------------------
# Generator: parameter construction + forward
# ----------------------------------------------------------------------------
def init_generator_params(key, nz, nf, ngf, img_size, nc):
    factor = img_size // 8
    assert factor >= 2, "img_size must be >= 16"
    keys = iter(jax.random.split(key, 64))

    def conv_t(cin, cout):
        return 0.02 * jax.random.normal(next(keys), (cin, cout, 4, 4),
                                        jnp.float32)

    def bn(c):
        gamma = 1.0 + 0.1 * jax.random.normal(next(keys), (c,), jnp.float32)
        beta = 0.1 * jax.random.normal(next(keys), (c,), jnp.float32)
        return gamma, beta

    c0 = ngf * (factor // 2)
    gi, bi = bn(c0)
    gl, bl = bn(c0)
    params = {
        "in_img": {"w": conv_t(nz, c0), "gamma": gi, "beta": bi},
        "in_lab": {"w": conv_t(nf, c0), "gamma": gl, "beta": bl},
        "blocks": [],
    }
    f = factor
    while f > 1:
        cout = ngf * (f // 2)
        g, b = bn(cout)
        params["blocks"].append(
            {"w": conv_t(ngf * f, cout), "gamma": g, "beta": b})
        f //= 2
    params["to_image"] = {"w": conv_t(ngf, nc)}
    return params


def generator_forward(image, label, params):
    """image: (N, nz, 1, 1), label: (N, nf, 1, 1) (NCHW) -> (N, nc, S, S)."""
    N = image.shape[0]
    p_img, p_lab = params["in_img"], params["in_lab"]
    c0 = p_img["w"].shape[1]
    c_cat = 2 * c0

    # ---- merged FromLatent: block-diagonal GEMM with fused BN statistics;
    #      output is already the padded flat NHWC slab the first conv reads.
    x_cat = jnp.concatenate(
        [image.reshape(N, -1), label.reshape(N, -1)], axis=1).astype(jnp.float32)
    w_bd = _merged_latent_weight(p_img["w"], p_lab["w"])
    y_lat, s_cols, q_cols = latent_forward_pallas(x_cat, w_bd)
    s = s_cols.reshape(_LAT_NFLAT, c_cat).sum(axis=0)
    q = q_cols.reshape(_LAT_NFLAT, c_cat).sum(axis=0)
    gamma = jnp.concatenate([p_img["gamma"], p_lab["gamma"]])
    beta = jnp.concatenate([p_img["beta"], p_lab["beta"]])
    scale, shift = _bn_scale_shift(s, q, N * 16, gamma, beta)

    x_flat = y_lat.reshape(N, _LAT_NFLAT, c_cat)     # padded flat NHWC, 4x4
    H = W = _LAT_H
    cin = c_cat

    # ---- stride-2 upsampling blocks: each Pallas call applies the previous
    #      layer's (deferred) BN+ReLU to its input, runs the phase-decomposed
    #      ConvT and emits the next BN's channel statistics. ----------------
    for p in params["blocks"]:
        cout = p["w"].shape[1]
        y_slab, s, q = conv_block_pallas(
            x_flat, _window_weights(p["w"]), scale, shift, H, W, cin, cout,
            with_stats=True)
        scale, shift = _bn_scale_shift(s, q, N * 4 * H * W,
                                       p["gamma"], p["beta"])
        x_flat = _slab_to_padded_flat(y_slab, H, W, cout)
        H, W, cin = 2 * H, 2 * W, cout

    # ---- ToImage: deferred BN+ReLU on the input, tanh fused in the epilogue
    w_out = params["to_image"]["w"]
    nc = w_out.shape[1]
    y_slab = conv_block_pallas(
        x_flat, _window_weights(w_out), scale, shift, H, W, cin, nc,
        with_stats=False, activation="tanh", out_dtype=jnp.float32)
    img = _depth_to_space(y_slab, H, W, nc)          # (N, S, S, nc) f32
    return jnp.transpose(img, (0, 3, 1, 2))          # back to NCHW


# ----------------------------------------------------------------------------
# Pure-JAX f32 reference (PyTorch semantics) for tolerance testing
# ----------------------------------------------------------------------------
def _ref_conv_transpose_s2(x_nhwc, w):
    rhs = jnp.transpose(jnp.flip(w, (2, 3)), (2, 3, 0, 1))   # (4, 4, cin, cout)
    return jax.lax.conv_general_dilated(
        x_nhwc, rhs, window_strides=(1, 1), padding=((2, 2), (2, 2)),
        lhs_dilation=(2, 2), dimension_numbers=("NHWC", "HWIO", "NHWC"))


def _ref_bn_relu(x, gamma, beta):
    mean = jnp.mean(x, axis=(0, 1, 2))
    var = jnp.var(x, axis=(0, 1, 2))
    return jnp.maximum((x - mean) * jax.lax.rsqrt(var + _BN_EPS) * gamma + beta,
                       0.0)


def _reference_forward(image, label, params):
    N = image.shape[0]
    xi = jnp.einsum("nc,cohw->nhwo", image.reshape(N, -1), params["in_img"]["w"])
    xl = jnp.einsum("nc,cohw->nhwo", label.reshape(N, -1), params["in_lab"]["w"])
    xi = _ref_bn_relu(xi, params["in_img"]["gamma"], params["in_img"]["beta"])
    xl = _ref_bn_relu(xl, params["in_lab"]["gamma"], params["in_lab"]["beta"])
    x = jnp.concatenate([xi, xl], axis=-1)
    for p in params["blocks"]:
        x = _ref_bn_relu(_ref_conv_transpose_s2(x, p["w"]), p["gamma"], p["beta"])
    x = jnp.tanh(_ref_conv_transpose_s2(x, params["to_image"]["w"]))
    return jnp.transpose(x, (0, 3, 1, 2))


# ----------------------------------------------------------------------------
if __name__ == "__main__":
    # Generator(num_noise_vec_channels=4, num_feature_vec_channels=4,
    #           base_num_out_channels=8, img_size=16, num_img_channels=3)
    nz, nf, ngf, img_size, nc = 4, 4, 8, 16, 3
    batch = 2

    key = jax.random.PRNGKey(0)
    k_params, k_img, k_lab = jax.random.split(key, 3)

    params = init_generator_params(k_params, nz, nf, ngf, img_size, nc)
    image = jax.random.normal(k_img, (batch, nz, 1, 1), jnp.float32)
    label = jax.random.normal(k_lab, (batch, nf, 1, 1), jnp.float32)

    fwd = jax.jit(functools.partial(generator_forward, params=params))
    out = jax.block_until_ready(fwd(image, label))

    assert out.shape == (batch, nc, img_size, img_size), out.shape
    assert bool(jnp.all(jnp.isfinite(out)))

    # Tolerance check against an f32 XLA reference (kernels use bf16 MXU
    # operands with f32 accumulation -> loose but meaningful bounds).
    ref = _reference_forward(image, label, params)
    max_err = float(jnp.max(jnp.abs(out - ref)))
    mean_err = float(jnp.mean(jnp.abs(out - ref)))
    assert max_err < 0.1 and mean_err < 0.02, (max_err, mean_err)

    print("KERNEL_OK")
</pallas_src>

<mosaic_0001>
module attributes {stable_mosaic.version = 11 : i64} {
  func.func @_latent_kernel(%arg0: i32, %arg1: memref<2x8xbf16, #tpu.memory_space<vmem>>, %arg2: memref<8x672xbf16, #tpu.memory_space<vmem>>, %arg3: memref<2x672xbf16, #tpu.memory_space<vmem>>, %arg4: memref<1x1x672xf32, #tpu.memory_space<vmem>>, %arg5: memref<1x1x672xf32, #tpu.memory_space<vmem>>) attributes {dimension_semantics = [#tpu.dimension_semantics<parallel>], iteration_bounds = array<i64: 1>, scalar_prefetch = 0 : i64, scratch_operands = 0 : i64, tpu.core_type = #tpu.core_type<tc>, window_params = [{transform_indices = @transform_0, window_bounds = array<i64: 2, 8>}, {pipeline_mode = #tpu.pipeline_mode<synchronous>, transform_indices = @transform_1, window_bounds = array<i64: 8, 672>}, {transform_indices = @transform_2, window_bounds = array<i64: 2, 672>}, {transform_indices = @transform_3, window_bounds = array<i64: 1, 1, 672>}, {transform_indices = @transform_4, window_bounds = array<i64: 1, 1, 672>}]} {
    %c0 = arith.constant 0 : index
    %c0_0 = arith.constant 0 : index
    %0 = vector.load %arg1[%c0, %c0_0] : memref<2x8xbf16, #tpu.memory_space<vmem>>, vector<2x8xbf16>
    %c0_1 = arith.constant 0 : index
    %c0_2 = arith.constant 0 : index
    %1 = vector.load %arg2[%c0_1, %c0_2] : memref<8x672xbf16, #tpu.memory_space<vmem>>, vector<8x672xbf16>
    %cst = arith.constant dense<0.000000e+00> : vector<2x672xf32>
    %2 = tpu.matmul %0, %1, %cst {dimension_numbers = #tpu.dot_dimension_numbers<[1], [0], [0], [1], [0, 0, 1, 1], [], []>} : vector<2x8xbf16>, vector<8x672xbf16>, vector<2x672xf32> -> vector<2x672xf32>
    %3 = arith.truncf %2 : vector<2x672xf32> to vector<2x672xbf16>
    %c0_3 = arith.constant 0 : index
    %c0_4 = arith.constant 0 : index
    %4 = vector.load %arg3[%c0_3, %c0_4] : memref<2x672xbf16, #tpu.memory_space<vmem>>, vector<2x672xbf16>
    tpu.vector_store %arg3[%c0_3, %c0_4], %3 {strides = array<i32>} : memref<2x672xbf16, #tpu.memory_space<vmem>>, vector<2x672xbf16>,
    %cst_5 = arith.constant dense<0.000000e+00> : vector<672xf32>
    %5 = vector.multi_reduction <add>, %2, %cst_5 [0] : vector<2x672xf32> to vector<672xf32>
    %6 = vector.shape_cast %5 : vector<672xf32> to vector<1x672xf32>
    %7 = vector.shape_cast %6 : vector<1x672xf32> to vector<1x1x672xf32>
    %c0_6 = arith.constant 0 : index
    %c0_7 = arith.constant 0 : index
    %c0_8 = arith.constant 0 : index
    %8 = vector.load %arg4[%c0_6, %c0_7, %c0_8] : memref<1x1x672xf32, #tpu.memory_space<vmem>>, vector<1x1x672xf32>
    tpu.vector_store %arg4[%c0_6, %c0_7, %c0_8], %7 {strides = array<i32>} : memref<1x1x672xf32, #tpu.memory_space<vmem>>, vector<1x1x672xf32>,
    %9 = arith.mulf %2, %2 : vector<2x672xf32>
    %cst_9 = arith.constant dense<0.000000e+00> : vector<672xf32>
    %10 = vector.multi_reduction <add>, %9, %cst_9 [0] : vector<2x672xf32> to vector<672xf32>
    %11 = vector.shape_cast %10 : vector<672xf32> to vector<1x672xf32>
    %12 = vector.shape_cast %11 : vector<1x672xf32> to vector<1x1x672xf32>
    %c0_10 = arith.constant 0 : index
    %c0_11 = arith.constant 0 : index
    %c0_12 = arith.constant 0 : index
    %13 = vector.load %arg5[%c0_10, %c0_11, %c0_12] : memref<1x1x672xf32, #tpu.memory_space<vmem>>, vector<1x1x672xf32>
    tpu.vector_store %arg5[%c0_10, %c0_11, %c0_12], %12 {strides = array<i32>} : memref<1x1x672xf32, #tpu.memory_space<vmem>>, vector<1x1x672xf32>,
    return
  }
  func.func @transform_0(%arg0: i32) -> (i32, i32) {
    %c0_i32 = arith.constant 0 : i32
    %c0_i32_0 = arith.constant 0 : i32
    return %arg0, %c0_i32 : i32, i32
  }
  func.func @transform_1(%arg0: i32) -> (i32, i32) {
    %c0_i32 = arith.constant 0 : i32
    %c0_i32_0 = arith.constant 0 : i32
    %c0_i32_1 = arith.constant 0 : i32
    return %c0_i32, %c0_i32_0 : i32, i32
  }
  func.func @transform_2(%arg0: i32) -> (i32, i32) {
    %c0_i32 = arith.constant 0 : i32
    %c0_i32_0 = arith.constant 0 : i32
    return %arg0, %c0_i32 : i32, i32
  }
  func.func @transform_3(%arg0: i32) -> (i32, i32, i32) {
    %c0_i32 = arith.constant 0 : i32
    %c0_i32_0 = arith.constant 0 : i32
    %c0_i32_1 = arith.constant 0 : i32
    return %arg0, %c0_i32, %c0_i32_0 : i32, i32, i32
  }
  func.func @transform_4(%arg0: i32) -> (i32, i32, i32) {
    %c0_i32 = arith.constant 0 : i32
    %c0_i32_0 = arith.constant 0 : i32
    %c0_i32_1 = arith.constant 0 : i32
    return %arg0, %c0_i32, %c0_i32_0 : i32, i32, i32
  }
}

module attributes {stable_mosaic.version = 11 : i64} {
  func.func @kernel(%arg0: i32, %arg1: memref<1x42x16xbf16, #tpu.memory_space<vmem>>, %arg2: memref<9x16x32xbf16, #tpu.memory_space<vmem>>, %arg3: memref<1x16xf32, #tpu.memory_space<vmem>>, %arg4: memref<1x16xf32, #tpu.memory_space<vmem>>, %arg5: memref<1x24x32xbf16, #tpu.memory_space<vmem>>, %arg6: memref<1x1x32xf32, #tpu.memory_space<vmem>>, %arg7: memref<1x1x32xf32, #tpu.memory_space<vmem>>, %arg8: memref<42x16xbf16, #tpu.memory_space<vmem>>) attributes {dimension_semantics = [#tpu.dimension_semantics<parallel>], iteration_bounds = array<i64: 2>, scalar_prefetch = 0 : i64, scratch_operands = 1 : i64, tpu.core_type = #tpu.core_type<tc>, window_params = [{transform_indices = @transform_0, window_bounds = array<i64: 1, 42, 16>}, {pipeline_mode = #tpu.pipeline_mode<synchronous>, transform_indices = @transform_1, window_bounds = array<i64: 9, 16, 32>}, {pipeline_mode = #tpu.pipeline_mode<synchronous>, transform_indices = @transform_2, window_bounds = array<i64: 1, 16>}, {pipeline_mode = #tpu.pipeline_mode<synchronous>, transform_indices = @transform_3, window_bounds = array<i64: 1, 16>}, {transform_indices = @transform_4, window_bounds = array<i64: 1, 24, 32>}, {transform_indices = @transform_5, window_bounds = array<i64: 1, 1, 32>}, {transform_indices = @transform_6, window_bounds = array<i64: 1, 1, 32>}]} {
    %0 = tpu.iota {dimensions = array<i32: 0>} : vector<42x1xi32>
    %c6_i32 = arith.constant 6 : i32
    %1 = vector.broadcast %c6_i32 : i32 to vector<42x1xi32>
    %2 = arith.cmpi sge, %0, %1 : vector<42x1xi32>
    %c30_i32 = arith.constant 30 : i32
    %3 = vector.broadcast %c30_i32 : i32 to vector<42x1xi32>
    %4 = arith.cmpi slt, %0, %3 : vector<42x1xi32>
    %5 = arith.andi %2, %4 : vector<42x1xi1>
    %c6_i32_0 = arith.constant 6 : i32
    %c0_i32 = arith.constant 0 : i32
    %6 = arith.cmpi eq, %c6_i32_0, %c0_i32 : i32
    %c1_i32 = arith.constant 1 : i32
    %7 = arith.select %6, %c1_i32, %c6_i32_0 : i32
    %8 = vector.broadcast %7 : i32 to vector<42x1xi32>
    %9 = arith.remsi %0, %8 : vector<42x1xi32>
    %c0_i32_1 = arith.constant 0 : i32
    %10 = vector.broadcast %c0_i32_1 : i32 to vector<42x1xi32>
    %11 = arith.cmpi ne, %9, %10 : vector<42x1xi32>
    %c0_i32_2 = arith.constant 0 : i32
    %12 = vector.broadcast %c0_i32_2 : i32 to vector<42x1xi32>
    %13 = arith.cmpi slt, %9, %12 : vector<42x1xi32>
    %c0_i32_3 = arith.constant 0 : i32
    %14 = arith.cmpi slt, %7, %c0_i32_3 : i32
    %15 = vector.broadcast %14 : i1 to vector<42x1xi1>
    %16 = vector.broadcast %15 : vector<42x1xi1> to vector<42x1xi1>
    %17 = arith.xori %13, %16 : vector<42x1xi1>
    %18 = arith.andi %17, %11 : vector<42x1xi1>
    %19 = vector.broadcast %7 : i32 to vector<42x1xi32>
    %20 = arith.addi %9, %19 : vector<42x1xi32>
    %21 = arith.select %18, %20, %9 : vector<42x1xi1>, vector<42x1xi32>
    %c1_i32_4 = arith.constant 1 : i32
    %22 = vector.broadcast %c1_i32_4 : i32 to vector<42x1xi32>
    %23 = arith.cmpi sge, %21, %22 : vector<42x1xi32>
    %24 = arith.andi %5, %23 : vector<42x1xi1>
    %c6_i32_5 = arith.constant 6 : i32
    %c0_i32_6 = arith.constant 0 : i32
    %25 = arith.cmpi eq, %c6_i32_5, %c0_i32_6 : i32
    %c1_i32_7 = arith.constant 1 : i32
    %26 = arith.select %25, %c1_i32_7, %c6_i32_5 : i32
    %27 = vector.broadcast %26 : i32 to vector<42x1xi32>
    %28 = arith.remsi %0, %27 : vector<42x1xi32>
    %c0_i32_8 = arith.constant 0 : i32
    %29 = vector.broadcast %c0_i32_8 : i32 to vector<42x1xi32>
    %30 = arith.cmpi ne, %28, %29 : vector<42x1xi32>
    %c0_i32_9 = arith.constant 0 : i32
    %31 = vector.broadcast %c0_i32_9 : i32 to vector<42x1xi32>
    %32 = arith.cmpi slt, %28, %31 : vector<42x1xi32>
    %c0_i32_10 = arith.constant 0 : i32
    %33 = arith.cmpi slt, %26, %c0_i32_10 : i32
    %34 = vector.broadcast %33 : i1 to vector<42x1xi1>
    %35 = vector.broadcast %34 : vector<42x1xi1> to vector<42x1xi1>
    %36 = arith.xori %32, %35 : vector<42x1xi1>
    %37 = arith.andi %36, %30 : vector<42x1xi1>
    %38 = vector.broadcast %26 : i32 to vector<42x1xi32>
    %39 = arith.addi %28, %38 : vector<42x1xi32>
    %40 = arith.select %37, %39, %28 : vector<42x1xi1>, vector<42x1xi32>
    %c4_i32 = arith.constant 4 : i32
    %41 = vector.broadcast %c4_i32 : i32 to vector<42x1xi32>
    %42 = arith.cmpi sle, %40, %41 : vector<42x1xi32>
    %43 = arith.andi %24, %42 : vector<42x1xi1>
    %44 = tpu.iota {dimensions = array<i32: 0>} : vector<24x1xi32>
    %c6_i32_11 = arith.constant 6 : i32
    %c0_i32_12 = arith.constant 0 : i32
    %45 = arith.cmpi eq, %c6_i32_11, %c0_i32_12 : i32
    %c1_i32_13 = arith.constant 1 : i32
    %46 = arith.select %45, %c1_i32_13, %c6_i32_11 : i32
    %47 = vector.broadcast %46 : i32 to vector<24x1xi32>
    %48 = arith.remsi %44, %47 : vector<24x1xi32>
    %c0_i32_14 = arith.constant 0 : i32
    %49 = vector.broadcast %c0_i32_14 : i32 to vector<24x1xi32>
    %50 = arith.cmpi ne, %48, %49 : vector<24x1xi32>
    %c0_i32_15 = arith.constant 0 : i32
    %51 = vector.broadcast %c0_i32_15 : i32 to vector<24x1xi32>
    %52 = arith.cmpi slt, %48, %51 : vector<24x1xi32>
    %c0_i32_16 = arith.constant 0 : i32
    %53 = arith.cmpi slt, %46, %c0_i32_16 : i32
    %54 = vector.broadcast %53 : i1 to vector<24x1xi1>
    %55 = vector.broadcast %54 : vector<24x1xi1> to vector<24x1xi1>
    %56 = arith.xori %52, %55 : vector<24x1xi1>
    %57 = arith.andi %56, %50 : vector<24x1xi1>
    %58 = vector.broadcast %46 : i32 to vector<24x1xi32>
    %59 = arith.addi %48, %58 : vector<24x1xi32>
    %60 = arith.select %57, %59, %48 : vector<24x1xi1>, vector<24x1xi32>
    %c4_i32_17 = arith.constant 4 : i32
    %61 = vector.broadcast %c4_i32_17 : i32 to vector<24x1xi32>
    %62 = arith.cmpi slt, %60, %61 : vector<24x1xi32>
    %63 = arith.extui %62 : vector<24x1xi1> to vector<24x1xi32>
    %64 = arith.sitofp %63 : vector<24x1xi32> to vector<24x1xf32>
    %cst = arith.constant 0.000000e+00 : f32
    %65 = vector.broadcast %cst : f32 to vector<1x32xf32>
    %cst_18 = arith.constant 0.000000e+00 : f32
    %66 = vector.broadcast %cst_18 : f32 to vector<1x32xf32>
    %c0 = arith.constant 0 : index
    %c0_19 = arith.constant 0 : index
    %c0_20 = arith.constant 0 : index
    %67 = vector.load %arg1[%c0, %c0_19, %c0_20] : memref<1x42x16xbf16, #tpu.memory_space<vmem>>, vector<1x42x16xbf16>
    %68 = vector.shape_cast %67 : vector<1x42x16xbf16> to vector<42x16xbf16>
    %69 = arith.extf %68 : vector<42x16xbf16> to vector<42x16xf32>
    %c0_21 = arith.constant 0 : index
    %c0_22 = arith.constant 0 : index
    %70 = vector.load %arg3[%c0_21, %c0_22] : memref<1x16xf32, #tpu.memory_space<vmem>>, vector<1x16xf32>
    %71 = vector.broadcast %70 : vector<1x16xf32> to vector<42x16xf32>
    %72 = arith.mulf %69, %71 : vector<42x16xf32>
    %c0_23 = arith.constant 0 : index
    %c0_24 = arith.constant 0 : index
    %73 = vector.load %arg4[%c0_23, %c0_24] : memref<1x16xf32, #tpu.memory_space<vmem>>, vector<1x16xf32>
    %74 = vector.broadcast %73 : vector<1x16xf32> to vector<42x16xf32>
    %75 = arith.addf %72, %74 : vector<42x16xf32>
    %cst_25 = arith.constant 0.000000e+00 : f32
    %76 = vector.broadcast %cst_25 : f32 to vector<42x16xf32>
    %77 = arith.maximumf %75, %76 : vector<42x16xf32>
    %cst_26 = arith.constant 0.000000e+00 : f32
    %78 = vector.shape_cast %43 : vector<42x1xi1> to vector<42x1xi1>
    %79 = vector.broadcast %78 : vector<42x1xi1> to vector<42x16xi1>
    %80 = vector.broadcast %cst_26 : f32 to vector<42x16xf32>
    %81 = arith.select %79, %77, %80 : vector<42x16xi1>, vector<42x16xf32>
    %82 = arith.truncf %81 : vector<42x16xf32> to vector<42x16xbf16>
    %c0_27 = arith.constant 0 : index
    %c0_28 = arith.constant 0 : index
    %83 = vector.load %arg8[%c0_27, %c0_28] : memref<42x16xbf16, #tpu.memory_space<vmem>>, vector<42x16xbf16>
    tpu.vector_store %arg8[%c0_27, %c0_28], %82 {strides = array<i32>} : memref<42x16xbf16, #tpu.memory_space<vmem>>, vector<42x16xbf16>,
    %cst_29 = arith.constant 0.000000e+00 : f32
    %84 = vector.broadcast %cst_29 : f32 to vector<24x32xf32>
    %c0_30 = arith.constant 0 : index
    %c0_31 = arith.constant 0 : index
    %85 = vector.load %arg8[%c0_30, %c0_31] : memref<42x16xbf16, #tpu.memory_space<vmem>>, vector<24x16xbf16>
    %c0_32 = arith.constant 0 : index
    %c0_33 = arith.constant 0 : index
    %c0_34 = arith.constant 0 : index
    %86 = vector.load %arg2[%c0_32, %c0_33, %c0_34] : memref<9x16x32xbf16, #tpu.memory_space<vmem>>, vector<1x16x32xbf16>
    %87 = vector.shape_cast %86 : vector<1x16x32xbf16> to vector<16x32xbf16>
    %cst_35 = arith.constant dense<0.000000e+00> : vector<24x32xf32>
    %88 = tpu.matmul %85, %87, %cst_35 {dimension_numbers = #tpu.dot_dimension_numbers<[1], [0], [0], [1], [0, 0, 1, 1], [], []>} : vector<24x16xbf16>, vector<16x32xbf16>, vector<24x32xf32> -> vector<24x32xf32>
    %89 = arith.addf %84, %88 : vector<24x32xf32>
    %c1 = arith.constant 1 : index
    %c0_36 = arith.constant 0 : index
    %90 = vector.load %arg8[%c1, %c0_36] : memref<42x16xbf16, #tpu.memory_space<vmem>>, vector<24x16xbf16>
    %c1_37 = arith.constant 1 : index
    %c0_38 = arith.constant 0 : index
    %c0_39 = arith.constant 0 : index
    %91 = vector.load %arg2[%c1_37, %c0_38, %c0_39] : memref<9x16x32xbf16, #tpu.memory_space<vmem>>, vector<1x16x32xbf16>
    %92 = vector.shape_cast %91 : vector<1x16x32xbf16> to vector<16x32xbf16>
    %cst_40 = arith.constant dense<0.000000e+00> : vector<24x32xf32>
    %93 = tpu.matmul %90, %92, %cst_40 {dimension_numbers = #tpu.dot_dimension_numbers<[1], [0], [0], [1], [0, 0, 1, 1], [], []>} : vector<24x16xbf16>, vector<16x32xbf16>, vector<24x32xf32> -> vector<24x32xf32>
    %94 = arith.addf %89, %93 : vector<24x32xf32>
    %c2 = arith.constant 2 : index
    %c0_41 = arith.constant 0 : index
    %95 = vector.load %arg8[%c2, %c0_41] : memref<42x16xbf16, #tpu.memory_space<vmem>>, vector<24x16xbf16>
    %c2_42 = arith.constant 2 : index
    %c0_43 = arith.constant 0 : index
    %c0_44 = arith.constant 0 : index
    %96 = vector.load %arg2[%c2_42, %c0_43, %c0_44] : memref<9x16x32xbf16, #tpu.memory_space<vmem>>, vector<1x16x32xbf16>
    %97 = vector.shape_cast %96 : vector<1x16x32xbf16> to vector<16x32xbf16>
    %cst_45 = arith.constant dense<0.000000e+00> : vector<24x32xf32>
    %98 = tpu.matmul %95, %97, %cst_45 {dimension_numbers = #tpu.dot_dimension_numbers<[1], [0], [0], [1], [0, 0, 1, 1], [], []>} : vector<24x16xbf16>, vector<16x32xbf16>, vector<24x32xf32> -> vector<24x32xf32>
    %99 = arith.addf %94, %98 : vector<24x32xf32>
    %c6 = arith.constant 6 : index
    %c0_46 = arith.constant 0 : index
    %100 = vector.load %arg8[%c6, %c0_46] : memref<42x16xbf16, #tpu.memory_space<vmem>>, vector<24x16xbf16>
    %c3 = arith.constant 3 : index
    %c0_47 = arith.constant 0 : index
    %c0_48 = arith.constant 0 : index
    %101 = vector.load %arg2[%c3, %c0_47, %c0_48] : memref<9x16x32xbf16, #tpu.memory_space<vmem>>, vector<1x16x32xbf16>
    %102 = vector.shape_cast %101 : vector<1x16x32xbf16> to vector<16x32xbf16>
    %cst_49 = arith.constant dense<0.000000e+00> : vector<24x32xf32>
    %103 = tpu.matmul %100, %102, %cst_49 {dimension_numbers = #tpu.dot_dimension_numbers<[1], [0], [0], [1], [0, 0, 1, 1], [], []>} : vector<24x16xbf16>, vector<16x32xbf16>, vector<24x32xf32> -> vector<24x32xf32>
    %104 = arith.addf %99, %103 : vector<24x32xf32>
    %c7 = arith.constant 7 : index
    %c0_50 = arith.constant 0 : index
    %105 = vector.load %arg8[%c7, %c0_50] : memref<42x16xbf16, #tpu.memory_space<vmem>>, vector<24x16xbf16>
    %c4 = arith.constant 4 : index
    %c0_51 = arith.constant 0 : index
    %c0_52 = arith.constant 0 : index
    %106 = vector.load %arg2[%c4, %c0_51, %c0_52] : memref<9x16x32xbf16, #tpu.memory_space<vmem>>, vector<1x16x32xbf16>
    %107 = vector.shape_cast %106 : vector<1x16x32xbf16> to vector<16x32xbf16>
    %cst_53 = arith.constant dense<0.000000e+00> : vector<24x32xf32>
    %108 = tpu.matmul %105, %107, %cst_53 {dimension_numbers = #tpu.dot_dimension_numbers<[1], [0], [0], [1], [0, 0, 1, 1], [], []>} : vector<24x16xbf16>, vector<16x32xbf16>, vector<24x32xf32> -> vector<24x32xf32>
    %109 = arith.addf %104, %108 : vector<24x32xf32>
    %c8 = arith.constant 8 : index
    %c0_54 = arith.constant 0 : index
    %110 = vector.load %arg8[%c8, %c0_54] : memref<42x16xbf16, #tpu.memory_space<vmem>>, vector<24x16xbf16>
    %c5 = arith.constant 5 : index
    %c0_55 = arith.constant 0 : index
    %c0_56 = arith.constant 0 : index
    %111 = vector.load %arg2[%c5, %c0_55, %c0_56] : memref<9x16x32xbf16, #tpu.memory_space<vmem>>, vector<1x16x32xbf16>
    %112 = vector.shape_cast %111 : vector<1x16x32xbf16> to vector<16x32xbf16>
    %cst_57 = arith.constant dense<0.000000e+00> : vector<24x32xf32>
    %113 = tpu.matmul %110, %112, %cst_57 {dimension_numbers = #tpu.dot_dimension_numbers<[1], [0], [0], [1], [0, 0, 1, 1], [], []>} : vector<24x16xbf16>, vector<16x32xbf16>, vector<24x32xf32> -> vector<24x32xf32>
    %114 = arith.addf %109, %113 : vector<24x32xf32>
    %c12 = arith.constant 12 : index
    %c0_58 = arith.constant 0 : index
    %115 = vector.load %arg8[%c12, %c0_58] : memref<42x16xbf16, #tpu.memory_space<vmem>>, vector<24x16xbf16>
    %c6_59 = arith.constant 6 : index
    %c0_60 = arith.constant 0 : index
    %c0_61 = arith.constant 0 : index
    %116 = vector.load %arg2[%c6_59, %c0_60, %c0_61] : memref<9x16x32xbf16, #tpu.memory_space<vmem>>, vector<1x16x32xbf16>
    %117 = vector.shape_cast %116 : vector<1x16x32xbf16> to vector<16x32xbf16>
    %cst_62 = arith.constant dense<0.000000e+00> : vector<24x32xf32>
    %118 = tpu.matmul %115, %117, %cst_62 {dimension_numbers = #tpu.dot_dimension_numbers<[1], [0], [0], [1], [0, 0, 1, 1], [], []>} : vector<24x16xbf16>, vector<16x32xbf16>, vector<24x32xf32> -> vector<24x32xf32>
    %119 = arith.addf %114, %118 : vector<24x32xf32>
    %c13 = arith.constant 13 : index
    %c0_63 = arith.constant 0 : index
    %120 = vector.load %arg8[%c13, %c0_63] : memref<42x16xbf16, #tpu.memory_space<vmem>>, vector<24x16xbf16>
    %c7_64 = arith.constant 7 : index
    %c0_65 = arith.constant 0 : index
    %c0_66 = arith.constant 0 : index
    %121 = vector.load %arg2[%c7_64, %c0_65, %c0_66] : memref<9x16x32xbf16, #tpu.memory_space<vmem>>, vector<1x16x32xbf16>
    %122 = vector.shape_cast %121 : vector<1x16x32xbf16> to vector<16x32xbf16>
    %cst_67 = arith.constant dense<0.000000e+00> : vector<24x32xf32>
    %123 = tpu.matmul %120, %122, %cst_67 {dimension_numbers = #tpu.dot_dimension_numbers<[1], [0], [0], [1], [0, 0, 1, 1], [], []>} : vector<24x16xbf16>, vector<16x32xbf16>, vector<24x32xf32> -> vector<24x32xf32>
    %124 = arith.addf %119, %123 : vector<24x32xf32>
    %c14 = arith.constant 14 : index
    %c0_68 = arith.constant 0 : index
    %125 = vector.load %arg8[%c14, %c0_68] : memref<42x16xbf16, #tpu.memory_space<vmem>>, vector<24x16xbf16>
    %c8_69 = arith.constant 8 : index
    %c0_70 = arith.constant 0 : index
    %c0_71 = arith.constant 0 : index
    %126 = vector.load %arg2[%c8_69, %c0_70, %c0_71] : memref<9x16x32xbf16, #tpu.memory_space<vmem>>, vector<1x16x32xbf16>
    %127 = vector.shape_cast %126 : vector<1x16x32xbf16> to vector<16x32xbf16>
    %cst_72 = arith.constant dense<0.000000e+00> : vector<24x32xf32>
    %128 = tpu.matmul %125, %127, %cst_72 {dimension_numbers = #tpu.dot_dimension_numbers<[1], [0], [0], [1], [0, 0, 1, 1], [], []>} : vector<24x16xbf16>, vector<16x32xbf16>, vector<24x32xf32> -> vector<24x32xf32>
    %129 = arith.addf %124, %128 : vector<24x32xf32>
    %130 = arith.truncf %129 : vector<24x32xf32> to vector<24x32xbf16>
    %c0_73 = arith.constant 0 : index
    %c0_74 = arith.constant 0 : index
    %c0_75 = arith.constant 0 : index
    %131 = vector.load %arg5[%c0_73, %c0_74, %c0_75] : memref<1x24x32xbf16, #tpu.memory_space<vmem>>, vector<1x24x32xbf16>
    %132 = vector.shape_cast %131 : vector<1x24x32xbf16> to vector<24x32xbf16>
    %133 = vector.shape_cast %130 : vector<24x32xbf16> to vector<1x24x32xbf16>
    tpu.vector_store %arg5[%c0_73, %c0_74, %c0_75], %133 {strides = array<i32>} : memref<1x24x32xbf16, #tpu.memory_space<vmem>>, vector<1x24x32xbf16>,
    %134 = vector.broadcast %64 : vector<24x1xf32> to vector<24x32xf32>
    %135 = arith.mulf %129, %134 : vector<24x32xf32>
    %cst_76 = arith.constant dense<0.000000e+00> : vector<32xf32>
    %136 = vector.multi_reduction <add>, %135, %cst_76 [0] : vector<24x32xf32> to vector<32xf32>
    %137 = vector.shape_cast %136 : vector<32xf32> to vector<1x32xf32>
    %138 = arith.addf %65, %137 : vector<1x32xf32>
    %139 = arith.mulf %135, %129 : vector<24x32xf32>
    %cst_77 = arith.constant dense<0.000000e+00> : vector<32xf32>
    %140 = vector.multi_reduction <add>, %139, %cst_77 [0] : vector<24x32xf32> to vector<32xf32>
    %141 = vector.shape_cast %140 : vector<32xf32> to vector<1x32xf32>
    %142 = arith.addf %66, %141 : vector<1x32xf32>
    %143 = vector.shape_cast %138 : vector<1x32xf32> to vector<1x1x32xf32>
    %c0_78 = arith.constant 0 : index
    %c0_79 = arith.constant 0 : index
    %c0_80 = arith.constant 0 : index
    %144 = vector.load %arg6[%c0_78, %c0_79, %c0_80] : memref<1x1x32xf32, #tpu.memory_space<vmem>>, vector<1x1x32xf32>
    tpu.vector_store %arg6[%c0_78, %c0_79, %c0_80], %143 {strides = array<i32>} : memref<1x1x32xf32, #tpu.memory_space<vmem>>, vector<1x1x32xf32>,
    %145 = vector.shape_cast %142 : vector<1x32xf32> to vector<1x1x32xf32>
    %c0_81 = arith.constant 0 : index
    %c0_82 = arith.constant 0 : index
    %c0_83 = arith.constant 0 : index
    %146 = vector.load %arg7[%c0_81, %c0_82, %c0_83] : memref<1x1x32xf32, #tpu.memory_space<vmem>>, vector<1x1x32xf32>
    tpu.vector_store %arg7[%c0_81, %c0_82, %c0_83], %145 {strides = array<i32>} : memref<1x1x32xf32, #tpu.memory_space<vmem>>, vector<1x1x32xf32>,
    return
  }
  func.func @transform_0(%arg0: i32) -> (i32, i32, i32) {
    %c0_i32 = arith.constant 0 : i32
    %c0_i32_0 = arith.constant 0 : i32
    %c0_i32_1 = arith.constant 0 : i32
    return %arg0, %c0_i32, %c0_i32_0 : i32, i32, i32
  }
  func.func @transform_1(%arg0: i32) -> (i32, i32, i32) {
    %c0_i32 = arith.constant 0 : i32
    %c0_i32_0 = arith.constant 0 : i32
    %c0_i32_1 = arith.constant 0 : i32
    %c0_i32_2 = arith.constant 0 : i32
    return %c0_i32, %c0_i32_0, %c0_i32_1 : i32, i32, i32
  }
  func.func @transform_2(%arg0: i32) -> (i32, i32) {
    %c0_i32 = arith.constant 0 : i32
    %c0_i32_0 = arith.constant 0 : i32
    %c0_i32_1 = arith.constant 0 : i32
    return %c0_i32, %c0_i32_0 : i32, i32
  }
  func.func @transform_3(%arg0: i32) -> (i32, i32) {
    %c0_i32 = arith.constant 0 : i32
    %c0_i32_0 = arith.constant 0 : i32
    %c0_i32_1 = arith.constant 0 : i32
    return %c0_i32, %c0_i32_0 : i32, i32
  }
  func.func @transform_4(%arg0: i32) -> (i32, i32, i32) {
    %c0_i32 = arith.constant 0 : i32
    %c0_i32_0 = arith.constant 0 : i32
    %c0_i32_1 = arith.constant 0 : i32
    return %arg0, %c0_i32, %c0_i32_0 : i32, i32, i32
  }
  func.func @transform_5(%arg0: i32) -> (i32, i32, i32) {
    %c0_i32 = arith.constant 0 : i32
    %c0_i32_0 = arith.constant 0 : i32
    %c0_i32_1 = arith.constant 0 : i32
    return %arg0, %c0_i32, %c0_i32_0 : i32, i32, i32
  }
  func.func @transform_6(%arg0: i32) -> (i32, i32, i32) {
    %c0_i32 = arith.constant 0 : i32
    %c0_i32_0 = arith.constant 0 : i32
    %c0_i32_1 = arith.constant 0 : i32
    return %arg0, %c0_i32, %c0_i32_0 : i32, i32, i32
  }
}

module attributes {stable_mosaic.version = 11 : i64} {
  func.func @kernel(%arg0: i32, %arg1: memref<1x110x8xbf16, #tpu.memory_space<vmem>>, %arg2: memref<9x8x12xbf16, #tpu.memory_space<vmem>>, %arg3: memref<1x8xf32, #tpu.memory_space<vmem>>, %arg4: memref<1x8xf32, #tpu.memory_space<vmem>>, %arg5: memref<1x80x12xf32, #tpu.memory_space<vmem>>, %arg6: memref<110x8xbf16, #tpu.memory_space<vmem>>) attributes {dimension_semantics = [#tpu.dimension_semantics<parallel>], iteration_bounds = array<i64: 2>, scalar_prefetch = 0 : i64, scratch_operands = 1 : i64, tpu.core_type = #tpu.core_type<tc>, window_params = [{transform_indices = @transform_0, window_bounds = array<i64: 1, 110, 8>}, {pipeline_mode = #tpu.pipeline_mode<synchronous>, transform_indices = @transform_1, window_bounds = array<i64: 9, 8, 12>}, {pipeline_mode = #tpu.pipeline_mode<synchronous>, transform_indices = @transform_2, window_bounds = array<i64: 1, 8>}, {pipeline_mode = #tpu.pipeline_mode<synchronous>, transform_indices = @transform_3, window_bounds = array<i64: 1, 8>}, {transform_indices = @transform_4, window_bounds = array<i64: 1, 80, 12>}]} {
    %0 = tpu.iota {dimensions = array<i32: 0>} : vector<110x1xi32>
    %c10_i32 = arith.constant 10 : i32
    %1 = vector.broadcast %c10_i32 : i32 to vector<110x1xi32>
    %2 = arith.cmpi sge, %0, %1 : vector<110x1xi32>
    %c90_i32 = arith.constant 90 : i32
    %3 = vector.broadcast %c90_i32 : i32 to vector<110x1xi32>
    %4 = arith.cmpi slt, %0, %3 : vector<110x1xi32>
    %5 = arith.andi %2, %4 : vector<110x1xi1>
    %c10_i32_0 = arith.constant 10 : i32
    %c0_i32 = arith.constant 0 : i32
    %6 = arith.cmpi eq, %c10_i32_0, %c0_i32 : i32
    %c1_i32 = arith.constant 1 : i32
    %7 = arith.select %6, %c1_i32, %c10_i32_0 : i32
    %8 = vector.broadcast %7 : i32 to vector<110x1xi32>
    %9 = arith.remsi %0, %8 : vector<110x1xi32>
    %c0_i32_1 = arith.constant 0 : i32
    %10 = vector.broadcast %c0_i32_1 : i32 to vector<110x1xi32>
    %11 = arith.cmpi ne, %9, %10 : vector<110x1xi32>
    %c0_i32_2 = arith.constant 0 : i32
    %12 = vector.broadcast %c0_i32_2 : i32 to vector<110x1xi32>
    %13 = arith.cmpi slt, %9, %12 : vector<110x1xi32>
    %c0_i32_3 = arith.constant 0 : i32
    %14 = arith.cmpi slt, %7, %c0_i32_3 : i32
    %15 = vector.broadcast %14 : i1 to vector<110x1xi1>
    %16 = vector.broadcast %15 : vector<110x1xi1> to vector<110x1xi1>
    %17 = arith.xori %13, %16 : vector<110x1xi1>
    %18 = arith.andi %17, %11 : vector<110x1xi1>
    %19 = vector.broadcast %7 : i32 to vector<110x1xi32>
    %20 = arith.addi %9, %19 : vector<110x1xi32>
    %21 = arith.select %18, %20, %9 : vector<110x1xi1>, vector<110x1xi32>
    %c1_i32_4 = arith.constant 1 : i32
    %22 = vector.broadcast %c1_i32_4 : i32 to vector<110x1xi32>
    %23 = arith.cmpi sge, %21, %22 : vector<110x1xi32>
    %24 = arith.andi %5, %23 : vector<110x1xi1>
    %c10_i32_5 = arith.constant 10 : i32
    %c0_i32_6 = arith.constant 0 : i32
    %25 = arith.cmpi eq, %c10_i32_5, %c0_i32_6 : i32
    %c1_i32_7 = arith.constant 1 : i32
    %26 = arith.select %25, %c1_i32_7, %c10_i32_5 : i32
    %27 = vector.broadcast %26 : i32 to vector<110x1xi32>
    %28 = arith.remsi %0, %27 : vector<110x1xi32>
    %c0_i32_8 = arith.constant 0 : i32
    %29 = vector.broadcast %c0_i32_8 : i32 to vector<110x1xi32>
    %30 = arith.cmpi ne, %28, %29 : vector<110x1xi32>
    %c0_i32_9 = arith.constant 0 : i32
    %31 = vector.broadcast %c0_i32_9 : i32 to vector<110x1xi32>
    %32 = arith.cmpi slt, %28, %31 : vector<110x1xi32>
    %c0_i32_10 = arith.constant 0 : i32
    %33 = arith.cmpi slt, %26, %c0_i32_10 : i32
    %34 = vector.broadcast %33 : i1 to vector<110x1xi1>
    %35 = vector.broadcast %34 : vector<110x1xi1> to vector<110x1xi1>
    %36 = arith.xori %32, %35 : vector<110x1xi1>
    %37 = arith.andi %36, %30 : vector<110x1xi1>
    %38 = vector.broadcast %26 : i32 to vector<110x1xi32>
    %39 = arith.addi %28, %38 : vector<110x1xi32>
    %40 = arith.select %37, %39, %28 : vector<110x1xi1>, vector<110x1xi32>
    %c8_i32 = arith.constant 8 : i32
    %41 = vector.broadcast %c8_i32 : i32 to vector<110x1xi32>
    %42 = arith.cmpi sle, %40, %41 : vector<110x1xi32>
    %43 = arith.andi %24, %42 : vector<110x1xi1>
    %c0 = arith.constant 0 : index
    %c0_11 = arith.constant 0 : index
    %c0_12 = arith.constant 0 : index
    %44 = vector.load %arg1[%c0, %c0_11, %c0_12] : memref<1x110x8xbf16, #tpu.memory_space<vmem>>, vector<1x110x8xbf16>
    %45 = vector.shape_cast %44 : vector<1x110x8xbf16> to vector<110x8xbf16>
    %46 = arith.extf %45 : vector<110x8xbf16> to vector<110x8xf32>
    %c0_13 = arith.constant 0 : index
    %c0_14 = arith.constant 0 : index
    %47 = vector.load %arg3[%c0_13, %c0_14] : memref<1x8xf32, #tpu.memory_space<vmem>>, vector<1x8xf32>
    %48 = vector.broadcast %47 : vector<1x8xf32> to vector<110x8xf32>
    %49 = arith.mulf %46, %48 : vector<110x8xf32>
    %c0_15 = arith.constant 0 : index
    %c0_16 = arith.constant 0 : index
    %50 = vector.load %arg4[%c0_15, %c0_16] : memref<1x8xf32, #tpu.memory_space<vmem>>, vector<1x8xf32>
    %51 = vector.broadcast %50 : vector<1x8xf32> to vector<110x8xf32>
    %52 = arith.addf %49, %51 : vector<110x8xf32>
    %cst = arith.constant 0.000000e+00 : f32
    %53 = vector.broadcast %cst : f32 to vector<110x8xf32>
    %54 = arith.maximumf %52, %53 : vector<110x8xf32>
    %cst_17 = arith.constant 0.000000e+00 : f32
    %55 = vector.shape_cast %43 : vector<110x1xi1> to vector<110x1xi1>
    %56 = vector.broadcast %55 : vector<110x1xi1> to vector<110x8xi1>
    %57 = vector.broadcast %cst_17 : f32 to vector<110x8xf32>
    %58 = arith.select %56, %54, %57 : vector<110x8xi1>, vector<110x8xf32>
    %59 = arith.truncf %58 : vector<110x8xf32> to vector<110x8xbf16>
    %c0_18 = arith.constant 0 : index
    %c0_19 = arith.constant 0 : index
    %60 = vector.load %arg6[%c0_18, %c0_19] : memref<110x8xbf16, #tpu.memory_space<vmem>>, vector<110x8xbf16>
    tpu.vector_store %arg6[%c0_18, %c0_19], %59 {strides = array<i32>} : memref<110x8xbf16, #tpu.memory_space<vmem>>, vector<110x8xbf16>,
    %cst_20 = arith.constant 0.000000e+00 : f32
    %61 = vector.broadcast %cst_20 : f32 to vector<80x12xf32>
    %c0_21 = arith.constant 0 : index
    %c0_22 = arith.constant 0 : index
    %62 = vector.load %arg6[%c0_21, %c0_22] : memref<110x8xbf16, #tpu.memory_space<vmem>>, vector<80x8xbf16>
    %c0_23 = arith.constant 0 : index
    %c0_24 = arith.constant 0 : index
    %c0_25 = arith.constant 0 : index
    %63 = vector.load %arg2[%c0_23, %c0_24, %c0_25] : memref<9x8x12xbf16, #tpu.memory_space<vmem>>, vector<1x8x12xbf16>
    %64 = vector.shape_cast %63 : vector<1x8x12xbf16> to vector<8x12xbf16>
    %cst_26 = arith.constant dense<0.000000e+00> : vector<80x12xf32>
    %65 = tpu.matmul %62, %64, %cst_26 {dimension_numbers = #tpu.dot_dimension_numbers<[1], [0], [0], [1], [0, 0, 1, 1], [], []>} : vector<80x8xbf16>, vector<8x12xbf16>, vector<80x12xf32> -> vector<80x12xf32>
    %66 = arith.addf %61, %65 : vector<80x12xf32>
    %c1 = arith.constant 1 : index
    %c0_27 = arith.constant 0 : index
    %67 = vector.load %arg6[%c1, %c0_27] : memref<110x8xbf16, #tpu.memory_space<vmem>>, vector<80x8xbf16>
    %c1_28 = arith.constant 1 : index
    %c0_29 = arith.constant 0 : index
    %c0_30 = arith.constant 0 : index
    %68 = vector.load %arg2[%c1_28, %c0_29, %c0_30] : memref<9x8x12xbf16, #tpu.memory_space<vmem>>, vector<1x8x12xbf16>
    %69 = vector.shape_cast %68 : vector<1x8x12xbf16> to vector<8x12xbf16>
    %cst_31 = arith.constant dense<0.000000e+00> : vector<80x12xf32>
    %70 = tpu.matmul %67, %69, %cst_31 {dimension_numbers = #tpu.dot_dimension_numbers<[1], [0], [0], [1], [0, 0, 1, 1], [], []>} : vector<80x8xbf16>, vector<8x12xbf16>, vector<80x12xf32> -> vector<80x12xf32>
    %71 = arith.addf %66, %70 : vector<80x12xf32>
    %c2 = arith.constant 2 : index
    %c0_32 = arith.constant 0 : index
    %72 = vector.load %arg6[%c2, %c0_32] : memref<110x8xbf16, #tpu.memory_space<vmem>>, vector<80x8xbf16>
    %c2_33 = arith.constant 2 : index
    %c0_34 = arith.constant 0 : index
    %c0_35 = arith.constant 0 : index
    %73 = vector.load %arg2[%c2_33, %c0_34, %c0_35] : memref<9x8x12xbf16, #tpu.memory_space<vmem>>, vector<1x8x12xbf16>
    %74 = vector.shape_cast %73 : vector<1x8x12xbf16> to vector<8x12xbf16>
    %cst_36 = arith.constant dense<0.000000e+00> : vector<80x12xf32>
    %75 = tpu.matmul %72, %74, %cst_36 {dimension_numbers = #tpu.dot_dimension_numbers<[1], [0], [0], [1], [0, 0, 1, 1], [], []>} : vector<80x8xbf16>, vector<8x12xbf16>, vector<80x12xf32> -> vector<80x12xf32>
    %76 = arith.addf %71, %75 : vector<80x12xf32>
    %c10 = arith.constant 10 : index
    %c0_37 = arith.constant 0 : index
    %77 = vector.load %arg6[%c10, %c0_37] : memref<110x8xbf16, #tpu.memory_space<vmem>>, vector<80x8xbf16>
    %c3 = arith.constant 3 : index
    %c0_38 = arith.constant 0 : index
    %c0_39 = arith.constant 0 : index
    %78 = vector.load %arg2[%c3, %c0_38, %c0_39] : memref<9x8x12xbf16, #tpu.memory_space<vmem>>, vector<1x8x12xbf16>
    %79 = vector.shape_cast %78 : vector<1x8x12xbf16> to vector<8x12xbf16>
    %cst_40 = arith.constant dense<0.000000e+00> : vector<80x12xf32>
    %80 = tpu.matmul %77, %79, %cst_40 {dimension_numbers = #tpu.dot_dimension_numbers<[1], [0], [0], [1], [0, 0, 1, 1], [], []>} : vector<80x8xbf16>, vector<8x12xbf16>, vector<80x12xf32> -> vector<80x12xf32>
    %81 = arith.addf %76, %80 : vector<80x12xf32>
    %c11 = arith.constant 11 : index
    %c0_41 = arith.constant 0 : index
    %82 = vector.load %arg6[%c11, %c0_41] : memref<110x8xbf16, #tpu.memory_space<vmem>>, vector<80x8xbf16>
    %c4 = arith.constant 4 : index
    %c0_42 = arith.constant 0 : index
    %c0_43 = arith.constant 0 : index
    %83 = vector.load %arg2[%c4, %c0_42, %c0_43] : memref<9x8x12xbf16, #tpu.memory_space<vmem>>, vector<1x8x12xbf16>
    %84 = vector.shape_cast %83 : vector<1x8x12xbf16> to vector<8x12xbf16>
    %cst_44 = arith.constant dense<0.000000e+00> : vector<80x12xf32>
    %85 = tpu.matmul %82, %84, %cst_44 {dimension_numbers = #tpu.dot_dimension_numbers<[1], [0], [0], [1], [0, 0, 1, 1], [], []>} : vector<80x8xbf16>, vector<8x12xbf16>, vector<80x12xf32> -> vector<80x12xf32>
    %86 = arith.addf %81, %85 : vector<80x12xf32>
    %c12 = arith.constant 12 : index
    %c0_45 = arith.constant 0 : index
    %87 = vector.load %arg6[%c12, %c0_45] : memref<110x8xbf16, #tpu.memory_space<vmem>>, vector<80x8xbf16>
    %c5 = arith.constant 5 : index
    %c0_46 = arith.constant 0 : index
    %c0_47 = arith.constant 0 : index
    %88 = vector.load %arg2[%c5, %c0_46, %c0_47] : memref<9x8x12xbf16, #tpu.memory_space<vmem>>, vector<1x8x12xbf16>
    %89 = vector.shape_cast %88 : vector<1x8x12xbf16> to vector<8x12xbf16>
    %cst_48 = arith.constant dense<0.000000e+00> : vector<80x12xf32>
    %90 = tpu.matmul %87, %89, %cst_48 {dimension_numbers = #tpu.dot_dimension_numbers<[1], [0], [0], [1], [0, 0, 1, 1], [], []>} : vector<80x8xbf16>, vector<8x12xbf16>, vector<80x12xf32> -> vector<80x12xf32>
    %91 = arith.addf %86, %90 : vector<80x12xf32>
    %c20 = arith.constant 20 : index
    %c0_49 = arith.constant 0 : index
    %92 = vector.load %arg6[%c20, %c0_49] : memref<110x8xbf16, #tpu.memory_space<vmem>>, vector<80x8xbf16>
    %c6 = arith.constant 6 : index
    %c0_50 = arith.constant 0 : index
    %c0_51 = arith.constant 0 : index
    %93 = vector.load %arg2[%c6, %c0_50, %c0_51] : memref<9x8x12xbf16, #tpu.memory_space<vmem>>, vector<1x8x12xbf16>
    %94 = vector.shape_cast %93 : vector<1x8x12xbf16> to vector<8x12xbf16>
    %cst_52 = arith.constant dense<0.000000e+00> : vector<80x12xf32>
    %95 = tpu.matmul %92, %94, %cst_52 {dimension_numbers = #tpu.dot_dimension_numbers<[1], [0], [0], [1], [0, 0, 1, 1], [], []>} : vector<80x8xbf16>, vector<8x12xbf16>, vector<80x12xf32> -> vector<80x12xf32>
    %96 = arith.addf %91, %95 : vector<80x12xf32>
    %c21 = arith.constant 21 : index
    %c0_53 = arith.constant 0 : index
    %97 = vector.load %arg6[%c21, %c0_53] : memref<110x8xbf16, #tpu.memory_space<vmem>>, vector<80x8xbf16>
    %c7 = arith.constant 7 : index
    %c0_54 = arith.constant 0 : index
    %c0_55 = arith.constant 0 : index
    %98 = vector.load %arg2[%c7, %c0_54, %c0_55] : memref<9x8x12xbf16, #tpu.memory_space<vmem>>, vector<1x8x12xbf16>
    %99 = vector.shape_cast %98 : vector<1x8x12xbf16> to vector<8x12xbf16>
    %cst_56 = arith.constant dense<0.000000e+00> : vector<80x12xf32>
    %100 = tpu.matmul %97, %99, %cst_56 {dimension_numbers = #tpu.dot_dimension_numbers<[1], [0], [0], [1], [0, 0, 1, 1], [], []>} : vector<80x8xbf16>, vector<8x12xbf16>, vector<80x12xf32> -> vector<80x12xf32>
    %101 = arith.addf %96, %100 : vector<80x12xf32>
    %c22 = arith.constant 22 : index
    %c0_57 = arith.constant 0 : index
    %102 = vector.load %arg6[%c22, %c0_57] : memref<110x8xbf16, #tpu.memory_space<vmem>>, vector<80x8xbf16>
    %c8 = arith.constant 8 : index
    %c0_58 = arith.constant 0 : index
    %c0_59 = arith.constant 0 : index
    %103 = vector.load %arg2[%c8, %c0_58, %c0_59] : memref<9x8x12xbf16, #tpu.memory_space<vmem>>, vector<1x8x12xbf16>
    %104 = vector.shape_cast %103 : vector<1x8x12xbf16> to vector<8x12xbf16>
    %cst_60 = arith.constant dense<0.000000e+00> : vector<80x12xf32>
    %105 = tpu.matmul %102, %104, %cst_60 {dimension_numbers = #tpu.dot_dimension_numbers<[1], [0], [0], [1], [0, 0, 1, 1], [], []>} : vector<80x8xbf16>, vector<8x12xbf16>, vector<80x12xf32> -> vector<80x12xf32>
    %106 = arith.addf %101, %105 : vector<80x12xf32>
    %107 = math.tanh %106 : vector<80x12xf32>
    %c0_61 = arith.constant 0 : index
    %c0_62 = arith.constant 0 : index
    %c0_63 = arith.constant 0 : index
    %108 = vector.load %arg5[%c0_61, %c0_62, %c0_63] : memref<1x80x12xf32, #tpu.memory_space<vmem>>, vector<1x80x12xf32>
    %109 = vector.shape_cast %108 : vector<1x80x12xf32> to vector<80x12xf32>
    %110 = vector.shape_cast %107 : vector<80x12xf32> to vector<1x80x12xf32>
    tpu.vector_store %arg5[%c0_61, %c0_62, %c0_63], %110 {strides = array<i32>} : memref<1x80x12xf32, #tpu.memory_space<vmem>>, vector<1x80x12xf32>,
    return
  }
  func.func @transform_0(%arg0: i32) -> (i32, i32, i32) {
    %c0_i32 = arith.constant 0 : i32
    %c0_i32_0 = arith.constant 0 : i32
    %c0_i32_1 = arith.constant 0 : i32
    return %arg0, %c0_i32, %c0_i32_0 : i32, i32, i32
  }
  func.func @transform_1(%arg0: i32) -> (i32, i32, i32) {
    %c0_i32 = arith.constant 0 : i32
    %c0_i32_0 = arith.constant 0 : i32
    %c0_i32_1 = arith.constant 0 : i32
    %c0_i32_2 = arith.constant 0 : i32
    return %c0_i32, %c0_i32_0, %c0_i32_1 : i32, i32, i32
  }
  func.func @transform_2(%arg0: i32) -> (i32, i32) {
    %c0_i32 = arith.constant 0 : i32
    %c0_i32_0 = arith.constant 0 : i32
    %c0_i32_1 = arith.constant 0 : i32
    return %c0_i32, %c0_i32_0 : i32, i32
  }
  func.func @transform_3(%arg0: i32) -> (i32, i32) {
    %c0_i32 = arith.constant 0 : i32
    %c0_i32_0 = arith.constant 0 : i32
    %c0_i32_1 = arith.constant 0 : i32
    return %c0_i32, %c0_i32_0 : i32, i32
  }
  func.func @transform_4(%arg0: i32) -> (i32, i32, i32) {
    %c0_i32 = arith.constant 0 : i32
    %c0_i32_0 = arith.constant 0 : i32
    %c0_i32_1 = arith.constant 0 : i32
    return %arg0, %c0_i32, %c0_i32_0 : i32, i32, i32
  }
}

</mosaic_0001>

<llo_original>
// kernel: generator_forward.3
$region0: #{generator_forward.3}
  #allocation0 [shape = 'u32[]', space=smem, size = 0x4, offset = 0x4, fixed_abs, tag = 'smem constant byte address 0x4 - core index']
  #allocation1 [shape = 'u32[72,128]{1,0:T(1,128)}', space=vmem, size = 0x9000, scoped, tag = 'internal scratch']
  %s0 = inlined_call_operand.vmem [shape: bf16[2,8], index: 0, kind: input, shape index: {}]
  %s1 = inlined_call_operand.hbm [shape: bf16[8,672], index: 1, kind: input, shape index: {}]
  %s2 = inlined_call_operand.vmem [shape: bf16[2,672], index: 2, kind: output, shape index: {0}]
  %s3 = inlined_call_operand.vmem [shape: f32[1,1,672], index: 3, kind: output, shape index: {1}]
  %s4 = inlined_call_operand.vmem [shape: f32[1,1,672], index: 4, kind: output, shape index: {2}]
  %5 = xla_tuple %s2, %s3, %s4
  %s6 = sld [smem:[#allocation0]]
  $region38: #{generator_forward.3} parent=0
    _
  %s8 = ssub.s32 1, %s6
  %s9 = scalar_select 0, %s8, %s6
  $region1: #{generator_forward.3} parent=0
    #allocation2 [shape = 'u8[12288]{0}', space=vmem, size = 0x3000, scoped, tag = 'input window, operand 1, single buffered']
    #allocation3 [shape = 's32[1]{0}', space=sflag, size = 0x4, scoped, tag = 'scoped memory for generator_forward.3']
    %10 = vsyncpa [#allocation3], 0
    // Predicated region
    $region2: #{generator_forward.3} parent=1 // pred_check
      _
    $region3: #{generator_forward.3} parent=1 // pred_check_branch
      %12 = sbr.rel (0) target = $region5
    $region4: #{generator_forward.3} parent=1 // pred_region
      _
    $region5: #{generator_forward.3} parent=1 // pred_fallthru
      _
    // Predicated region
    $region6: #{generator_forward.3} parent=1 // pred_check
      _
    $region7: #{generator_forward.3} parent=1 // pred_check_branch
      %14 = sbr.rel (0) target = $region9
    $region8: #{generator_forward.3} parent=1 // pred_region
      %16 = vsyncadd [#allocation3], 0
      %s18 = sshll.u32 %s1, 4
      %s19 = int_to_ptr.hbm [resolvable:$true] %s18
      %s20 = sshll.u32 [#allocation2], 4
      %s21 = int_to_ptr.vmem [resolvable:$true] %s20
      %23 = dma.hbm_to_vmem [thread:$0]  %s19, 384, %s21, [#allocation3]
    $region9: #{generator_forward.3} parent=1 // pred_fallthru
      _
    // Predicated region
    $region10: #{generator_forward.3} parent=1 // pred_check
      _
    $region11: #{generator_forward.3} parent=1 // pred_check_branch
      %25 = sbr.rel (0) target = $region13
    $region12: #{generator_forward.3} parent=1 // pred_region
      %27 = dma.done [#allocation3], 384
    $region13: #{generator_forward.3} parent=1 // pred_fallthru
      _
    %v29 = vld [vmem:[%s0] sm:$0x1]
    %v30 = vld [vmem:[#allocation2] sm:$0xff]
    %v31 = vld [vmem:[#allocation2 + $0x8] sm:$0xff]
    %v32 = vld [vmem:[#allocation2 + $0x10] sm:$0xff]
    %v36 = vunpack.c.l.b16 %v30
    %v37 = vunpack.c.h.b16 %v30
    %v38 = vunpack.c.l.b16 %v31
    %v39 = vunpack.c.h.b16 %v31
    %v40 = vunpack.c.l.b16 %v32
    %v41 = vunpack.c.h.b16 %v32
    %v42 = vpack.c.b16 %v36, %v36
    %v43 = vpack.c.b16 %v37, %v37
    %v44 = vpack.c.b16 %v38, %v38
    %v45 = vpack.c.b16 %v39, %v39
    %v46 = vpack.c.b16 %v40, %v40
    %v47 = vpack.c.b16 %v41, %v41
    %vm48 = vcmask 64512
    %v50 = vsel %vm48, %v29, 0
    %vm52 = vcmask 1043456
    %v54 = vsel %vm52, %v42, 0
    %v57 = vsel %vm52, %v43, 0
    %v60 = vsel %vm52, %v44, 0
    %v63 = vsel %vm52, %v45, 0
    %v66 = vsel %vm52, %v46, 0
    %v69 = vsel %vm52, %v47, 0
    %71 = vmatpush.bf16.msra.mxu0 0
    %72 = vmatpush.bf16.msra.mxu0 0
    %73 = vmatpush.bf16.msra.mxu0 0
    %74 = vmatpush.bf16.msra.mxu0 0
    %75 = vmatpush.bf16.msra.mxu0 0
    %76 = vmatpush.bf16.msra.mxu0 0
    %77 = vmatpush.bf16.msra.mxu0 0
    %78 = vmatpush.bf16.msra.mxu0 %v54
    %79 = vmatmul.bf16.gmra.mxu0 %v50
    %v80 = vpop.f32.mrf.mxu0
    %v81 = vadd.f32 0.0, %v80
    %v82 = vpop.f32.mrf.mxu0
    %83 = vdwg.mxu0
    %84 = vmatpush.bf16.msra.mxu0 0
    %85 = vmatpush.bf16.msra.mxu0 0
    %86 = vmatpush.bf16.msra.mxu0 0
    %87 = vmatpush.bf16.msra.mxu0 0
    %88 = vmatpush.bf16.msra.mxu0 0
    %89 = vmatpush.bf16.msra.mxu0 0
    %90 = vmatpush.bf16.msra.mxu0 0
    %91 = vmatpush.bf16.msra.mxu0 %v57
    %92 = vmatmul.bf16.gmra.mxu0 %v50
    %v93 = vpop.f32.mrf.mxu0
    %v94 = vadd.f32 0.0, %v93
    %v95 = vpop.f32.mrf.mxu0
    %96 = vdwg.mxu0
    %97 = vmatpush.bf16.msra.mxu0 0
    %98 = vmatpush.bf16.msra.mxu0 0
    %99 = vmatpush.bf16.msra.mxu0 0
    %100 = vmatpush.bf16.msra.mxu0 0
    %101 = vmatpush.bf16.msra.mxu0 0
    %102 = vmatpush.bf16.msra.mxu0 0
    %103 = vmatpush.bf16.msra.mxu0 0
    %104 = vmatpush.bf16.msra.mxu0 %v60
    %105 = vmatmul.bf16.gmra.mxu0 %v50
    %v106 = vpop.f32.mrf.mxu0
    %v107 = vadd.f32 0.0, %v106
    %v108 = vpop.f32.mrf.mxu0
    %109 = vdwg.mxu0
    %110 = vmatpush.bf16.msra.mxu0 0
    %111 = vmatpush.bf16.msra.mxu0 0
    %112 = vmatpush.bf16.msra.mxu0 0
    %113 = vmatpush.bf16.msra.mxu0 0
    %114 = vmatpush.bf16.msra.mxu0 0
    %115 = vmatpush.bf16.msra.mxu0 0
    %116 = vmatpush.bf16.msra.mxu0 0
    %117 = vmatpush.bf16.msra.mxu0 %v63
    %118 = vmatmul.bf16.gmra.mxu0 %v50
    %v119 = vpop.f32.mrf.mxu0
    %v120 = vadd.f32 0.0, %v119
    %v121 = vpop.f32.mrf.mxu0
    %122 = vdwg.mxu0
    %123 = vmatpush.bf16.msra.mxu0 0
    %124 = vmatpush.bf16.msra.mxu0 0
    %125 = vmatpush.bf16.msra.mxu0 0
    %126 = vmatpush.bf16.msra.mxu0 0
    %127 = vmatpush.bf16.msra.mxu0 0
    %128 = vmatpush.bf16.msra.mxu0 0
    %129 = vmatpush.bf16.msra.mxu0 0
    %130 = vmatpush.bf16.msra.mxu0 %v66
    %131 = vmatmul.bf16.gmra.mxu0 %v50
    %v132 = vpop.f32.mrf.mxu0
    %v133 = vadd.f32 0.0, %v132
    %v134 = vpop.f32.mrf.mxu0
    %135 = vdwg.mxu0
    %136 = vmatpush.bf16.msra.mxu0 0
    %137 = vmatpush.bf16.msra.mxu0 0
    %138 = vmatpush.bf16.msra.mxu0 0
    %139 = vmatpush.bf16.msra.mxu0 0
    %140 = vmatpush.bf16.msra.mxu0 0
    %141 = vmatpush.bf16.msra.mxu0 0
    %142 = vmatpush.bf16.msra.mxu0 0
    %143 = vmatpush.bf16.msra.mxu0 %v69
    %144 = vmatmul.bf16.gmra.mxu0 %v50
    %v145 = vpop.f32.mrf.mxu0
    %v146 = vadd.f32 0.0, %v145
    %v147 = vpop.f32.mrf.mxu0
    %148 = vdwg.mxu0
    %v149 = vpack.c.bf16 %v94, %v81
    %v150 = vpack.c.bf16 %v120, %v107
    %v151 = vpack.c.bf16 %v146, %v133
    %v155 = vrot.slane %v149, 3
    %v156 = vrot.slane %v150, 6
    %v157 = vrot.slane %v150, 1
    %v158 = vrot.slane %v151, 4
    %v159 = vrot.slane %v151, 7
    %vm160 = vcmask 1040384
    %v163 = vsel %vm160, %v149, %v155
    %vm164 = vcmask 1041408
    %v166 = vsel %vm164, %v163, %v156
    %vm167 = vcmask 1043459
    %v170 = vsel %vm167, %v157, %v158
    %vm171 = vcmask 1044483
    %v173 = vsel %vm171, %v170, %v159
    %vm174 = vcmask 1042432
    %v175 = vsel %vm174, %v166, %v173
    %vm177 = vcmask 1041409
    %vm178 = vmor %vm177, %vm160
    %vm179 = vcmask 1042434
    %vm180 = vmor %vm179, %vm178
    %vm181 = vmor %vm167, %vm180
    %vm182 = vcmask 1044484
    %vm183 = vmor %vm182, %vm181
    %vm184 = vcmask 259077
    %vm185 = vmor %vm184, %vm183
    %186 = vst.msk [vmem:[%s2] sm:$0x3f] %vm185, %v175
    %v187 = vsel %vm164, %v81, 0.0
    %v188 = vrot.slane %v187, 4
    %v189 = vadd.f32 %v187, %v188
    %v190 = vrot.slane %v189, 2
    %v191 = vadd.f32 %v189, %v190
    %v192 = vrot.slane %v191, 1
    %v193 = vadd.f32 %v191, %v192
    %v194 = vsel %vm164, %v94, 0.0
    %v195 = vrot.slane %v194, 4
    %v196 = vadd.f32 %v194, %v195
    %v197 = vrot.slane %v196, 2
    %v198 = vadd.f32 %v196, %v197
    %v199 = vrot.slane %v198, 1
    %v200 = vadd.f32 %v198, %v199
    %v201 = vsel %vm164, %v107, 0.0
    %v202 = vrot.slane %v201, 4
    %v203 = vadd.f32 %v201, %v202
    %v204 = vrot.slane %v203, 2
    %v205 = vadd.f32 %v203, %v204
    %v206 = vrot.slane %v205, 1
    %v207 = vadd.f32 %v205, %v206
    %v208 = vsel %vm164, %v120, 0.0
    %v209 = vrot.slane %v208, 4
    %v210 = vadd.f32 %v208, %v209
    %v211 = vrot.slane %v210, 2
    %v212 = vadd.f32 %v210, %v211
    %v213 = vrot.slane %v212, 1
    %v214 = vadd.f32 %v212, %v213
    %v215 = vsel %vm164, %v133, 0.0
    %v216 = vrot.slane %v215, 4
    %v217 = vadd.f32 %v215, %v216
    %v218 = vrot.slane %v217, 2
    %v219 = vadd.f32 %v217, %v218
    %v220 = vrot.slane %v219, 1
    %v221 = vadd.f32 %v219, %v220
    %vm222 = vcmask 254976
    %v223 = vsel %vm222, %v146, 0.0
    %v224 = vrot.slane %v223, 4
    %v225 = vadd.f32 %v223, %v224
    %v226 = vrot.slane %v225, 2
    %v227 = vadd.f32 %v225, %v226
    %v228 = vrot.slane %v227, 1
    %v229 = vadd.f32 %v227, %v228
    %v236 = vrot.slane %v200, 7
    %v237 = vrot.slane %v207, 6
    %v238 = vrot.slane %v214, 5
    %v239 = vrot.slane %v221, 4
    %v240 = vrot.slane %v229, 3
    %v241 = vsel %vm160, %v193, %v236
    %v242 = vsel %vm164, %v241, %v237
    %v243 = vsel %vm167, %v238, %v239
    %v244 = vsel %vm171, %v243, %v240
    %v245 = vsel %vm174, %v242, %v244
    %v247 = vlaneseq
    %vm248 = vcmp.ge.s32.totalorder %v247, 0
    %vm249 = vcmp.lt.s32.totalorder %v247, 672
    %vm250 = vmand %vm248, %vm249
    %251 = vst.msk [vmem:[%s3] sm:$0x3f] %vm250, %v245
    %v252 = vmul.f32 %v81, %v81
    %v253 = vmul.f32 %v94, %v94
    %v254 = vmul.f32 %v107, %v107
    %v255 = vmul.f32 %v120, %v120
    %v256 = vmul.f32 %v133, %v133
    %v257 = vmul.f32 %v146, %v146
    %v258 = vsel %vm164, %v252, 0.0
    %v259 = vrot.slane %v258, 4
    %v260 = vadd.f32 %v258, %v259
    %v261 = vrot.slane %v260, 2
    %v262 = vadd.f32 %v260, %v261
    %v263 = vrot.slane %v262, 1
    %v264 = vadd.f32 %v262, %v263
    %v265 = vsel %vm164, %v253, 0.0
    %v266 = vrot.slane %v265, 4
    %v267 = vadd.f32 %v265, %v266
    %v268 = vrot.slane %v267, 2
    %v269 = vadd.f32 %v267, %v268
    %v270 = vrot.slane %v269, 1
    %v271 = vadd.f32 %v269, %v270
    %v272 = vsel %vm164, %v254, 0.0
    %v273 = vrot.slane %v272, 4
    %v274 = vadd.f32 %v272, %v273
    %v275 = vrot.slane %v274, 2
    %v276 = vadd.f32 %v274, %v275
    %v277 = vrot.slane %v276, 1
    %v278 = vadd.f32 %v276, %v277
    %v279 = vsel %vm164, %v255, 0.0
    %v280 = vrot.slane %v279, 4
    %v281 = vadd.f32 %v279, %v280
    %v282 = vrot.slane %v281, 2
    %v283 = vadd.f32 %v281, %v282
    %v284 = vrot.slane %v283, 1
    %v285 = vadd.f32 %v283, %v284
    %v286 = vsel %vm164, %v256, 0.0
    %v287 = vrot.slane %v286, 4
    %v288 = vadd.f32 %v286, %v287
    %v289 = vrot.slane %v288, 2
    %v290 = vadd.f32 %v288, %v289
    %v291 = vrot.slane %v290, 1
    %v292 = vadd.f32 %v290, %v291
    %v293 = vsel %vm222, %v257, 0.0
    %v294 = vrot.slane %v293, 4
    %v295 = vadd.f32 %v293, %v294
    %v296 = vrot.slane %v295, 2
    %v297 = vadd.f32 %v295, %v296
    %v298 = vrot.slane %v297, 1
    %v299 = vadd.f32 %v297, %v298
    %v306 = vrot.slane %v271, 7
    %v307 = vrot.slane %v278, 6
    %v308 = vrot.slane %v285, 5
    %v309 = vrot.slane %v292, 4
    %v310 = vrot.slane %v299, 3
    %v311 = vsel %vm160, %v264, %v306
    %v312 = vsel %vm164, %v311, %v307
    %v313 = vsel %vm167, %v308, %v309
    %v314 = vsel %vm171, %v313, %v310
    %v315 = vsel %vm174, %v312, %v314
    %317 = vst.msk [vmem:[%s4] sm:$0x3f] %vm250, %v315
    // Predicated region
    $region14: #{generator_forward.3} parent=1 // pred_check
      _
    $region15: #{generator_forward.3} parent=1 // pred_check_branch
      %319 = sbr.rel (0) target = $region17
    $region16: #{generator_forward.3} parent=1 // pred_region
      _
    $region17: #{generator_forward.3} parent=1 // pred_fallthru
      _
    // Predicated region
    $region18: #{generator_forward.3} parent=1 // pred_check
      _
    $region19: #{generator_forward.3} parent=1 // pred_check_branch
      %321 = sbr.rel (0) target = $region21
    $region20: #{generator_forward.3} parent=1 // pred_region
      _
    $region21: #{generator_forward.3} parent=1 // pred_fallthru
      _
    // Predicated region
    $region22: #{generator_forward.3} parent=1 // pred_check
      _
    $region23: #{generator_forward.3} parent=1 // pred_check_branch
      %323 = sbr.rel (0) target = $region25
    $region24: #{generator_forward.3} parent=1 // pred_region
      _
    $region25: #{generator_forward.3} parent=1 // pred_fallthru
      _
    // Predicated region
    $region26: #{generator_forward.3} parent=1 // pred_check
      _
    $region27: #{generator_forward.3} parent=1 // pred_check_branch
      %325 = sbr.rel (0) target = $region29
    $region28: #{generator_forward.3} parent=1 // pred_region
      _
    $region29: #{generator_forward.3} parent=1 // pred_fallthru
      _
    // Predicated region
    $region30: #{generator_forward.3} parent=1 // pred_check
      _
    $region31: #{generator_forward.3} parent=1 // pred_check_branch
      %327 = sbr.rel (0) target = $region33
    $region32: #{generator_forward.3} parent=1 // pred_region
      _
    $region33: #{generator_forward.3} parent=1 // pred_fallthru
      _
    // Predicated region
    $region34: #{generator_forward.3} parent=1 // pred_check
      _
    $region35: #{generator_forward.3} parent=1 // pred_check_branch
      %329 = sbr.rel (0) target = $region37
    $region36: #{generator_forward.3} parent=1 // pred_region
      _
    $region37: #{generator_forward.3} parent=1 // pred_fallthru
      _
    %330 = vsyncpa [#allocation3], 1

// kernel: generator_forward.4
$region0: #{generator_forward.4}
  #allocation0 [shape = 'u32[]', space=smem, size = 0x4, offset = 0x4, fixed_abs, tag = 'smem constant byte address 0x4 - core index']
  #allocation1 [shape = 'u32[72,128]{1,0:T(1,128)}', space=vmem, size = 0x9000, scoped, tag = 'internal scratch']
  #allocation2 [shape = 'bf16[42,16]{1,0:T(8,128)(2,1)}', space=vmem, size = 0x3000, scoped, tag = 'scratch operand']
  %s0 = inlined_call_operand.vmem [shape: bf16[2,42,16], index: 0, kind: input, shape index: {}]
  %s1 = inlined_call_operand.vmem [shape: bf16[9,16,32], index: 1, kind: input, shape index: {}]
  %s2 = inlined_call_operand.vmem [shape: f32[1,16], index: 2, kind: input, shape index: {}]
  %s3 = inlined_call_operand.vmem [shape: f32[1,16], index: 3, kind: input, shape index: {}]
  %s4 = inlined_call_operand.vmem [shape: bf16[2,24,32], index: 4, kind: output, shape index: {0}]
  %s5 = inlined_call_operand.vmem [shape: f32[2,1,32], index: 5, kind: output, shape index: {1}]
  %s6 = inlined_call_operand.vmem [shape: f32[2,1,32], index: 6, kind: output, shape index: {2}]
  %7 = xla_tuple %s4, %s5, %s6
  %s8 = sld [smem:[#allocation0]]
  $region65: #{generator_forward.4} parent=0
    _
  %s10 = ssub.s32 1, %s8
  %s11 = scalar_select 0, %s10, %s8
  loop: start=0, step=1, limit=4
  $region2: #{generator_forward.4} parent=0 // loop_pre_header
    _
  $region3: #{generator_forward.4} parent=0 // loop_header
    %s13 = sphi 0, %s17
    %p14 = scmp.ge.s32.totalorder %s13, 4
    %s23 = sphi 0, %s25
    %s26 = sphi 0, %s23
    %s27 = sphi 0, %s26
    %s43 = sphi 0, %s27
    %s47 = sphi 0, %s47
    %s49 = sphi 0, %s47
    %s50 = sphi 0, %s49
    %s64 = sphi 0, %s50
    %s68 = sphi 0, %s68
    %s70 = sphi 0, %s68
    %s71 = sphi 0, %s70
    %s85 = sphi 0, %s71
    %s89 = sphi 0, %s89
    %s91 = sphi 0, %s89
    %s92 = sphi 0, %s91
    %s106 = sphi 0, %s92
    %s112 = sphi 0, %s114
    %s115 = sphi 0, %s112
    %s116 = sphi 0, %s115
    %s132 = sphi 0, %s116
    %s138 = sphi 0, %s140
    %s141 = sphi 0, %s138
    %s142 = sphi 0, %s141
    %s158 = sphi 0, %s142
    %s164 = sphi 0, %s166
    %s167 = sphi 0, %s164
    %s168 = sphi 0, %s167
    %s184 = sphi 0, %s168
  $region4: #{generator_forward.4} parent=0 // loop_header_branch
    %16 = sbr.rel (%p14) target = $region8
  $region5: #{generator_forward.4} parent=0 // loop_body
    %s18 = ssub.s32 %s13, 1
    %s19 = ssub.s32 %s13, 2
    %s20 = sadd.s32 %s13, 1
    %s21 = ssub.s32 %s13, %s20
    %p22 = scmp.eq.s32.totalorder %s21, 0
    %s24 = sadd.s32 %s23, 1
    %s25 = scalar_select %p22, %s23, %s24
    %p28 = pneg %p22
    %p29 = scmp.eq.s32.totalorder %s13, 1
    %p30 = por %p28, %p29
    %p31 = scmp.ne.s32.totalorder %s23, %s26
    %p32 = scmp.eq.s32.totalorder %s13, 0
    %p33 = por %p31, %p32
    %p34 = scmp.ne.s32.totalorder %s23, %s26
    %p35 = scmp.eq.s32.totalorder %s18, 1
    %p36 = por %p34, %p35
    %p37 = scmp.ne.s32.totalorder %s26, %s27
    %p38 = scmp.eq.s32.totalorder %s18, 0
    %p39 = por %p37, %p38
    %p40 = scmp.ne.s32.totalorder %s26, %s27
    %p41 = scmp.eq.s32.totalorder %s19, 1
    %p42 = por %p40, %p41
    %p44 = scmp.ne.s32.totalorder %s27, %s43
    %p45 = scmp.eq.s32.totalorder %s19, 0
    %p46 = por %p44, %p45
    %s48 = sadd.s32 %s47, 1
    %p51 = scmp.eq.s32.totalorder %s13, 1
    %p52 = scmp.ne.s32.totalorder %s47, %s49
    %p53 = scmp.eq.s32.totalorder %s13, 0
    %p54 = por %p52, %p53
    %p55 = scmp.ne.s32.totalorder %s47, %s49
    %p56 = scmp.eq.s32.totalorder %s18, 1
    %p57 = por %p55, %p56
    %p58 = scmp.ne.s32.totalorder %s49, %s50
    %p59 = scmp.eq.s32.totalorder %s18, 0
    %p60 = por %p58, %p59
    %p61 = scmp.ne.s32.totalorder %s49, %s50
    %p62 = scmp.eq.s32.totalorder %s19, 1
    %p63 = por %p61, %p62
    %p65 = scmp.ne.s32.totalorder %s50, %s64
    %p66 = scmp.eq.s32.totalorder %s19, 0
    %p67 = por %p65, %p66
    %s69 = sadd.s32 %s68, 1
    %p72 = scmp.eq.s32.totalorder %s13, 1
    %p73 = scmp.ne.s32.totalorder %s68, %s70
    %p74 = scmp.eq.s32.totalorder %s13, 0
    %p75 = por %p73, %p74
    %p76 = scmp.ne.s32.totalorder %s68, %s70
    %p77 = scmp.eq.s32.totalorder %s18, 1
    %p78 = por %p76, %p77
    %p79 = scmp.ne.s32.totalorder %s70, %s71
    %p80 = scmp.eq.s32.totalorder %s18, 0
    %p81 = por %p79, %p80
    %p82 = scmp.ne.s32.totalorder %s70, %s71
    %p83 = scmp.eq.s32.totalorder %s19, 1
    %p84 = por %p82, %p83
    %p86 = scmp.ne.s32.totalorder %s71, %s85
    %p87 = scmp.eq.s32.totalorder %s19, 0
    %p88 = por %p86, %p87
    %s90 = sadd.s32 %s89, 1
    %p93 = scmp.eq.s32.totalorder %s13, 1
    %p94 = scmp.ne.s32.totalorder %s89, %s91
    %p95 = scmp.eq.s32.totalorder %s13, 0
    %p96 = por %p94, %p95
    %p97 = scmp.ne.s32.totalorder %s89, %s91
    %p98 = scmp.eq.s32.totalorder %s18, 1
    %p99 = por %p97, %p98
    %p100 = scmp.ne.s32.totalorder %s91, %s92
    %p101 = scmp.eq.s32.totalorder %s18, 0
    %p102 = por %p100, %p101
    %p103 = scmp.ne.s32.totalorder %s91, %s92
    %p104 = scmp.eq.s32.totalorder %s19, 1
    %p105 = por %p103, %p104
    %p107 = scmp.ne.s32.totalorder %s92, %s106
    %p108 = scmp.eq.s32.totalorder %s19, 0
    %p109 = por %p107, %p108
    %s110 = ssub.s32 %s13, %s20
    %p111 = scmp.eq.s32.totalorder %s110, 0
    %s113 = sadd.s32 %s112, 1
    %s114 = scalar_select %p111, %s112, %s113
    %p117 = pneg %p111
    %p118 = scmp.eq.s32.totalorder %s13, 1
    %p119 = por %p117, %p118
    %p120 = scmp.ne.s32.totalorder %s112, %s115
    %p121 = scmp.eq.s32.totalorder %s13, 0
    %p122 = por %p120, %p121
    %p123 = scmp.ne.s32.totalorder %s112, %s115
    %p124 = scmp.eq.s32.totalorder %s18, 1
    %p125 = por %p123, %p124
    %p126 = scmp.ne.s32.totalorder %s115, %s116
    %p127 = scmp.eq.s32.totalorder %s18, 0
    %p128 = por %p126, %p127
    %p129 = scmp.ne.s32.totalorder %s115, %s116
    %p130 = scmp.eq.s32.totalorder %s19, 1
    %p131 = por %p129, %p130
    %p133 = scmp.ne.s32.totalorder %s116, %s132
    %p134 = scmp.eq.s32.totalorder %s19, 0
    %p135 = por %p133, %p134
    %s136 = ssub.s32 %s13, %s20
    %p137 = scmp.eq.s32.totalorder %s136, 0
    %s139 = sadd.s32 %s138, 1
    %s140 = scalar_select %p137, %s138, %s139
    %p143 = pneg %p137
    %p144 = scmp.eq.s32.totalorder %s13, 1
    %p145 = por %p143, %p144
    %p146 = scmp.ne.s32.totalorder %s138, %s141
    %p147 = scmp.eq.s32.totalorder %s13, 0
    %p148 = por %p146, %p147
    %p149 = scmp.ne.s32.totalorder %s138, %s141
    %p150 = scmp.eq.s32.totalorder %s18, 1
    %p151 = por %p149, %p150
    %p152 = scmp.ne.s32.totalorder %s141, %s142
    %p153 = scmp.eq.s32.totalorder %s18, 0
    %p154 = por %p152, %p153
    %p155 = scmp.ne.s32.totalorder %s141, %s142
    %p156 = scmp.eq.s32.totalorder %s19, 1
    %p157 = por %p155, %p156
    %p159 = scmp.ne.s32.totalorder %s142, %s158
    %p160 = scmp.eq.s32.totalorder %s19, 0
    %p161 = por %p159, %p160
    %s162 = ssub.s32 %s13, %s20
    %p163 = scmp.eq.s32.totalorder %s162, 0
    %s165 = sadd.s32 %s164, 1
    %s166 = scalar_select %p163, %s164, %s165
    %p169 = pneg %p163
    %p170 = scmp.eq.s32.totalorder %s13, 1
    %p171 = por %p169, %p170
    %p172 = scmp.ne.s32.totalorder %s164, %s167
    %p173 = scmp.eq.s32.totalorder %s13, 0
    %p174 = por %p172, %p173
    %p175 = scmp.ne.s32.totalorder %s164, %s167
    %p176 = scmp.eq.s32.totalorder %s18, 1
    %p177 = por %p175, %p176
    %p178 = scmp.ne.s32.totalorder %s167, %s168
    %p179 = scmp.eq.s32.totalorder %s18, 0
    %p180 = por %p178, %p179
    %p181 = scmp.ne.s32.totalorder %s167, %s168
    %p182 = scmp.eq.s32.totalorder %s19, 1
    %p183 = por %p181, %p182
    %p185 = scmp.ne.s32.totalorder %s168, %s184
    %p186 = scmp.eq.s32.totalorder %s19, 0
    %p187 = por %p185, %p186
    %p188 = scmp.le.s32.totalorder 1, %s13
    %p189 = scmp.lt.s32.totalorder %s13, 3
    %p190 = pnand %p188, %p189
    %p191 = pneg %p190
    // Predicated region
    $region9: #{generator_forward.4} parent=5 // pred_check
      _
    $region10: #{generator_forward.4} parent=5 // pred_check_branch
      %193 = sbr.rel (%p190) target = $region12
    $region11: #{generator_forward.4} parent=5 // pred_region
      %s194 = ssub.s32 %s13, 1
      // Predicated region
      $region13: #{generator_forward.4} parent=11 // pred_check
        %p195 = pneg %p60
      $region14: #{generator_forward.4} parent=11 // pred_check_branch
        %197 = sbr.rel (%p195) target = $region16
      $region15: #{generator_forward.4} parent=11 // pred_region
        _
      $region16: #{generator_forward.4} parent=11 // pred_fallthru
        _
      // Predicated region
      $region17: #{generator_forward.4} parent=11 // pred_check
        %p198 = pneg %p81
      $region18: #{generator_forward.4} parent=11 // pred_check_branch
        %200 = sbr.rel (%p198) target = $region20
      $region19: #{generator_forward.4} parent=11 // pred_region
        _
      $region20: #{generator_forward.4} parent=11 // pred_fallthru
        _
      // Predicated region
      $region21: #{generator_forward.4} parent=11 // pred_check
        %p201 = pneg %p102
      $region22: #{generator_forward.4} parent=11 // pred_check_branch
        %203 = sbr.rel (%p201) target = $region24
      $region23: #{generator_forward.4} parent=11 // pred_region
        _
      $region24: #{generator_forward.4} parent=11 // pred_fallthru
        _
    $region12: #{generator_forward.4} parent=5 // pred_fallthru
      _
    %p204 = scmp.lt.s32.totalorder %s13, 2
    // Predicated region
    $region25: #{generator_forward.4} parent=5 // pred_check
      %p205 = pneg %p204
    $region26: #{generator_forward.4} parent=5 // pred_check_branch
      %207 = sbr.rel (%p205) target = $region28
    $region27: #{generator_forward.4} parent=5 // pred_region
      // Predicated region
      $region29: #{generator_forward.4} parent=27 // pred_check
        %p208 = pneg %p33
      $region30: #{generator_forward.4} parent=27 // pred_check_branch
        %210 = sbr.rel (%p208) target = $region32
      $region31: #{generator_forward.4} parent=27 // pred_region
        %p211 = scmp.lt.s32.totalorder %s13, 1
        %s212 = scalar_select %p211, %s13, 1
        %s213 = smul.addr %s212, 6
        %s214 = smul.addr %s213, 4
        %s215 = scalar_lea.vmem %s0, %s214
      $region32: #{generator_forward.4} parent=27 // pred_fallthru
        _
    $region28: #{generator_forward.4} parent=5 // pred_fallthru
      _
    %p216 = scmp.le.s32.totalorder 1, %s13
    %p217 = scmp.lt.s32.totalorder %s13, 3
    %p218 = pnand %p216, %p217
    %p219 = pneg %p218
    // Predicated region
    $region33: #{generator_forward.4} parent=5 // pred_check
      _
    $region34: #{generator_forward.4} parent=5 // pred_check_branch
      %221 = sbr.rel (%p218) target = $region36
    $region35: #{generator_forward.4} parent=5 // pred_region
      %s222 = ssub.s32 %s13, 1
      %p223 = scmp.lt.s32.totalorder %s18, 1
      %s224 = scalar_select %p223, %s18, 1
      %s225 = smul.addr %s224, 6
      %s226 = smul.addr %s225, 4
      %s227 = scalar_lea.vmem %s0, %s226
      %p228 = pneg %p39
      %p229 = pneg %p36
      %p230 = pneg %p60
      %p231 = pneg %p57
      %p232 = pneg %p81
      %p233 = pneg %p78
      %p234 = pneg %p102
      %p235 = pneg %p99
      %p236 = pneg %p128
      %p237 = pneg %p125
      %p238 = scmp.lt.s32.totalorder %s18, 1
      %s239 = scalar_select %p238, %s18, 1
      %s240 = smul.addr %s239, 3
      %s241 = smul.addr %s240, 4
      %s242 = scalar_lea.vmem %s4, %s241
      %p243 = pneg %p154
      %p244 = pneg %p151
      %p245 = scmp.lt.s32.totalorder %s18, 1
      %s246 = scalar_select %p245, %s18, 1
      %s247 = scalar_lea.vmem %s5, %s246
      %p248 = pneg %p180
      %p249 = pneg %p177
      %p250 = scmp.lt.s32.totalorder %s18, 1
      %s251 = scalar_select %p250, %s18, 1
      %s252 = scalar_lea.vmem %s6, %s251
      %p253 = scmp.lt.s32.totalorder %s18, 1
      %s254 = scalar_select %p253, %s18, 1
      %s255 = smul.addr %s254, 6
      %s256 = smul.addr %s255, 4
      %s257 = scalar_lea.vmem %s0, %s256
      %p258 = scmp.lt.s32.totalorder %s18, 1
      %s259 = scalar_select %p258, %s18, 1
      %s260 = smul.addr %s259, 3
      %s261 = smul.addr %s260, 4
      %s262 = scalar_lea.vmem %s4, %s261
      %p263 = scmp.lt.s32.totalorder %s18, 1
      %s264 = scalar_select %p263, %s18, 1
      %s265 = scalar_lea.vmem %s5, %s264
      %p266 = scmp.lt.s32.totalorder %s18, 1
      %s267 = scalar_select %p266, %s18, 1
      %s268 = scalar_lea.vmem %s6, %s267
      %v270 = vlaneseq
      %v271 = vshrl.u32 %v270, 7
      %v272 = vadd.s32 %v271, 8
      %v273 = vadd.s32 %v271, 16
      %v274 = vadd.s32 %v271, 24
      %v275 = vadd.s32 %v271, 32
      %v276 = vadd.s32 %v271, 40
      %vm277 = vcmp.ge.s32.totalorder %v271, 6
      %vm278 = vcmp.ge.s32.totalorder %v272, 6
      %vm279 = vcmp.ge.s32.totalorder %v273, 6
      %vm280 = vcmp.ge.s32.totalorder %v274, 6
      %vm281 = vcmp.ge.s32.totalorder %v275, 6
      %vm282 = vcmp.ge.s32.totalorder %v276, 6
      %vm283 = vcmp.lt.s32.totalorder %v271, 30
      %vm284 = vcmp.lt.s32.totalorder %v272, 30
      %vm285 = vcmp.lt.s32.totalorder %v273, 30
      %vm286 = vcmp.lt.s32.totalorder %v274, 30
      %vm287 = vcmp.lt.s32.totalorder %v275, 30
      %vm288 = vcmp.lt.s32.totalorder %v276, 30
      %vm289 = vmand %vm277, %vm283
      %vm290 = vmand %vm278, %vm284
      %vm291 = vmand %vm279, %vm285
      %vm292 = vmand %vm280, %vm286
      %vm293 = vmand %vm281, %vm287
      %vm294 = vmand %vm282, %vm288
      %vm295 = vcmp.lt.s32.totalorder %v271, 0
      %v296 = vsub.s32 0, %v271
      %v297 = vsel %vm295, %v296, %v271
      %v298 = vand.u32 %v297, 65535
      %v299 = vshrl.u32 %v297, 16
      %v301 = vmul.u32 %v298, 43691
      %v302 = vmul.u32 %v298, 43690
      %v303 = vmul.u32 %v299, 43691
      %v304 = vmul.u32 %v299, 43690
      %v305 = vshll.u32 %v302, 16
      %v306 = vshrl.u32 %v302, 16
      %v307 = vshll.u32 %v303, 16
      %v308 = vshrl.u32 %v303, 16
      %vm309 = vc.u32 %v301, %v305
      %v310 = vsel %vm309, 1, 0
      %v311 = vadd.s32 %v301, %v305
      %v312 = vadd.s32 %v304, %v310
      %vm313 = vc.u32 %v311, %v307
      %v314 = vsel %vm313, 1, 0
      %v315 = vadd.s32 %v311, %v307
      %v316 = vadd.s32 %v312, %v314
      %v317 = vadd.s32 %v316, %v306
      %v318 = vadd.s32 %v317, %v308
      %v319 = vshrl.u32 %v318, 2
      %v320 = vmul.u32 %v319, 6
      %v321 = vsub.s32 %v297, %v320
      %v322 = vsub.s32 0, %v321
      %v323 = vsel %vm295, %v322, %v321
      %vm324 = vcmp.lt.s32.totalorder %v272, 0
      %v325 = vsub.s32 0, %v272
      %v326 = vsel %vm324, %v325, %v272
      %v327 = vand.u32 %v326, 65535
      %v328 = vshrl.u32 %v326, 16
      %v330 = vmul.u32 %v327, 43691
      %v331 = vmul.u32 %v327, 43690
      %v332 = vmul.u32 %v328, 43691
      %v333 = vmul.u32 %v328, 43690
      %v334 = vshll.u32 %v331, 16
      %v335 = vshrl.u32 %v331, 16
      %v336 = vshll.u32 %v332, 16
      %v337 = vshrl.u32 %v332, 16
      %vm338 = vc.u32 %v330, %v334
      %v339 = vsel %vm338, 1, 0
      %v340 = vadd.s32 %v330, %v334
      %v341 = vadd.s32 %v333, %v339
      %vm342 = vc.u32 %v340, %v336
      %v343 = vsel %vm342, 1, 0
      %v344 = vadd.s32 %v340, %v336
      %v345 = vadd.s32 %v341, %v343
      %v346 = vadd.s32 %v345, %v335
      %v347 = vadd.s32 %v346, %v337
      %v348 = vshrl.u32 %v347, 2
      %v349 = vmul.u32 %v348, 6
      %v350 = vsub.s32 %v326, %v349
      %v351 = vsub.s32 0, %v350
      %v352 = vsel %vm324, %v351, %v350
      %vm353 = vcmp.lt.s32.totalorder %v273, 0
      %v354 = vsub.s32 0, %v273
      %v355 = vsel %vm353, %v354, %v273
      %v356 = vand.u32 %v355, 65535
      %v357 = vshrl.u32 %v355, 16
      %v359 = vmul.u32 %v356, 43691
      %v360 = vmul.u32 %v356, 43690
      %v361 = vmul.u32 %v357, 43691
      %v362 = vmul.u32 %v357, 43690
      %v363 = vshll.u32 %v360, 16
      %v364 = vshrl.u32 %v360, 16
      %v365 = vshll.u32 %v361, 16
      %v366 = vshrl.u32 %v361, 16
      %vm367 = vc.u32 %v359, %v363
      %v368 = vsel %vm367, 1, 0
      %v369 = vadd.s32 %v359, %v363
      %v370 = vadd.s32 %v362, %v368
      %vm371 = vc.u32 %v369, %v365
      %v372 = vsel %vm371, 1, 0
      %v373 = vadd.s32 %v369, %v365
      %v374 = vadd.s32 %v370, %v372
      %v375 = vadd.s32 %v374, %v364
      %v376 = vadd.s32 %v375, %v366
      %v377 = vshrl.u32 %v376, 2
      %v378 = vmul.u32 %v377, 6
      %v379 = vsub.s32 %v355, %v378
      %v380 = vsub.s32 0, %v379
      %v381 = vsel %vm353, %v380, %v379
      %vm382 = vcmp.lt.s32.totalorder %v274, 0
      %v383 = vsub.s32 0, %v274
      %v384 = vsel %vm382, %v383, %v274
      %v385 = vand.u32 %v384, 65535
      %v386 = vshrl.u32 %v384, 16
      %v388 = vmul.u32 %v385, 43691
      %v389 = vmul.u32 %v385, 43690
      %v390 = vmul.u32 %v386, 43691
      %v391 = vmul.u32 %v386, 43690
      %v392 = vshll.u32 %v389, 16
      %v393 = vshrl.u32 %v389, 16
      %v394 = vshll.u32 %v390, 16
      %v395 = vshrl.u32 %v390, 16
      %vm396 = vc.u32 %v388, %v392
      %v397 = vsel %vm396, 1, 0
      %v398 = vadd.s32 %v388, %v392
      %v399 = vadd.s32 %v391, %v397
      %vm400 = vc.u32 %v398, %v394
      %v401 = vsel %vm400, 1, 0
      %v402 = vadd.s32 %v398, %v394
      %v403 = vadd.s32 %v399, %v401
      %v404 = vadd.s32 %v403, %v393
      %v405 = vadd.s32 %v404, %v395
      %v406 = vshrl.u32 %v405, 2
      %v407 = vmul.u32 %v406, 6
      %v408 = vsub.s32 %v384, %v407
      %v409 = vsub.s32 0, %v408
      %v410 = vsel %vm382, %v409, %v408
      %vm411 = vcmp.lt.s32.totalorder %v275, 0
      %v412 = vsub.s32 0, %v275
      %v413 = vsel %vm411, %v412, %v275
      %v414 = vand.u32 %v413, 65535
      %v415 = vshrl.u32 %v413, 16
      %v417 = vmul.u32 %v414, 43691
      %v418 = vmul.u32 %v414, 43690
      %v419 = vmul.u32 %v415, 43691
      %v420 = vmul.u32 %v415, 43690
      %v421 = vshll.u32 %v418, 16
      %v422 = vshrl.u32 %v418, 16
      %v423 = vshll.u32 %v419, 16
      %v424 = vshrl.u32 %v419, 16
      %vm425 = vc.u32 %v417, %v421
      %v426 = vsel %vm425, 1, 0
      %v427 = vadd.s32 %v417, %v421
      %v428 = vadd.s32 %v420, %v426
      %vm429 = vc.u32 %v427, %v423
      %v430 = vsel %vm429, 1, 0
      %v431 = vadd.s32 %v427, %v423
      %v432 = vadd.s32 %v428, %v430
      %v433 = vadd.s32 %v432, %v422
      %v434 = vadd.s32 %v433, %v424
      %v435 = vshrl.u32 %v434, 2
      %v436 = vmul.u32 %v435, 6
      %v437 = vsub.s32 %v413, %v436
      %v438 = vsub.s32 0, %v437
      %v439 = vsel %vm411, %v438, %v437
      %vm440 = vcmp.lt.s32.totalorder %v276, 0
      %v441 = vsub.s32 0, %v276
      %v442 = vsel %vm440, %v441, %v276
      %v443 = vand.u32 %v442, 65535
      %v444 = vshrl.u32 %v442, 16
      %v446 = vmul.u32 %v443, 43691
      %v447 = vmul.u32 %v443, 43690
      %v448 = vmul.u32 %v444, 43691
      %v449 = vmul.u32 %v444, 43690
      %v450 = vshll.u32 %v447, 16
      %v451 = vshrl.u32 %v447, 16
      %v452 = vshll.u32 %v448, 16
      %v453 = vshrl.u32 %v448, 16
      %vm454 = vc.u32 %v446, %v450
      %v455 = vsel %vm454, 1, 0
      %v456 = vadd.s32 %v446, %v450
      %v457 = vadd.s32 %v449, %v455
      %vm458 = vc.u32 %v456, %v452
      %v459 = vsel %vm458, 1, 0
      %v460 = vadd.s32 %v456, %v452
      %v461 = vadd.s32 %v457, %v459
      %v462 = vadd.s32 %v461, %v451
      %v463 = vadd.s32 %v462, %v453
      %v464 = vshrl.u32 %v463, 2
      %v465 = vmul.u32 %v464, 6
      %v466 = vsub.s32 %v442, %v465
      %v467 = vsub.s32 0, %v466
      %v468 = vsel %vm440, %v467, %v466
      %vm469 = vcmp.ne.s32.totalorder %v323, 0
      %vm470 = vcmp.ne.s32.totalorder %v352, 0
      %vm471 = vcmp.ne.s32.totalorder %v381, 0
      %vm472 = vcmp.ne.s32.totalorder %v410, 0
      %vm473 = vcmp.ne.s32.totalorder %v439, 0
      %vm474 = vcmp.ne.s32.totalorder %v468, 0
      %vm475 = vcmp.lt.s32.totalorder %v323, 0
      %vm476 = vcmp.lt.s32.totalorder %v352, 0
      %vm477 = vcmp.lt.s32.totalorder %v381, 0
      %vm478 = vcmp.lt.s32.totalorder %v410, 0
      %vm479 = vcmp.lt.s32.totalorder %v439, 0
      %vm480 = vcmp.lt.s32.totalorder %v468, 0
      %vm481 = vmand %vm475, %vm469
      %vm482 = vmand %vm476, %vm470
      %vm483 = vmand %vm477, %vm471
      %vm484 = vmand %vm478, %vm472
      %vm485 = vmand %vm479, %vm473
      %vm486 = vmand %vm480, %vm474
      %v487 = vadd.s32 %v323, 6
      %v488 = vadd.s32 %v352, 6
      %v489 = vadd.s32 %v381, 6
      %v490 = vadd.s32 %v410, 6
      %v491 = vadd.s32 %v439, 6
      %v492 = vadd.s32 %v468, 6
      %v493 = vsel %vm481, %v487, %v323
      %v494 = vsel %vm482, %v488, %v352
      %v495 = vsel %vm483, %v489, %v381
      %v496 = vsel %vm484, %v490, %v410
      %v497 = vsel %vm485, %v491, %v439
      %v498 = vsel %vm486, %v492, %v468
      %vm499 = vcmp.ge.s32.totalorder %v493, 1
      %vm500 = vcmp.ge.s32.totalorder %v494, 1
      %vm501 = vcmp.ge.s32.totalorder %v495, 1
      %vm502 = vcmp.ge.s32.totalorder %v496, 1
      %vm503 = vcmp.ge.s32.totalorder %v497, 1
      %vm504 = vcmp.ge.s32.totalorder %v498, 1
      %vm505 = vmand %vm289, %vm499
      %vm506 = vmand %vm290, %vm500
      %vm507 = vmand %vm291, %vm501
      %vm508 = vmand %vm292, %vm502
      %vm509 = vmand %vm293, %vm503
      %vm510 = vmand %vm294, %vm504
      %vm511 = vcmp.le.s32.totalorder %v493, 4
      %vm512 = vcmp.le.s32.totalorder %v494, 4
      %vm513 = vcmp.le.s32.totalorder %v495, 4
      %vm514 = vcmp.le.s32.totalorder %v496, 4
      %vm515 = vcmp.le.s32.totalorder %v497, 4
      %vm516 = vcmp.le.s32.totalorder %v498, 4
      %vm517 = vmand %vm505, %vm511
      %vm518 = vmand %vm506, %vm512
      %vm519 = vmand %vm507, %vm513
      %vm520 = vmand %vm508, %vm514
      %vm521 = vmand %vm509, %vm515
      %vm522 = vmand %vm510, %vm516
      %vm523 = vcmp.lt.s32.totalorder %v493, 4
      %vm524 = vcmp.lt.s32.totalorder %v494, 4
      %vm525 = vcmp.lt.s32.totalorder %v495, 4
      %v526 = vsel %vm523, 1, 0
      %v527 = vsel %vm524, 1, 0
      %v528 = vsel %vm525, 1, 0
      %v529 = vcvt.s32.f32 %v526
      %v530 = vcvt.s32.f32 %v527
      %v531 = vcvt.s32.f32 %v528
      %v532 = vld [vmem:[%s257] sm:$0xf]
      %v533 = vld [vmem:[%s257 + $0x4] sm:$0xf]
      %v534 = vld [vmem:[%s257 + $0x8] sm:$0xf]
      %v535 = vld [vmem:[%s257 + $0xc] sm:$0xf]
      %v536 = vld [vmem:[%s257 + $0x10] sm:$0xf]
      %v537 = vld [vmem:[%s257 + $0x14] sm:$0x1]
      %v538 = vunpack.c.l.bf16 %v532
      %v539 = vunpack.c.l.bf16 %v533
      %v540 = vunpack.c.l.bf16 %v534
      %v541 = vunpack.c.l.bf16 %v535
      %v542 = vunpack.c.l.bf16 %v536
      %v543 = vunpack.c.l.bf16 %v537
      %v544 = vld [vmem:[%s2] sm:$0x1]
      %v546 = vperm.slane %v544, 0
      %v548 = vmul.f32 %v538, %v546
      %v549 = vmul.f32 %v539, %v546
      %v550 = vmul.f32 %v540, %v546
      %v551 = vmul.f32 %v541, %v546
      %v552 = vmul.f32 %v542, %v546
      %v553 = vmul.f32 %v543, %v546
      %v554 = vld [vmem:[%s3] sm:$0x1]
      %v556 = vperm.slane %v554, 0
      %v558 = vadd.f32 %v548, %v556
      %v559 = vadd.f32 %v549, %v556
      %v560 = vadd.f32 %v550, %v556
      %v561 = vadd.f32 %v551, %v556
      %v562 = vadd.f32 %v552, %v556
      %v563 = vadd.f32 %v553, %v556
      %v564 = vmax.f32 %v558, 0.0
      %v565 = vmax.f32 %v559, 0.0
      %v566 = vmax.f32 %v560, 0.0
      %v567 = vmax.f32 %v561, 0.0
      %v568 = vmax.f32 %v562, 0.0
      %v569 = vmax.f32 %v563, 0.0
      %v570 = vsel %vm517, 1, 0
      %v571 = vsel %vm518, 1, 0
      %v572 = vsel %vm519, 1, 0
      %v573 = vsel %vm520, 1, 0
      %v574 = vsel %vm521, 1, 0
      %v575 = vsel %vm522, 1, 0
      %vm576 = vcmp.eq.s32.totalorder %v570, 1
      %vm577 = vcmp.eq.s32.totalorder %v571, 1
      %vm578 = vcmp.eq.s32.totalorder %v572, 1
      %vm579 = vcmp.eq.s32.totalorder %v573, 1
      %vm580 = vcmp.eq.s32.totalorder %v574, 1
      %vm581 = vcmp.eq.s32.totalorder %v575, 1
      %v582 = vsel %vm576, %v564, 0.0
      %v583 = vsel %vm577, %v565, 0.0
      %v584 = vsel %vm578, %v566, 0.0
      %v585 = vsel %vm579, %v567, 0.0
      %v586 = vsel %vm580, %v568, 0.0
      %v587 = vsel %vm581, %v569, 0.0
      %v588 = vpack.c.bf16 %v582, %v582
      %v589 = vpack.c.bf16 %v583, %v583
      %v590 = vpack.c.bf16 %v584, %v584
      %v591 = vpack.c.bf16 %v585, %v585
      %v592 = vpack.c.bf16 %v586, %v586
      %v593 = vpack.c.bf16 %v587, %v587
      %vm594 = vcmask 125952
      %595 = vst.msk [vmem:[#allocation2] sm:$0xf] %vm594, %v588
      %596 = vst.msk [vmem:[#allocation2 + $0x4] sm:$0xf] %vm594, %v589
      %597 = vst.msk [vmem:[#allocation2 + $0x8] sm:$0xf] %vm594, %v590
      %598 = vst.msk [vmem:[#allocation2 + $0xc] sm:$0xf] %vm594, %v591
      %599 = vst.msk [vmem:[#allocation2 + $0x10] sm:$0xf] %vm594, %v592
      %vm600 = vcmask 122880
      %601 = vst.msk [vmem:[#allocation2 + $0x14] sm:$0x1] %vm600, %v593
      %v602 = vld [vmem:[#allocation2] sm:$0xf]
      %v603 = vld [vmem:[#allocation2 + $0x4] sm:$0xf]
      %v604 = vld [vmem:[#allocation2 + $0x8] sm:$0xf]
      %v605 = vld [vmem:[%s1] sm:$0xf]
      %v606 = vld [vmem:[%s1 + $0x4] sm:$0xf]
      %v607 = vld [vmem:[#allocation2 + $0xc] sm:$0x1]
      %s608 = scalar_lea.vmem %s1, 8
      %v609 = vld [vmem:[%s608] sm:$0xf]
      %v610 = vld [vmem:[%s608 + $0x4] sm:$0xf]
      %v615 = vunpack.c.l.b16 %v602
      %v616 = vunpack.c.l.b16 %v603
      %v617 = vunpack.c.l.b16 %v604
      %v618 = vunpack.c.l.b16 %v607
      %v619 = vpack.c.b16 %v616, %v615
      %v620 = vpack.c.b16 %v618, %v617
      %vm621 = vsmask.f32 7424
      %v623 = vshrl.u32 %v619, 16
      %v625 = vshll.u32 %v619, 16
      %v627 = vrot.slane %v625, 1
      %v628 = vor.u32 %v623, %v627
      %v630 = vshll.u32 %v620, 16
      %v632 = vrot.slane %v630, 1
      %v633 = vsel %vm621, %v628, %v632
      %v634 = vshrl.u32 %v620, 16
      %v636 = vor.u32 %v634, %v632
      %v639 = vunpack.c.l.b16 %v609
      %v640 = vunpack.c.l.b16 %v610
      %v641 = vpack.c.b16 %v640, %v639
      %vm643 = vcmask 130048
      %v645 = vsel %vm643, %v633, 0
      %v648 = vsel %vm643, %v636, 0
      %650 = vmatpush.bf16.msra.mxu0 0
      %651 = vmatpush.bf16.msra.mxu0 0
      %652 = vmatpush.bf16.msra.mxu0 0
      %653 = vmatpush.bf16.msra.mxu0 0
      %654 = vmatpush.bf16.msra.mxu0 0
      %655 = vmatpush.bf16.msra.mxu0 0
      %656 = vmatpush.bf16.msra.mxu0 0
      %657 = vmatpush.bf16.msra.mxu0 %v641
      %658 = vmatmul.bf16.gmra.mxu0 %v645
      %v659 = vpop.f32.mrf.mxu0
      %v660 = vadd.f32 0.0, %v659
      %v661 = vpop.f32.mrf.mxu0
      %v662 = vadd.f32 0.0, %v661
      %663 = vmatmul.bf16.gmra.mxu0 %v648
      %v664 = vpop.f32.mrf.mxu0
      %v665 = vadd.f32 0.0, %v664
      %v666 = vpop.f32.mrf.mxu0
      %667 = vdwg.mxu0
      %v668 = vpack.c.b16 %v617, %v617
      %v671 = vunpack.c.l.b16 %v605
      %v672 = vunpack.c.l.b16 %v606
      %v673 = vpack.c.b16 %v672, %v671
      %v675 = vsel %vm643, %v619, 0
      %v678 = vsel %vm643, %v668, 0
      %680 = vmatpush.bf16.msra.mxu0 0
      %681 = vmatpush.bf16.msra.mxu0 0
      %682 = vmatpush.bf16.msra.mxu0 0
      %683 = vmatpush.bf16.msra.mxu0 0
      %684 = vmatpush.bf16.msra.mxu0 0
      %685 = vmatpush.bf16.msra.mxu0 0
      %686 = vmatpush.bf16.msra.mxu0 0
      %687 = vmatpush.bf16.msra.mxu0 %v673
      %688 = vmatmul.bf16.gmra.mxu0 %v675
      %v689 = vpop.f32.mrf.mxu0
      %v690 = vadd.f32 %v660, %v689
      %v691 = vpop.f32.mrf.mxu0
      %v692 = vadd.f32 %v662, %v691
      %693 = vmatmul.bf16.gmra.mxu0 %v678
      %v694 = vpop.f32.mrf.mxu0
      %v695 = vadd.f32 %v665, %v694
      %v696 = vpop.f32.mrf.mxu0
      %697 = vdwg.mxu0
      %v698 = vld [vmem:[#allocation2] sm:$0xe]
      %s699 = scalar_lea.vmem %s1, 16
      %v700 = vld [vmem:[%s699] sm:$0xf]
      %v701 = vld [vmem:[%s699 + $0x4] sm:$0xf]
      %v703 = vunpack.c.l.b16 %v698
      %v704 = vpack.c.b16 %v616, %v703
      %vm705 = vcmask 1046528
      %v706 = vrot.slane %v704, 1
      %v707 = vrot.slane %v620, 1
      %v708 = vsel %vm705, %v706, %v707
      %v711 = vunpack.c.l.b16 %v700
      %v712 = vunpack.c.l.b16 %v701
      %v713 = vpack.c.b16 %v712, %v711
      %v716 = vsel %vm643, %v708, 0
      %v719 = vsel %vm643, %v707, 0
      %721 = vmatpush.bf16.msra.mxu0 0
      %722 = vmatpush.bf16.msra.mxu0 0
      %723 = vmatpush.bf16.msra.mxu0 0
      %724 = vmatpush.bf16.msra.mxu0 0
      %725 = vmatpush.bf16.msra.mxu0 0
      %726 = vmatpush.bf16.msra.mxu0 0
      %727 = vmatpush.bf16.msra.mxu0 0
      %728 = vmatpush.bf16.msra.mxu0 %v713
      %729 = vmatmul.bf16.gmra.mxu0 %v716
      %v730 = vpop.f32.mrf.mxu0
      %v731 = vadd.f32 0.0, %v730
      %v732 = vpop.f32.mrf.mxu0
      %v733 = vadd.f32 0.0, %v732
      %734 = vmatmul.bf16.gmra.mxu0 %v719
      %v735 = vpop.f32.mrf.mxu0
      %v736 = vadd.f32 0.0, %v735
      %v737 = vpop.f32.mrf.mxu0
      %738 = vdwg.mxu0
      %v739 = vadd.f32 %v690, %v731
      %v740 = vadd.f32 %v692, %v733
      %v741 = vadd.f32 %v695, %v736
      %v742 = vld [vmem:[#allocation2] sm:$0x8]
      %v743 = vld [vmem:[#allocation2 + $0xc] sm:$0x7]
      %s744 = scalar_lea.vmem %s1, 24
      %v745 = vld [vmem:[%s744] sm:$0xf]
      %v746 = vld [vmem:[%s744 + $0x4] sm:$0xf]
      %v749 = vunpack.c.l.b16 %v742
      %v750 = vunpack.c.l.b16 %v743
      %v751 = vpack.c.b16 %v616, %v749
      %v752 = vpack.c.b16 %v750, %v617
      %vm753 = vcmask 1044480
      %v754 = vrot.slane %v751, 3
      %v755 = vrot.slane %v752, 3
      %v756 = vsel %vm753, %v754, %v755
      %v759 = vunpack.c.l.b16 %v745
      %v760 = vunpack.c.l.b16 %v746
      %v761 = vpack.c.b16 %v760, %v759
      %v764 = vsel %vm643, %v756, 0
      %v767 = vsel %vm643, %v755, 0
      %769 = vmatpush.bf16.msra.mxu0 0
      %770 = vmatpush.bf16.msra.mxu0 0
      %771 = vmatpush.bf16.msra.mxu0 0
      %772 = vmatpush.bf16.msra.mxu0 0
      %773 = vmatpush.bf16.msra.mxu0 0
      %774 = vmatpush.bf16.msra.mxu0 0
      %775 = vmatpush.bf16.msra.mxu0 0
      %776 = vmatpush.bf16.msra.mxu0 %v761
      %777 = vmatmul.bf16.gmra.mxu0 %v764
      %v778 = vpop.f32.mrf.mxu0
      %v779 = vadd.f32 0.0, %v778
      %v780 = vpop.f32.mrf.mxu0
      %v781 = vadd.f32 0.0, %v780
      %782 = vmatmul.bf16.gmra.mxu0 %v767
      %v783 = vpop.f32.mrf.mxu0
      %v784 = vadd.f32 0.0, %v783
      %v785 = vpop.f32.mrf.mxu0
      %786 = vdwg.mxu0
      %v787 = vadd.f32 %v739, %v779
      %v788 = vadd.f32 %v740, %v781
      %v789 = vadd.f32 %v741, %v784
      %v790 = vld [vmem:[#allocation2 + $0xc] sm:$0xf]
      %s791 = scalar_lea.vmem %s1, 32
      %v792 = vld [vmem:[%s791] sm:$0xf]
      %v793 = vld [vmem:[%s791 + $0x4] sm:$0xf]
      %v795 = vunpack.c.l.b16 %v790
      %v796 = vpack.c.b16 %v795, %v617
      %vm797 = vsmask.f32 4352
      %v799 = vshrl.u32 %v751, 16
      %v801 = vrot.slane %v799, 3
      %v802 = vshll.u32 %v751, 16
      %v804 = vrot.slane %v802, 4
      %v805 = vor.u32 %v801, %v804
      %v807 = vshrl.u32 %v796, 16
      %v809 = vrot.slane %v807, 3
      %v810 = vshll.u32 %v796, 16
      %v812 = vrot.slane %v810, 4
      %v813 = vor.u32 %v809, %v812
      %v814 = vsel %vm797, %v805, %v813
      %v817 = vunpack.c.l.b16 %v792
      %v818 = vunpack.c.l.b16 %v793
      %v819 = vpack.c.b16 %v818, %v817
      %v822 = vsel %vm643, %v814, 0
      %v825 = vsel %vm643, %v813, 0
      %827 = vmatpush.bf16.msra.mxu0 0
      %828 = vmatpush.bf16.msra.mxu0 0
      %829 = vmatpush.bf16.msra.mxu0 0
      %830 = vmatpush.bf16.msra.mxu0 0
      %831 = vmatpush.bf16.msra.mxu0 0
      %832 = vmatpush.bf16.msra.mxu0 0
      %833 = vmatpush.bf16.msra.mxu0 0
      %834 = vmatpush.bf16.msra.mxu0 %v819
      %835 = vmatmul.bf16.gmra.mxu0 %v822
      %v836 = vpop.f32.mrf.mxu0
      %v837 = vadd.f32 0.0, %v836
      %v838 = vpop.f32.mrf.mxu0
      %v839 = vadd.f32 0.0, %v838
      %840 = vmatmul.bf16.gmra.mxu0 %v825
      %v841 = vpop.f32.mrf.mxu0
      %v842 = vadd.f32 0.0, %v841
      %v843 = vpop.f32.mrf.mxu0
      %844 = vdwg.mxu0
      %v845 = vadd.f32 %v787, %v837
      %v846 = vadd.f32 %v788, %v839
      %v847 = vadd.f32 %v789, %v842
      %s848 = scalar_lea.vmem %s1, 40
      %v849 = vld [vmem:[%s848] sm:$0xf]
      %v850 = vld [vmem:[%s848 + $0x4] sm:$0xf]
      %v851 = vpack.c.b16 %v617, %v616
      %v852 = vpack.c.b16 %v795, %v795
      %v855 = vunpack.c.l.b16 %v849
      %v856 = vunpack.c.l.b16 %v850
      %v857 = vpack.c.b16 %v856, %v855
      %v860 = vsel %vm643, %v851, 0
      %v863 = vsel %vm643, %v852, 0
      %865 = vmatpush.bf16.msra.mxu0 0
      %866 = vmatpush.bf16.msra.mxu0 0
      %867 = vmatpush.bf16.msra.mxu0 0
      %868 = vmatpush.bf16.msra.mxu0 0
      %869 = vmatpush.bf16.msra.mxu0 0
      %870 = vmatpush.bf16.msra.mxu0 0
      %871 = vmatpush.bf16.msra.mxu0 0
      %872 = vmatpush.bf16.msra.mxu0 %v857
      %873 = vmatmul.bf16.gmra.mxu0 %v860
      %v874 = vpop.f32.mrf.mxu0
      %v875 = vadd.f32 0.0, %v874
      %v876 = vpop.f32.mrf.mxu0
      %v877 = vadd.f32 0.0, %v876
      %878 = vmatmul.bf16.gmra.mxu0 %v863
      %v879 = vpop.f32.mrf.mxu0
      %v880 = vadd.f32 0.0, %v879
      %v881 = vpop.f32.mrf.mxu0
      %882 = vdwg.mxu0
      %v883 = vadd.f32 %v845, %v875
      %v884 = vadd.f32 %v846, %v877
      %v885 = vadd.f32 %v847, %v880
      %v886 = vld [vmem:[#allocation2 + $0x4] sm:$0xc]
      %v887 = vld [vmem:[#allocation2 + $0x8] sm:$0xf]
      %v888 = vld [vmem:[#allocation2 + $0xc] sm:$0xf]
      %v889 = vld [vmem:[#allocation2 + $0x10] sm:$0x3]
      %s890 = scalar_lea.vmem %s1, 48
      %v891 = vld [vmem:[%s890] sm:$0xf]
      %v892 = vld [vmem:[%s890 + $0x4] sm:$0xf]
      %v897 = vunpack.c.l.b16 %v886
      %v898 = vunpack.c.l.b16 %v887
      %v899 = vunpack.c.l.b16 %v888
      %v900 = vunpack.c.l.b16 %v889
      %v901 = vpack.c.b16 %v898, %v897
      %v902 = vpack.c.b16 %v900, %v899
      %vm903 = vcmask 1045504
      %v904 = vrot.slane %v901, 2
      %v905 = vrot.slane %v902, 2
      %v906 = vsel %vm903, %v904, %v905
      %v909 = vunpack.c.l.b16 %v891
      %v910 = vunpack.c.l.b16 %v892
      %v911 = vpack.c.b16 %v910, %v909
      %v914 = vsel %vm643, %v906, 0
      %v917 = vsel %vm643, %v905, 0
      %919 = vmatpush.bf16.msra.mxu0 0
      %920 = vmatpush.bf16.msra.mxu0 0
      %921 = vmatpush.bf16.msra.mxu0 0
      %922 = vmatpush.bf16.msra.mxu0 0
      %923 = vmatpush.bf16.msra.mxu0 0
      %924 = vmatpush.bf16.msra.mxu0 0
      %925 = vmatpush.bf16.msra.mxu0 0
      %926 = vmatpush.bf16.msra.mxu0 %v911
      %927 = vmatmul.bf16.gmra.mxu0 %v914
      %v928 = vpop.f32.mrf.mxu0
      %v929 = vadd.f32 0.0, %v928
      %v930 = vpop.f32.mrf.mxu0
      %v931 = vadd.f32 0.0, %v930
      %932 = vmatmul.bf16.gmra.mxu0 %v917
      %v933 = vpop.f32.mrf.mxu0
      %v934 = vadd.f32 0.0, %v933
      %v935 = vpop.f32.mrf.mxu0
      %936 = vdwg.mxu0
      %v937 = vadd.f32 %v883, %v929
      %v938 = vadd.f32 %v884, %v931
      %v939 = vadd.f32 %v885, %v934
      %v940 = vld [vmem:[#allocation2 + $0x10] sm:$0x7]
      %s941 = scalar_lea.vmem %s1, 56
      %v942 = vld [vmem:[%s941] sm:$0xf]
      %v943 = vld [vmem:[%s941 + $0x4] sm:$0xf]
      %v945 = vunpack.c.l.b16 %v940
      %v946 = vpack.c.b16 %v945, %v899
      %vm947 = vsmask.f32 5376
      %v949 = vshrl.u32 %v901, 16
      %v951 = vrot.slane %v949, 2
      %v952 = vshll.u32 %v901, 16
      %v954 = vrot.slane %v952, 3
      %v955 = vor.u32 %v951, %v954
      %v957 = vshrl.u32 %v946, 16
      %v959 = vrot.slane %v957, 2
      %v960 = vshll.u32 %v946, 16
      %v962 = vrot.slane %v960, 3
      %v963 = vor.u32 %v959, %v962
      %v964 = vsel %vm947, %v955, %v963
      %v967 = vunpack.c.l.b16 %v942
      %v968 = vunpack.c.l.b16 %v943
      %v969 = vpack.c.b16 %v968, %v967
      %v972 = vsel %vm643, %v964, 0
      %v975 = vsel %vm643, %v963, 0
      %977 = vmatpush.bf16.msra.mxu0 0
      %978 = vmatpush.bf16.msra.mxu0 0
      %979 = vmatpush.bf16.msra.mxu0 0
      %980 = vmatpush.bf16.msra.mxu0 0
      %981 = vmatpush.bf16.msra.mxu0 0
      %982 = vmatpush.bf16.msra.mxu0 0
      %983 = vmatpush.bf16.msra.mxu0 0
      %984 = vmatpush.bf16.msra.mxu0 %v969
      %985 = vmatmul.bf16.gmra.mxu0 %v972
      %v986 = vpop.f32.mrf.mxu0
      %v987 = vadd.f32 0.0, %v986
      %v988 = vpop.f32.mrf.mxu0
      %v989 = vadd.f32 0.0, %v988
      %990 = vmatmul.bf16.gmra.mxu0 %v975
      %v991 = vpop.f32.mrf.mxu0
      %v992 = vadd.f32 0.0, %v991
      %v993 = vpop.f32.mrf.mxu0
      %994 = vdwg.mxu0
      %v995 = vadd.f32 %v937, %v987
      %v996 = vadd.f32 %v938, %v989
      %v997 = vadd.f32 %v939, %v992
      %v998 = vld [vmem:[#allocation2 + $0x4] sm:$0x8]
      %s999 = scalar_lea.vmem %s1, 64
      %v1000 = vld [vmem:[%s999] sm:$0xf]
      %v1001 = vld [vmem:[%s999 + $0x4] sm:$0xf]
      %v1003 = vunpack.c.l.b16 %v998
      %v1004 = vpack.c.b16 %v898, %v1003
      %v1005 = vrot.slane %v1004, 3
      %v1006 = vrot.slane %v946, 3
      %v1007 = vsel %vm753, %v1005, %v1006
      %v1010 = vunpack.c.l.b16 %v1000
      %v1011 = vunpack.c.l.b16 %v1001
      %v1012 = vpack.c.b16 %v1011, %v1010
      %v1015 = vsel %vm643, %v1007, 0
      %v1018 = vsel %vm643, %v1006, 0
      %1020 = vmatpush.bf16.msra.mxu0 0
      %1021 = vmatpush.bf16.msra.mxu0 0
      %1022 = vmatpush.bf16.msra.mxu0 0
      %1023 = vmatpush.bf16.msra.mxu0 0
      %1024 = vmatpush.bf16.msra.mxu0 0
      %1025 = vmatpush.bf16.msra.mxu0 0
      %1026 = vmatpush.bf16.msra.mxu0 0
      %1027 = vmatpush.bf16.msra.mxu0 %v1012
      %1028 = vmatmul.bf16.gmra.mxu0 %v1015
      %v1029 = vpop.f32.mrf.mxu0
      %v1030 = vadd.f32 0.0, %v1029
      %v1031 = vpop.f32.mrf.mxu0
      %v1032 = vadd.f32 0.0, %v1031
      %1033 = vmatmul.bf16.gmra.mxu0 %v1018
      %v1034 = vpop.f32.mrf.mxu0
      %v1035 = vadd.f32 0.0, %v1034
      %v1036 = vpop.f32.mrf.mxu0
      %1037 = vdwg.mxu0
      %v1038 = vadd.f32 %v995, %v1030
      %v1039 = vadd.f32 %v996, %v1032
      %v1040 = vadd.f32 %v997, %v1035
      %v1041 = vpack.c.bf16 %v1038, %v1038
      %v1042 = vpack.c.bf16 %v1039, %v1039
      %v1043 = vpack.c.bf16 %v1040, %v1040
      %vm1044 = vcmask 257024
      %1045 = vst.msk [vmem:[%s262] sm:$0xf] %vm1044, %v1041
      %1046 = vst.msk [vmem:[%s262 + $0x4] sm:$0xf] %vm1044, %v1042
      %1047 = vst.msk [vmem:[%s262 + $0x8] sm:$0xf] %vm1044, %v1043
      %v1048 = vmul.f32 %v1038, %v529
      %v1049 = vmul.f32 %v1039, %v530
      %v1050 = vmul.f32 %v1040, %v531
      %vm1051 = vcmask 261120
      %v1052 = vsel %vm1051, %v1048, 0.0
      %v1053 = vsel %vm1051, %v1049, 0.0
      %v1054 = vadd.f32 %v1052, %v1053
      %v1055 = vsel %vm1051, %v1050, 0.0
      %v1056 = vadd.f32 %v1054, %v1055
      %v1057 = vrot.slane %v1056, 4
      %v1058 = vadd.f32 %v1056, %v1057
      %v1059 = vrot.slane %v1058, 2
      %v1060 = vadd.f32 %v1058, %v1059
      %v1061 = vrot.slane %v1060, 1
      %v1062 = vadd.f32 %v1060, %v1061
      %v1063 = vadd.f32 %v1062, 0.0
      %v1064 = vmul.f32 %v1048, %v1038
      %v1065 = vmul.f32 %v1049, %v1039
      %v1066 = vmul.f32 %v1050, %v1040
      %v1067 = vsel %vm1051, %v1064, 0.0
      %v1068 = vsel %vm1051, %v1065, 0.0
      %v1069 = vadd.f32 %v1067, %v1068
      %v1070 = vsel %vm1051, %v1066, 0.0
      %v1071 = vadd.f32 %v1069, %v1070
      %v1072 = vrot.slane %v1071, 4
      %v1073 = vadd.f32 %v1071, %v1072
      %v1074 = vrot.slane %v1073, 2
      %v1075 = vadd.f32 %v1073, %v1074
      %v1076 = vrot.slane %v1075, 1
      %v1077 = vadd.f32 %v1075, %v1076
      %v1078 = vadd.f32 %v1077, 0.0
      %vm1079 = vcmask 253952
      %1080 = vst.msk [vmem:[%s265] sm:$0x1] %vm1079, %v1063
      %1081 = vst.msk [vmem:[%s268] sm:$0x1] %vm1079, %v1078
      %p1082 = scmp.lt.s32.totalorder %s18, 1
      %s1083 = scalar_select %p1082, %s18, 1
      %s1084 = smul.addr %s1083, 3
      %s1085 = smul.addr %s1084, 4
      %s1086 = scalar_lea.vmem %s4, %s1085
      %p1087 = scmp.lt.s32.totalorder %s18, 1
      %s1088 = scalar_select %p1087, %s18, 1
      %s1089 = scalar_lea.vmem %s5, %s1088
      %p1090 = scmp.lt.s32.totalorder %s18, 1
      %s1091 = scalar_select %p1090, %s18, 1
      %s1092 = scalar_lea.vmem %s6, %s1091
      // Predicated region
      $region37: #{generator_forward.4} parent=35 // pred_check
        %p1093 = pneg %p125
      $region38: #{generator_forward.4} parent=35 // pred_check_branch
        %1095 = sbr.rel (%p1093) target = $region40
      $region39: #{generator_forward.4} parent=35 // pred_region
        _
      $region40: #{generator_forward.4} parent=35 // pred_fallthru
        _
      // Predicated region
      $region41: #{generator_forward.4} parent=35 // pred_check
        %p1096 = pneg %p151
      $region42: #{generator_forward.4} parent=35 // pred_check_branch
        %1098 = sbr.rel (%p1096) target = $region44
      $region43: #{generator_forward.4} parent=35 // pred_region
        _
      $region44: #{generator_forward.4} parent=35 // pred_fallthru
        _
      // Predicated region
      $region45: #{generator_forward.4} parent=35 // pred_check
        %p1099 = pneg %p177
      $region46: #{generator_forward.4} parent=35 // pred_check_branch
        %1101 = sbr.rel (%p1099) target = $region48
      $region47: #{generator_forward.4} parent=35 // pred_region
        _
      $region48: #{generator_forward.4} parent=35 // pred_fallthru
        _
    $region36: #{generator_forward.4} parent=5 // pred_fallthru
      _
    %p1102 = scmp.le.s32.totalorder 2, %s13
    // Predicated region
    $region49: #{generator_forward.4} parent=5 // pred_check
      %p1103 = pneg %p1102
    $region50: #{generator_forward.4} parent=5 // pred_check_branch
      %1105 = sbr.rel (%p1103) target = $region52
    $region51: #{generator_forward.4} parent=5 // pred_region
      %s1106 = ssub.s32 %s13, 2
      // Predicated region
      $region53: #{generator_forward.4} parent=51 // pred_check
        %p1107 = pneg %p131
      $region54: #{generator_forward.4} parent=51 // pred_check_branch
        %1109 = sbr.rel (%p1107) target = $region56
      $region55: #{generator_forward.4} parent=51 // pred_region
        %p1110 = scmp.lt.s32.totalorder %s19, 1
        %s1111 = scalar_select %p1110, %s19, 1
        %s1112 = smul.addr %s1111, 3
        %s1113 = smul.addr %s1112, 4
        %s1114 = scalar_lea.vmem %s4, %s1113
      $region56: #{generator_forward.4} parent=51 // pred_fallthru
        _
      // Predicated region
      $region57: #{generator_forward.4} parent=51 // pred_check
        %p1115 = pneg %p157
      $region58: #{generator_forward.4} parent=51 // pred_check_branch
        %1117 = sbr.rel (%p1115) target = $region60
      $region59: #{generator_forward.4} parent=51 // pred_region
        %p1118 = scmp.lt.s32.totalorder %s19, 1
        %s1119 = scalar_select %p1118, %s19, 1
        %s1120 = scalar_lea.vmem %s5, %s1119
      $region60: #{generator_forward.4} parent=51 // pred_fallthru
        _
      // Predicated region
      $region61: #{generator_forward.4} parent=51 // pred_check
        %p1121 = pneg %p183
      $region62: #{generator_forward.4} parent=51 // pred_check_branch
        %1123 = sbr.rel (%p1121) target = $region64
      $region63: #{generator_forward.4} parent=51 // pred_region
        %p1124 = scmp.lt.s32.totalorder %s19, 1
        %s1125 = scalar_select %p1124, %s19, 1
        %s1126 = scalar_lea.vmem %s6, %s1125
      $region64: #{generator_forward.4} parent=51 // pred_fallthru
        _
    $region52: #{generator_forward.4} parent=5 // pred_fallthru
      _
  $region6: #{generator_forward.4} parent=0 // loop_footer
    %s17 = sadd.s32 1, %s13
  $region7: #{generator_forward.4} parent=0 // loop_footer_branch
    %12 = sbr.rel target = $region3
  $region8: #{generator_forward.4} parent=0 // loop_exit
    _

// kernel: generator_forward.5
$region0: #{generator_forward.5}
  #allocation0 [shape = 'u32[]', space=smem, size = 0x4, offset = 0x4, fixed_abs, tag = 'smem constant byte address 0x4 - core index']
  #allocation1 [shape = 'u32[72,128]{1,0:T(1,128)}', space=vmem, size = 0x9000, scoped, tag = 'internal scratch']
  #allocation2 [shape = 'bf16[110,8]{1,0:T(8,128)(2,1)}', space=vmem, size = 0x7000, scoped, tag = 'scratch operand']
  %s0 = inlined_call_operand.vmem [shape: bf16[2,110,8], index: 0, kind: input, shape index: {}]
  %s1 = inlined_call_operand.vmem [shape: bf16[9,8,12], index: 1, kind: input, shape index: {}]
  %s2 = inlined_call_operand.vmem [shape: f32[1,8], index: 2, kind: input, shape index: {}]
  %s3 = inlined_call_operand.vmem [shape: f32[1,8], index: 3, kind: input, shape index: {}]
  %s4 = inlined_call_operand.vmem [shape: f32[2,80,12], index: 4, kind: output, shape index: {}]
  %s5 = sld [smem:[#allocation0]]
  $region49: #{generator_forward.5} parent=0
    _
  %s7 = ssub.s32 1, %s5
  %s8 = scalar_select 0, %s7, %s5
  loop: start=0, step=1, limit=4
  $region2: #{generator_forward.5} parent=0 // loop_pre_header
    _
  $region3: #{generator_forward.5} parent=0 // loop_header
    %s10 = sphi 0, %s14
    %p11 = scmp.ge.s32.totalorder %s10, 4
    %s20 = sphi 0, %s22
    %s23 = sphi 0, %s20
    %s24 = sphi 0, %s23
    %s40 = sphi 0, %s24
    %s44 = sphi 0, %s44
    %s46 = sphi 0, %s44
    %s47 = sphi 0, %s46
    %s61 = sphi 0, %s47
    %s65 = sphi 0, %s65
    %s67 = sphi 0, %s65
    %s68 = sphi 0, %s67
    %s82 = sphi 0, %s68
    %s86 = sphi 0, %s86
    %s88 = sphi 0, %s86
    %s89 = sphi 0, %s88
    %s103 = sphi 0, %s89
    %s109 = sphi 0, %s111
    %s112 = sphi 0, %s109
    %s113 = sphi 0, %s112
    %s129 = sphi 0, %s113
  $region4: #{generator_forward.5} parent=0 // loop_header_branch
    %13 = sbr.rel (%p11) target = $region8
  $region5: #{generator_forward.5} parent=0 // loop_body
    %s15 = ssub.s32 %s10, 1
    %s16 = ssub.s32 %s10, 2
    %s17 = sadd.s32 %s10, 1
    %s18 = ssub.s32 %s10, %s17
    %p19 = scmp.eq.s32.totalorder %s18, 0
    %s21 = sadd.s32 %s20, 1
    %s22 = scalar_select %p19, %s20, %s21
    %p25 = pneg %p19
    %p26 = scmp.eq.s32.totalorder %s10, 1
    %p27 = por %p25, %p26
    %p28 = scmp.ne.s32.totalorder %s20, %s23
    %p29 = scmp.eq.s32.totalorder %s10, 0
    %p30 = por %p28, %p29
    %p31 = scmp.ne.s32.totalorder %s20, %s23
    %p32 = scmp.eq.s32.totalorder %s15, 1
    %p33 = por %p31, %p32
    %p34 = scmp.ne.s32.totalorder %s23, %s24
    %p35 = scmp.eq.s32.totalorder %s15, 0
    %p36 = por %p34, %p35
    %p37 = scmp.ne.s32.totalorder %s23, %s24
    %p38 = scmp.eq.s32.totalorder %s16, 1
    %p39 = por %p37, %p38
    %p41 = scmp.ne.s32.totalorder %s24, %s40
    %p42 = scmp.eq.s32.totalorder %s16, 0
    %p43 = por %p41, %p42
    %s45 = sadd.s32 %s44, 1
    %p48 = scmp.eq.s32.totalorder %s10, 1
    %p49 = scmp.ne.s32.totalorder %s44, %s46
    %p50 = scmp.eq.s32.totalorder %s10, 0
    %p51 = por %p49, %p50
    %p52 = scmp.ne.s32.totalorder %s44, %s46
    %p53 = scmp.eq.s32.totalorder %s15, 1
    %p54 = por %p52, %p53
    %p55 = scmp.ne.s32.totalorder %s46, %s47
    %p56 = scmp.eq.s32.totalorder %s15, 0
    %p57 = por %p55, %p56
    %p58 = scmp.ne.s32.totalorder %s46, %s47
    %p59 = scmp.eq.s32.totalorder %s16, 1
    %p60 = por %p58, %p59
    %p62 = scmp.ne.s32.totalorder %s47, %s61
    %p63 = scmp.eq.s32.totalorder %s16, 0
    %p64 = por %p62, %p63
    %s66 = sadd.s32 %s65, 1
    %p69 = scmp.eq.s32.totalorder %s10, 1
    %p70 = scmp.ne.s32.totalorder %s65, %s67
    %p71 = scmp.eq.s32.totalorder %s10, 0
    %p72 = por %p70, %p71
    %p73 = scmp.ne.s32.totalorder %s65, %s67
    %p74 = scmp.eq.s32.totalorder %s15, 1
    %p75 = por %p73, %p74
    %p76 = scmp.ne.s32.totalorder %s67, %s68
    %p77 = scmp.eq.s32.totalorder %s15, 0
    %p78 = por %p76, %p77
    %p79 = scmp.ne.s32.totalorder %s67, %s68
    %p80 = scmp.eq.s32.totalorder %s16, 1
    %p81 = por %p79, %p80
    %p83 = scmp.ne.s32.totalorder %s68, %s82
    %p84 = scmp.eq.s32.totalorder %s16, 0
    %p85 = por %p83, %p84
    %s87 = sadd.s32 %s86, 1
    %p90 = scmp.eq.s32.totalorder %s10, 1
    %p91 = scmp.ne.s32.totalorder %s86, %s88
    %p92 = scmp.eq.s32.totalorder %s10, 0
    %p93 = por %p91, %p92
    %p94 = scmp.ne.s32.totalorder %s86, %s88
    %p95 = scmp.eq.s32.totalorder %s15, 1
    %p96 = por %p94, %p95
    %p97 = scmp.ne.s32.totalorder %s88, %s89
    %p98 = scmp.eq.s32.totalorder %s15, 0
    %p99 = por %p97, %p98
    %p100 = scmp.ne.s32.totalorder %s88, %s89
    %p101 = scmp.eq.s32.totalorder %s16, 1
    %p102 = por %p100, %p101
    %p104 = scmp.ne.s32.totalorder %s89, %s103
    %p105 = scmp.eq.s32.totalorder %s16, 0
    %p106 = por %p104, %p105
    %s107 = ssub.s32 %s10, %s17
    %p108 = scmp.eq.s32.totalorder %s107, 0
    %s110 = sadd.s32 %s109, 1
    %s111 = scalar_select %p108, %s109, %s110
    %p114 = pneg %p108
    %p115 = scmp.eq.s32.totalorder %s10, 1
    %p116 = por %p114, %p115
    %p117 = scmp.ne.s32.totalorder %s109, %s112
    %p118 = scmp.eq.s32.totalorder %s10, 0
    %p119 = por %p117, %p118
    %p120 = scmp.ne.s32.totalorder %s109, %s112
    %p121 = scmp.eq.s32.totalorder %s15, 1
    %p122 = por %p120, %p121
    %p123 = scmp.ne.s32.totalorder %s112, %s113
    %p124 = scmp.eq.s32.totalorder %s15, 0
    %p125 = por %p123, %p124
    %p126 = scmp.ne.s32.totalorder %s112, %s113
    %p127 = scmp.eq.s32.totalorder %s16, 1
    %p128 = por %p126, %p127
    %p130 = scmp.ne.s32.totalorder %s113, %s129
    %p131 = scmp.eq.s32.totalorder %s16, 0
    %p132 = por %p130, %p131
    %p133 = scmp.le.s32.totalorder 1, %s10
    %p134 = scmp.lt.s32.totalorder %s10, 3
    %p135 = pnand %p133, %p134
    %p136 = pneg %p135
    // Predicated region
    $region9: #{generator_forward.5} parent=5 // pred_check
      _
    $region10: #{generator_forward.5} parent=5 // pred_check_branch
      %138 = sbr.rel (%p135) target = $region12
    $region11: #{generator_forward.5} parent=5 // pred_region
      %s139 = ssub.s32 %s10, 1
      // Predicated region
      $region13: #{generator_forward.5} parent=11 // pred_check
        %p140 = pneg %p57
      $region14: #{generator_forward.5} parent=11 // pred_check_branch
        %142 = sbr.rel (%p140) target = $region16
      $region15: #{generator_forward.5} parent=11 // pred_region
        _
      $region16: #{generator_forward.5} parent=11 // pred_fallthru
        _
      // Predicated region
      $region17: #{generator_forward.5} parent=11 // pred_check
        %p143 = pneg %p78
      $region18: #{generator_forward.5} parent=11 // pred_check_branch
        %145 = sbr.rel (%p143) target = $region20
      $region19: #{generator_forward.5} parent=11 // pred_region
        _
      $region20: #{generator_forward.5} parent=11 // pred_fallthru
        _
      // Predicated region
      $region21: #{generator_forward.5} parent=11 // pred_check
        %p146 = pneg %p99
      $region22: #{generator_forward.5} parent=11 // pred_check_branch
        %148 = sbr.rel (%p146) target = $region24
      $region23: #{generator_forward.5} parent=11 // pred_region
        _
      $region24: #{generator_forward.5} parent=11 // pred_fallthru
        _
    $region12: #{generator_forward.5} parent=5 // pred_fallthru
      _
    %p149 = scmp.lt.s32.totalorder %s10, 2
    // Predicated region
    $region25: #{generator_forward.5} parent=5 // pred_check
      %p150 = pneg %p149
    $region26: #{generator_forward.5} parent=5 // pred_check_branch
      %152 = sbr.rel (%p150) target = $region28
    $region27: #{generator_forward.5} parent=5 // pred_region
      // Predicated region
      $region29: #{generator_forward.5} parent=27 // pred_check
        %p153 = pneg %p30
      $region30: #{generator_forward.5} parent=27 // pred_check_branch
        %155 = sbr.rel (%p153) target = $region32
      $region31: #{generator_forward.5} parent=27 // pred_region
        %p156 = scmp.lt.s32.totalorder %s10, 1
        %s157 = scalar_select %p156, %s10, 1
        %s158 = smul.addr %s157, 14
        %s159 = smul.addr %s158, 4
        %s160 = scalar_lea.vmem %s0, %s159
      $region32: #{generator_forward.5} parent=27 // pred_fallthru
        _
    $region28: #{generator_forward.5} parent=5 // pred_fallthru
      _
    %p161 = scmp.le.s32.totalorder 1, %s10
    %p162 = scmp.lt.s32.totalorder %s10, 3
    %p163 = pnand %p161, %p162
    %p164 = pneg %p163
    // Predicated region
    $region33: #{generator_forward.5} parent=5 // pred_check
      _
    $region34: #{generator_forward.5} parent=5 // pred_check_branch
      %166 = sbr.rel (%p163) target = $region36
    $region35: #{generator_forward.5} parent=5 // pred_region
      %s167 = ssub.s32 %s10, 1
      %p168 = scmp.lt.s32.totalorder %s15, 1
      %s169 = scalar_select %p168, %s15, 1
      %s170 = smul.addr %s169, 14
      %s171 = smul.addr %s170, 4
      %s172 = scalar_lea.vmem %s0, %s171
      %p173 = pneg %p36
      %p174 = pneg %p33
      %p175 = pneg %p57
      %p176 = pneg %p54
      %p177 = pneg %p78
      %p178 = pneg %p75
      %p179 = pneg %p99
      %p180 = pneg %p96
      %p181 = pneg %p125
      %p182 = pneg %p122
      %p183 = scmp.lt.s32.totalorder %s15, 1
      %s184 = scalar_select %p183, %s15, 1
      %s185 = smul.addr %s184, 10
      %s186 = smul.addr %s185, 8
      %s187 = scalar_lea.vmem %s4, %s186
      %p188 = scmp.lt.s32.totalorder %s15, 1
      %s189 = scalar_select %p188, %s15, 1
      %s190 = smul.addr %s189, 14
      %s191 = smul.addr %s190, 4
      %s192 = scalar_lea.vmem %s0, %s191
      %p193 = scmp.lt.s32.totalorder %s15, 1
      %s194 = scalar_select %p193, %s15, 1
      %s195 = smul.addr %s194, 10
      %s196 = smul.addr %s195, 8
      %s197 = scalar_lea.vmem %s4, %s196
      %v199 = vlaneseq
      %v200 = vshrl.u32 %v199, 7
      %v201 = vadd.s32 %v200, 8
      %v202 = vadd.s32 %v200, 16
      %v203 = vadd.s32 %v200, 24
      %v204 = vadd.s32 %v200, 32
      %v205 = vadd.s32 %v200, 40
      %v206 = vadd.s32 %v200, 48
      %v207 = vadd.s32 %v200, 56
      %v208 = vadd.s32 %v200, 64
      %v209 = vadd.s32 %v200, 72
      %v210 = vadd.s32 %v200, 80
      %v211 = vadd.s32 %v200, 88
      %v212 = vadd.s32 %v200, 96
      %v213 = vadd.s32 %v200, 104
      %vm214 = vcmp.ge.s32.totalorder %v200, 10
      %vm215 = vcmp.ge.s32.totalorder %v201, 10
      %vm216 = vcmp.ge.s32.totalorder %v202, 10
      %vm217 = vcmp.ge.s32.totalorder %v203, 10
      %vm218 = vcmp.ge.s32.totalorder %v204, 10
      %vm219 = vcmp.ge.s32.totalorder %v205, 10
      %vm220 = vcmp.ge.s32.totalorder %v206, 10
      %vm221 = vcmp.ge.s32.totalorder %v207, 10
      %vm222 = vcmp.ge.s32.totalorder %v208, 10
      %vm223 = vcmp.ge.s32.totalorder %v209, 10
      %vm224 = vcmp.ge.s32.totalorder %v210, 10
      %vm225 = vcmp.ge.s32.totalorder %v211, 10
      %vm226 = vcmp.ge.s32.totalorder %v212, 10
      %vm227 = vcmp.ge.s32.totalorder %v213, 10
      %vm228 = vcmp.lt.s32.totalorder %v200, 90
      %vm229 = vcmp.lt.s32.totalorder %v201, 90
      %vm230 = vcmp.lt.s32.totalorder %v202, 90
      %vm231 = vcmp.lt.s32.totalorder %v203, 90
      %vm232 = vcmp.lt.s32.totalorder %v204, 90
      %vm233 = vcmp.lt.s32.totalorder %v205, 90
      %vm234 = vcmp.lt.s32.totalorder %v206, 90
      %vm235 = vcmp.lt.s32.totalorder %v207, 90
      %vm236 = vcmp.lt.s32.totalorder %v208, 90
      %vm237 = vcmp.lt.s32.totalorder %v209, 90
      %vm238 = vcmp.lt.s32.totalorder %v210, 90
      %vm239 = vcmp.lt.s32.totalorder %v211, 90
      %vm240 = vcmp.lt.s32.totalorder %v212, 90
      %vm241 = vcmp.lt.s32.totalorder %v213, 90
      %vm242 = vmand %vm214, %vm228
      %vm243 = vmand %vm215, %vm229
      %vm244 = vmand %vm216, %vm230
      %vm245 = vmand %vm217, %vm231
      %vm246 = vmand %vm218, %vm232
      %vm247 = vmand %vm219, %vm233
      %vm248 = vmand %vm220, %vm234
      %vm249 = vmand %vm221, %vm235
      %vm250 = vmand %vm222, %vm236
      %vm251 = vmand %vm223, %vm237
      %vm252 = vmand %vm224, %vm238
      %vm253 = vmand %vm225, %vm239
      %vm254 = vmand %vm226, %vm240
      %vm255 = vmand %vm227, %vm241
      %vm256 = vcmp.lt.s32.totalorder %v200, 0
      %v257 = vsub.s32 0, %v200
      %v258 = vsel %vm256, %v257, %v200
      %v259 = vand.u32 %v258, 65535
      %v260 = vshrl.u32 %v258, 16
      %v262 = vmul.u32 %v259, 52429
      %v263 = vmul.u32 %v259, 52428
      %v264 = vmul.u32 %v260, 52429
      %v265 = vmul.u32 %v260, 52428
      %v266 = vshll.u32 %v263, 16
      %v267 = vshrl.u32 %v263, 16
      %v268 = vshll.u32 %v264, 16
      %v269 = vshrl.u32 %v264, 16
      %vm270 = vc.u32 %v262, %v266
      %v271 = vsel %vm270, 1, 0
      %v272 = vadd.s32 %v262, %v266
      %v273 = vadd.s32 %v265, %v271
      %vm274 = vc.u32 %v272, %v268
      %v275 = vsel %vm274, 1, 0
      %v276 = vadd.s32 %v272, %v268
      %v277 = vadd.s32 %v273, %v275
      %v278 = vadd.s32 %v277, %v267
      %v279 = vadd.s32 %v278, %v269
      %v280 = vshrl.u32 %v279, 3
      %v281 = vmul.u32 %v280, 10
      %v282 = vsub.s32 %v258, %v281
      %v283 = vsub.s32 0, %v282
      %v284 = vsel %vm256, %v283, %v282
      %vm285 = vcmp.lt.s32.totalorder %v201, 0
      %v286 = vsub.s32 0, %v201
      %v287 = vsel %vm285, %v286, %v201
      %v288 = vand.u32 %v287, 65535
      %v289 = vshrl.u32 %v287, 16
      %v291 = vmul.u32 %v288, 52429
      %v292 = vmul.u32 %v288, 52428
      %v293 = vmul.u32 %v289, 52429
      %v294 = vmul.u32 %v289, 52428
      %v295 = vshll.u32 %v292, 16
      %v296 = vshrl.u32 %v292, 16
      %v297 = vshll.u32 %v293, 16
      %v298 = vshrl.u32 %v293, 16
      %vm299 = vc.u32 %v291, %v295
      %v300 = vsel %vm299, 1, 0
      %v301 = vadd.s32 %v291, %v295
      %v302 = vadd.s32 %v294, %v300
      %vm303 = vc.u32 %v301, %v297
      %v304 = vsel %vm303, 1, 0
      %v305 = vadd.s32 %v301, %v297
      %v306 = vadd.s32 %v302, %v304
      %v307 = vadd.s32 %v306, %v296
      %v308 = vadd.s32 %v307, %v298
      %v309 = vshrl.u32 %v308, 3
      %v310 = vmul.u32 %v309, 10
      %v311 = vsub.s32 %v287, %v310
      %v312 = vsub.s32 0, %v311
      %v313 = vsel %vm285, %v312, %v311
      %vm314 = vcmp.lt.s32.totalorder %v202, 0
      %v315 = vsub.s32 0, %v202
      %v316 = vsel %vm314, %v315, %v202
      %v317 = vand.u32 %v316, 65535
      %v318 = vshrl.u32 %v316, 16
      %v320 = vmul.u32 %v317, 52429
      %v321 = vmul.u32 %v317, 52428
      %v322 = vmul.u32 %v318, 52429
      %v323 = vmul.u32 %v318, 52428
      %v324 = vshll.u32 %v321, 16
      %v325 = vshrl.u32 %v321, 16
      %v326 = vshll.u32 %v322, 16
      %v327 = vshrl.u32 %v322, 16
      %vm328 = vc.u32 %v320, %v324
      %v329 = vsel %vm328, 1, 0
      %v330 = vadd.s32 %v320, %v324
      %v331 = vadd.s32 %v323, %v329
      %vm332 = vc.u32 %v330, %v326
      %v333 = vsel %vm332, 1, 0
      %v334 = vadd.s32 %v330, %v326
      %v335 = vadd.s32 %v331, %v333
      %v336 = vadd.s32 %v335, %v325
      %v337 = vadd.s32 %v336, %v327
      %v338 = vshrl.u32 %v337, 3
      %v339 = vmul.u32 %v338, 10
      %v340 = vsub.s32 %v316, %v339
      %v341 = vsub.s32 0, %v340
      %v342 = vsel %vm314, %v341, %v340
      %vm343 = vcmp.lt.s32.totalorder %v203, 0
      %v344 = vsub.s32 0, %v203
      %v345 = vsel %vm343, %v344, %v203
      %v346 = vand.u32 %v345, 65535
      %v347 = vshrl.u32 %v345, 16
      %v349 = vmul.u32 %v346, 52429
      %v350 = vmul.u32 %v346, 52428
      %v351 = vmul.u32 %v347, 52429
      %v352 = vmul.u32 %v347, 52428
      %v353 = vshll.u32 %v350, 16
      %v354 = vshrl.u32 %v350, 16
      %v355 = vshll.u32 %v351, 16
      %v356 = vshrl.u32 %v351, 16
      %vm357 = vc.u32 %v349, %v353
      %v358 = vsel %vm357, 1, 0
      %v359 = vadd.s32 %v349, %v353
      %v360 = vadd.s32 %v352, %v358
      %vm361 = vc.u32 %v359, %v355
      %v362 = vsel %vm361, 1, 0
      %v363 = vadd.s32 %v359, %v355
      %v364 = vadd.s32 %v360, %v362
      %v365 = vadd.s32 %v364, %v354
      %v366 = vadd.s32 %v365, %v356
      %v367 = vshrl.u32 %v366, 3
      %v368 = vmul.u32 %v367, 10
      %v369 = vsub.s32 %v345, %v368
      %v370 = vsub.s32 0, %v369
      %v371 = vsel %vm343, %v370, %v369
      %vm372 = vcmp.lt.s32.totalorder %v204, 0
      %v373 = vsub.s32 0, %v204
      %v374 = vsel %vm372, %v373, %v204
      %v375 = vand.u32 %v374, 65535
      %v376 = vshrl.u32 %v374, 16
      %v378 = vmul.u32 %v375, 52429
      %v379 = vmul.u32 %v375, 52428
      %v380 = vmul.u32 %v376, 52429
      %v381 = vmul.u32 %v376, 52428
      %v382 = vshll.u32 %v379, 16
      %v383 = vshrl.u32 %v379, 16
      %v384 = vshll.u32 %v380, 16
      %v385 = vshrl.u32 %v380, 16
      %vm386 = vc.u32 %v378, %v382
      %v387 = vsel %vm386, 1, 0
      %v388 = vadd.s32 %v378, %v382
      %v389 = vadd.s32 %v381, %v387
      %vm390 = vc.u32 %v388, %v384
      %v391 = vsel %vm390, 1, 0
      %v392 = vadd.s32 %v388, %v384
      %v393 = vadd.s32 %v389, %v391
      %v394 = vadd.s32 %v393, %v383
      %v395 = vadd.s32 %v394, %v385
      %v396 = vshrl.u32 %v395, 3
      %v397 = vmul.u32 %v396, 10
      %v398 = vsub.s32 %v374, %v397
      %v399 = vsub.s32 0, %v398
      %v400 = vsel %vm372, %v399, %v398
      %vm401 = vcmp.lt.s32.totalorder %v205, 0
      %v402 = vsub.s32 0, %v205
      %v403 = vsel %vm401, %v402, %v205
      %v404 = vand.u32 %v403, 65535
      %v405 = vshrl.u32 %v403, 16
      %v407 = vmul.u32 %v404, 52429
      %v408 = vmul.u32 %v404, 52428
      %v409 = vmul.u32 %v405, 52429
      %v410 = vmul.u32 %v405, 52428
      %v411 = vshll.u32 %v408, 16
      %v412 = vshrl.u32 %v408, 16
      %v413 = vshll.u32 %v409, 16
      %v414 = vshrl.u32 %v409, 16
      %vm415 = vc.u32 %v407, %v411
      %v416 = vsel %vm415, 1, 0
      %v417 = vadd.s32 %v407, %v411
      %v418 = vadd.s32 %v410, %v416
      %vm419 = vc.u32 %v417, %v413
      %v420 = vsel %vm419, 1, 0
      %v421 = vadd.s32 %v417, %v413
      %v422 = vadd.s32 %v418, %v420
      %v423 = vadd.s32 %v422, %v412
      %v424 = vadd.s32 %v423, %v414
      %v425 = vshrl.u32 %v424, 3
      %v426 = vmul.u32 %v425, 10
      %v427 = vsub.s32 %v403, %v426
      %v428 = vsub.s32 0, %v427
      %v429 = vsel %vm401, %v428, %v427
      %vm430 = vcmp.lt.s32.totalorder %v206, 0
      %v431 = vsub.s32 0, %v206
      %v432 = vsel %vm430, %v431, %v206
      %v433 = vand.u32 %v432, 65535
      %v434 = vshrl.u32 %v432, 16
      %v436 = vmul.u32 %v433, 52429
      %v437 = vmul.u32 %v433, 52428
      %v438 = vmul.u32 %v434, 52429
      %v439 = vmul.u32 %v434, 52428
      %v440 = vshll.u32 %v437, 16
      %v441 = vshrl.u32 %v437, 16
      %v442 = vshll.u32 %v438, 16
      %v443 = vshrl.u32 %v438, 16
      %vm444 = vc.u32 %v436, %v440
      %v445 = vsel %vm444, 1, 0
      %v446 = vadd.s32 %v436, %v440
      %v447 = vadd.s32 %v439, %v445
      %vm448 = vc.u32 %v446, %v442
      %v449 = vsel %vm448, 1, 0
      %v450 = vadd.s32 %v446, %v442
      %v451 = vadd.s32 %v447, %v449
      %v452 = vadd.s32 %v451, %v441
      %v453 = vadd.s32 %v452, %v443
      %v454 = vshrl.u32 %v453, 3
      %v455 = vmul.u32 %v454, 10
      %v456 = vsub.s32 %v432, %v455
      %v457 = vsub.s32 0, %v456
      %v458 = vsel %vm430, %v457, %v456
      %vm459 = vcmp.lt.s32.totalorder %v207, 0
      %v460 = vsub.s32 0, %v207
      %v461 = vsel %vm459, %v460, %v207
      %v462 = vand.u32 %v461, 65535
      %v463 = vshrl.u32 %v461, 16
      %v465 = vmul.u32 %v462, 52429
      %v466 = vmul.u32 %v462, 52428
      %v467 = vmul.u32 %v463, 52429
      %v468 = vmul.u32 %v463, 52428
      %v469 = vshll.u32 %v466, 16
      %v470 = vshrl.u32 %v466, 16
      %v471 = vshll.u32 %v467, 16
      %v472 = vshrl.u32 %v467, 16
      %vm473 = vc.u32 %v465, %v469
      %v474 = vsel %vm473, 1, 0
      %v475 = vadd.s32 %v465, %v469
      %v476 = vadd.s32 %v468, %v474
      %vm477 = vc.u32 %v475, %v471
      %v478 = vsel %vm477, 1, 0
      %v479 = vadd.s32 %v475, %v471
      %v480 = vadd.s32 %v476, %v478
      %v481 = vadd.s32 %v480, %v470
      %v482 = vadd.s32 %v481, %v472
      %v483 = vshrl.u32 %v482, 3
      %v484 = vmul.u32 %v483, 10
      %v485 = vsub.s32 %v461, %v484
      %v486 = vsub.s32 0, %v485
      %v487 = vsel %vm459, %v486, %v485
      %vm488 = vcmp.lt.s32.totalorder %v208, 0
      %v489 = vsub.s32 0, %v208
      %v490 = vsel %vm488, %v489, %v208
      %v491 = vand.u32 %v490, 65535
      %v492 = vshrl.u32 %v490, 16
      %v494 = vmul.u32 %v491, 52429
      %v495 = vmul.u32 %v491, 52428
      %v496 = vmul.u32 %v492, 52429
      %v497 = vmul.u32 %v492, 52428
      %v498 = vshll.u32 %v495, 16
      %v499 = vshrl.u32 %v495, 16
      %v500 = vshll.u32 %v496, 16
      %v501 = vshrl.u32 %v496, 16
      %vm502 = vc.u32 %v494, %v498
      %v503 = vsel %vm502, 1, 0
      %v504 = vadd.s32 %v494, %v498
      %v505 = vadd.s32 %v497, %v503
      %vm506 = vc.u32 %v504, %v500
      %v507 = vsel %vm506, 1, 0
      %v508 = vadd.s32 %v504, %v500
      %v509 = vadd.s32 %v505, %v507
      %v510 = vadd.s32 %v509, %v499
      %v511 = vadd.s32 %v510, %v501
      %v512 = vshrl.u32 %v511, 3
      %v513 = vmul.u32 %v512, 10
      %v514 = vsub.s32 %v490, %v513
      %v515 = vsub.s32 0, %v514
      %v516 = vsel %vm488, %v515, %v514
      %vm517 = vcmp.lt.s32.totalorder %v209, 0
      %v518 = vsub.s32 0, %v209
      %v519 = vsel %vm517, %v518, %v209
      %v520 = vand.u32 %v519, 65535
      %v521 = vshrl.u32 %v519, 16
      %v523 = vmul.u32 %v520, 52429
      %v524 = vmul.u32 %v520, 52428
      %v525 = vmul.u32 %v521, 52429
      %v526 = vmul.u32 %v521, 52428
      %v527 = vshll.u32 %v524, 16
      %v528 = vshrl.u32 %v524, 16
      %v529 = vshll.u32 %v525, 16
      %v530 = vshrl.u32 %v525, 16
      %vm531 = vc.u32 %v523, %v527
      %v532 = vsel %vm531, 1, 0
      %v533 = vadd.s32 %v523, %v527
      %v534 = vadd.s32 %v526, %v532
      %vm535 = vc.u32 %v533, %v529
      %v536 = vsel %vm535, 1, 0
      %v537 = vadd.s32 %v533, %v529
      %v538 = vadd.s32 %v534, %v536
      %v539 = vadd.s32 %v538, %v528
      %v540 = vadd.s32 %v539, %v530
      %v541 = vshrl.u32 %v540, 3
      %v542 = vmul.u32 %v541, 10
      %v543 = vsub.s32 %v519, %v542
      %v544 = vsub.s32 0, %v543
      %v545 = vsel %vm517, %v544, %v543
      %vm546 = vcmp.lt.s32.totalorder %v210, 0
      %v547 = vsub.s32 0, %v210
      %v548 = vsel %vm546, %v547, %v210
      %v549 = vand.u32 %v548, 65535
      %v550 = vshrl.u32 %v548, 16
      %v552 = vmul.u32 %v549, 52429
      %v553 = vmul.u32 %v549, 52428
      %v554 = vmul.u32 %v550, 52429
      %v555 = vmul.u32 %v550, 52428
      %v556 = vshll.u32 %v553, 16
      %v557 = vshrl.u32 %v553, 16
      %v558 = vshll.u32 %v554, 16
      %v559 = vshrl.u32 %v554, 16
      %vm560 = vc.u32 %v552, %v556
      %v561 = vsel %vm560, 1, 0
      %v562 = vadd.s32 %v552, %v556
      %v563 = vadd.s32 %v555, %v561
      %vm564 = vc.u32 %v562, %v558
      %v565 = vsel %vm564, 1, 0
      %v566 = vadd.s32 %v562, %v558
      %v567 = vadd.s32 %v563, %v565
      %v568 = vadd.s32 %v567, %v557
      %v569 = vadd.s32 %v568, %v559
      %v570 = vshrl.u32 %v569, 3
      %v571 = vmul.u32 %v570, 10
      %v572 = vsub.s32 %v548, %v571
      %v573 = vsub.s32 0, %v572
      %v574 = vsel %vm546, %v573, %v572
      %vm575 = vcmp.lt.s32.totalorder %v211, 0
      %v576 = vsub.s32 0, %v211
      %v577 = vsel %vm575, %v576, %v211
      %v578 = vand.u32 %v577, 65535
      %v579 = vshrl.u32 %v577, 16
      %v581 = vmul.u32 %v578, 52429
      %v582 = vmul.u32 %v578, 52428
      %v583 = vmul.u32 %v579, 52429
      %v584 = vmul.u32 %v579, 52428
      %v585 = vshll.u32 %v582, 16
      %v586 = vshrl.u32 %v582, 16
      %v587 = vshll.u32 %v583, 16
      %v588 = vshrl.u32 %v583, 16
      %vm589 = vc.u32 %v581, %v585
      %v590 = vsel %vm589, 1, 0
      %v591 = vadd.s32 %v581, %v585
      %v592 = vadd.s32 %v584, %v590
      %vm593 = vc.u32 %v591, %v587
      %v594 = vsel %vm593, 1, 0
      %v595 = vadd.s32 %v591, %v587
      %v596 = vadd.s32 %v592, %v594
      %v597 = vadd.s32 %v596, %v586
      %v598 = vadd.s32 %v597, %v588
      %v599 = vshrl.u32 %v598, 3
      %v600 = vmul.u32 %v599, 10
      %v601 = vsub.s32 %v577, %v600
      %v602 = vsub.s32 0, %v601
      %v603 = vsel %vm575, %v602, %v601
      %vm604 = vcmp.lt.s32.totalorder %v212, 0
      %v605 = vsub.s32 0, %v212
      %v606 = vsel %vm604, %v605, %v212
      %v607 = vand.u32 %v606, 65535
      %v608 = vshrl.u32 %v606, 16
      %v610 = vmul.u32 %v607, 52429
      %v611 = vmul.u32 %v607, 52428
      %v612 = vmul.u32 %v608, 52429
      %v613 = vmul.u32 %v608, 52428
      %v614 = vshll.u32 %v611, 16
      %v615 = vshrl.u32 %v611, 16
      %v616 = vshll.u32 %v612, 16
      %v617 = vshrl.u32 %v612, 16
      %vm618 = vc.u32 %v610, %v614
      %v619 = vsel %vm618, 1, 0
      %v620 = vadd.s32 %v610, %v614
      %v621 = vadd.s32 %v613, %v619
      %vm622 = vc.u32 %v620, %v616
      %v623 = vsel %vm622, 1, 0
      %v624 = vadd.s32 %v620, %v616
      %v625 = vadd.s32 %v621, %v623
      %v626 = vadd.s32 %v625, %v615
      %v627 = vadd.s32 %v626, %v617
      %v628 = vshrl.u32 %v627, 3
      %v629 = vmul.u32 %v628, 10
      %v630 = vsub.s32 %v606, %v629
      %v631 = vsub.s32 0, %v630
      %v632 = vsel %vm604, %v631, %v630
      %vm633 = vcmp.lt.s32.totalorder %v213, 0
      %v634 = vsub.s32 0, %v213
      %v635 = vsel %vm633, %v634, %v213
      %v636 = vand.u32 %v635, 65535
      %v637 = vshrl.u32 %v635, 16
      %v639 = vmul.u32 %v636, 52429
      %v640 = vmul.u32 %v636, 52428
      %v641 = vmul.u32 %v637, 52429
      %v642 = vmul.u32 %v637, 52428
      %v643 = vshll.u32 %v640, 16
      %v644 = vshrl.u32 %v640, 16
      %v645 = vshll.u32 %v641, 16
      %v646 = vshrl.u32 %v641, 16
      %vm647 = vc.u32 %v639, %v643
      %v648 = vsel %vm647, 1, 0
      %v649 = vadd.s32 %v639, %v643
      %v650 = vadd.s32 %v642, %v648
      %vm651 = vc.u32 %v649, %v645
      %v652 = vsel %vm651, 1, 0
      %v653 = vadd.s32 %v649, %v645
      %v654 = vadd.s32 %v650, %v652
      %v655 = vadd.s32 %v654, %v644
      %v656 = vadd.s32 %v655, %v646
      %v657 = vshrl.u32 %v656, 3
      %v658 = vmul.u32 %v657, 10
      %v659 = vsub.s32 %v635, %v658
      %v660 = vsub.s32 0, %v659
      %v661 = vsel %vm633, %v660, %v659
      %vm662 = vcmp.ne.s32.totalorder %v284, 0
      %vm663 = vcmp.ne.s32.totalorder %v313, 0
      %vm664 = vcmp.ne.s32.totalorder %v342, 0
      %vm665 = vcmp.ne.s32.totalorder %v371, 0
      %vm666 = vcmp.ne.s32.totalorder %v400, 0
      %vm667 = vcmp.ne.s32.totalorder %v429, 0
      %vm668 = vcmp.ne.s32.totalorder %v458, 0
      %vm669 = vcmp.ne.s32.totalorder %v487, 0
      %vm670 = vcmp.ne.s32.totalorder %v516, 0
      %vm671 = vcmp.ne.s32.totalorder %v545, 0
      %vm672 = vcmp.ne.s32.totalorder %v574, 0
      %vm673 = vcmp.ne.s32.totalorder %v603, 0
      %vm674 = vcmp.ne.s32.totalorder %v632, 0
      %vm675 = vcmp.ne.s32.totalorder %v661, 0
      %vm676 = vcmp.lt.s32.totalorder %v284, 0
      %vm677 = vcmp.lt.s32.totalorder %v313, 0
      %vm678 = vcmp.lt.s32.totalorder %v342, 0
      %vm679 = vcmp.lt.s32.totalorder %v371, 0
      %vm680 = vcmp.lt.s32.totalorder %v400, 0
      %vm681 = vcmp.lt.s32.totalorder %v429, 0
      %vm682 = vcmp.lt.s32.totalorder %v458, 0
      %vm683 = vcmp.lt.s32.totalorder %v487, 0
      %vm684 = vcmp.lt.s32.totalorder %v516, 0
      %vm685 = vcmp.lt.s32.totalorder %v545, 0
      %vm686 = vcmp.lt.s32.totalorder %v574, 0
      %vm687 = vcmp.lt.s32.totalorder %v603, 0
      %vm688 = vcmp.lt.s32.totalorder %v632, 0
      %vm689 = vcmp.lt.s32.totalorder %v661, 0
      %vm690 = vmand %vm676, %vm662
      %vm691 = vmand %vm677, %vm663
      %vm692 = vmand %vm678, %vm664
      %vm693 = vmand %vm679, %vm665
      %vm694 = vmand %vm680, %vm666
      %vm695 = vmand %vm681, %vm667
      %vm696 = vmand %vm682, %vm668
      %vm697 = vmand %vm683, %vm669
      %vm698 = vmand %vm684, %vm670
      %vm699 = vmand %vm685, %vm671
      %vm700 = vmand %vm686, %vm672
      %vm701 = vmand %vm687, %vm673
      %vm702 = vmand %vm688, %vm674
      %vm703 = vmand %vm689, %vm675
      %v704 = vadd.s32 %v284, 10
      %v705 = vadd.s32 %v313, 10
      %v706 = vadd.s32 %v342, 10
      %v707 = vadd.s32 %v371, 10
      %v708 = vadd.s32 %v400, 10
      %v709 = vadd.s32 %v429, 10
      %v710 = vadd.s32 %v458, 10
      %v711 = vadd.s32 %v487, 10
      %v712 = vadd.s32 %v516, 10
      %v713 = vadd.s32 %v545, 10
      %v714 = vadd.s32 %v574, 10
      %v715 = vadd.s32 %v603, 10
      %v716 = vadd.s32 %v632, 10
      %v717 = vadd.s32 %v661, 10
      %v718 = vsel %vm690, %v704, %v284
      %v719 = vsel %vm691, %v705, %v313
      %v720 = vsel %vm692, %v706, %v342
      %v721 = vsel %vm693, %v707, %v371
      %v722 = vsel %vm694, %v708, %v400
      %v723 = vsel %vm695, %v709, %v429
      %v724 = vsel %vm696, %v710, %v458
      %v725 = vsel %vm697, %v711, %v487
      %v726 = vsel %vm698, %v712, %v516
      %v727 = vsel %vm699, %v713, %v545
      %v728 = vsel %vm700, %v714, %v574
      %v729 = vsel %vm701, %v715, %v603
      %v730 = vsel %vm702, %v716, %v632
      %v731 = vsel %vm703, %v717, %v661
      %vm732 = vcmp.ge.s32.totalorder %v718, 1
      %vm733 = vcmp.ge.s32.totalorder %v719, 1
      %vm734 = vcmp.ge.s32.totalorder %v720, 1
      %vm735 = vcmp.ge.s32.totalorder %v721, 1
      %vm736 = vcmp.ge.s32.totalorder %v722, 1
      %vm737 = vcmp.ge.s32.totalorder %v723, 1
      %vm738 = vcmp.ge.s32.totalorder %v724, 1
      %vm739 = vcmp.ge.s32.totalorder %v725, 1
      %vm740 = vcmp.ge.s32.totalorder %v726, 1
      %vm741 = vcmp.ge.s32.totalorder %v727, 1
      %vm742 = vcmp.ge.s32.totalorder %v728, 1
      %vm743 = vcmp.ge.s32.totalorder %v729, 1
      %vm744 = vcmp.ge.s32.totalorder %v730, 1
      %vm745 = vcmp.ge.s32.totalorder %v731, 1
      %vm746 = vmand %vm242, %vm732
      %vm747 = vmand %vm243, %vm733
      %vm748 = vmand %vm244, %vm734
      %vm749 = vmand %vm245, %vm735
      %vm750 = vmand %vm246, %vm736
      %vm751 = vmand %vm247, %vm737
      %vm752 = vmand %vm248, %vm738
      %vm753 = vmand %vm249, %vm739
      %vm754 = vmand %vm250, %vm740
      %vm755 = vmand %vm251, %vm741
      %vm756 = vmand %vm252, %vm742
      %vm757 = vmand %vm253, %vm743
      %vm758 = vmand %vm254, %vm744
      %vm759 = vmand %vm255, %vm745
      %vm760 = vcmp.le.s32.totalorder %v718, 8
      %vm761 = vcmp.le.s32.totalorder %v719, 8
      %vm762 = vcmp.le.s32.totalorder %v720, 8
      %vm763 = vcmp.le.s32.totalorder %v721, 8
      %vm764 = vcmp.le.s32.totalorder %v722, 8
      %vm765 = vcmp.le.s32.totalorder %v723, 8
      %vm766 = vcmp.le.s32.totalorder %v724, 8
      %vm767 = vcmp.le.s32.totalorder %v725, 8
      %vm768 = vcmp.le.s32.totalorder %v726, 8
      %vm769 = vcmp.le.s32.totalorder %v727, 8
      %vm770 = vcmp.le.s32.totalorder %v728, 8
      %vm771 = vcmp.le.s32.totalorder %v729, 8
      %vm772 = vcmp.le.s32.totalorder %v730, 8
      %vm773 = vcmp.le.s32.totalorder %v731, 8
      %vm774 = vmand %vm746, %vm760
      %vm775 = vmand %vm747, %vm761
      %vm776 = vmand %vm748, %vm762
      %vm777 = vmand %vm749, %vm763
      %vm778 = vmand %vm750, %vm764
      %vm779 = vmand %vm751, %vm765
      %vm780 = vmand %vm752, %vm766
      %vm781 = vmand %vm753, %vm767
      %vm782 = vmand %vm754, %vm768
      %vm783 = vmand %vm755, %vm769
      %vm784 = vmand %vm756, %vm770
      %vm785 = vmand %vm757, %vm771
      %vm786 = vmand %vm758, %vm772
      %vm787 = vmand %vm759, %vm773
      %v788 = vld [vmem:[%s192] sm:$0xf]
      %v789 = vld [vmem:[%s192 + $0x4] sm:$0xf]
      %v790 = vld [vmem:[%s192 + $0x8] sm:$0xf]
      %v791 = vld [vmem:[%s192 + $0xc] sm:$0xf]
      %v792 = vld [vmem:[%s192 + $0x10] sm:$0xf]
      %v793 = vld [vmem:[%s192 + $0x14] sm:$0xf]
      %v794 = vld [vmem:[%s192 + $0x18] sm:$0xf]
      %v795 = vld [vmem:[%s192 + $0x1c] sm:$0xf]
      %v796 = vld [vmem:[%s192 + $0x20] sm:$0xf]
      %v797 = vld [vmem:[%s192 + $0x24] sm:$0xf]
      %v798 = vld [vmem:[%s192 + $0x28] sm:$0xf]
      %v799 = vld [vmem:[%s192 + $0x2c] sm:$0xf]
      %v800 = vld [vmem:[%s192 + $0x30] sm:$0xf]
      %v801 = vld [vmem:[%s192 + $0x34] sm:$0x7]
      %v802 = vunpack.c.l.bf16 %v788
      %v803 = vunpack.c.l.bf16 %v789
      %v804 = vunpack.c.l.bf16 %v790
      %v805 = vunpack.c.l.bf16 %v791
      %v806 = vunpack.c.l.bf16 %v792
      %v807 = vunpack.c.l.bf16 %v793
      %v808 = vunpack.c.l.bf16 %v794
      %v809 = vunpack.c.l.bf16 %v795
      %v810 = vunpack.c.l.bf16 %v796
      %v811 = vunpack.c.l.bf16 %v797
      %v812 = vunpack.c.l.bf16 %v798
      %v813 = vunpack.c.l.bf16 %v799
      %v814 = vunpack.c.l.bf16 %v800
      %v815 = vunpack.c.l.bf16 %v801
      %v816 = vld [vmem:[%s2] sm:$0x1]
      %v818 = vperm.slane %v816, 0
      %v820 = vmul.f32 %v802, %v818
      %v821 = vmul.f32 %v803, %v818
      %v822 = vmul.f32 %v804, %v818
      %v823 = vmul.f32 %v805, %v818
      %v824 = vmul.f32 %v806, %v818
      %v825 = vmul.f32 %v807, %v818
      %v826 = vmul.f32 %v808, %v818
      %v827 = vmul.f32 %v809, %v818
      %v828 = vmul.f32 %v810, %v818
      %v829 = vmul.f32 %v811, %v818
      %v830 = vmul.f32 %v812, %v818
      %v831 = vmul.f32 %v813, %v818
      %v832 = vmul.f32 %v814, %v818
      %v833 = vmul.f32 %v815, %v818
      %v834 = vld [vmem:[%s3] sm:$0x1]
      %v836 = vperm.slane %v834, 0
      %v838 = vadd.f32 %v820, %v836
      %v839 = vadd.f32 %v821, %v836
      %v840 = vadd.f32 %v822, %v836
      %v841 = vadd.f32 %v823, %v836
      %v842 = vadd.f32 %v824, %v836
      %v843 = vadd.f32 %v825, %v836
      %v844 = vadd.f32 %v826, %v836
      %v845 = vadd.f32 %v827, %v836
      %v846 = vadd.f32 %v828, %v836
      %v847 = vadd.f32 %v829, %v836
      %v848 = vadd.f32 %v830, %v836
      %v849 = vadd.f32 %v831, %v836
      %v850 = vadd.f32 %v832, %v836
      %v851 = vadd.f32 %v833, %v836
      %v852 = vmax.f32 %v838, 0.0
      %v853 = vmax.f32 %v839, 0.0
      %v854 = vmax.f32 %v840, 0.0
      %v855 = vmax.f32 %v841, 0.0
      %v856 = vmax.f32 %v842, 0.0
      %v857 = vmax.f32 %v843, 0.0
      %v858 = vmax.f32 %v844, 0.0
      %v859 = vmax.f32 %v845, 0.0
      %v860 = vmax.f32 %v846, 0.0
      %v861 = vmax.f32 %v847, 0.0
      %v862 = vmax.f32 %v848, 0.0
      %v863 = vmax.f32 %v849, 0.0
      %v864 = vmax.f32 %v850, 0.0
      %v865 = vmax.f32 %v851, 0.0
      %v866 = vsel %vm774, 1, 0
      %v867 = vsel %vm775, 1, 0
      %v868 = vsel %vm776, 1, 0
      %v869 = vsel %vm777, 1, 0
      %v870 = vsel %vm778, 1, 0
      %v871 = vsel %vm779, 1, 0
      %v872 = vsel %vm780, 1, 0
      %v873 = vsel %vm781, 1, 0
      %v874 = vsel %vm782, 1, 0
      %v875 = vsel %vm783, 1, 0
      %v876 = vsel %vm784, 1, 0
      %v877 = vsel %vm785, 1, 0
      %v878 = vsel %vm786, 1, 0
      %v879 = vsel %vm787, 1, 0
      %vm880 = vcmp.eq.s32.totalorder %v866, 1
      %vm881 = vcmp.eq.s32.totalorder %v867, 1
      %vm882 = vcmp.eq.s32.totalorder %v868, 1
      %vm883 = vcmp.eq.s32.totalorder %v869, 1
      %vm884 = vcmp.eq.s32.totalorder %v870, 1
      %vm885 = vcmp.eq.s32.totalorder %v871, 1
      %vm886 = vcmp.eq.s32.totalorder %v872, 1
      %vm887 = vcmp.eq.s32.totalorder %v873, 1
      %vm888 = vcmp.eq.s32.totalorder %v874, 1
      %vm889 = vcmp.eq.s32.totalorder %v875, 1
      %vm890 = vcmp.eq.s32.totalorder %v876, 1
      %vm891 = vcmp.eq.s32.totalorder %v877, 1
      %vm892 = vcmp.eq.s32.totalorder %v878, 1
      %vm893 = vcmp.eq.s32.totalorder %v879, 1
      %v894 = vsel %vm880, %v852, 0.0
      %v895 = vsel %vm881, %v853, 0.0
      %v896 = vsel %vm882, %v854, 0.0
      %v897 = vsel %vm883, %v855, 0.0
      %v898 = vsel %vm884, %v856, 0.0
      %v899 = vsel %vm885, %v857, 0.0
      %v900 = vsel %vm886, %v858, 0.0
      %v901 = vsel %vm887, %v859, 0.0
      %v902 = vsel %vm888, %v860, 0.0
      %v903 = vsel %vm889, %v861, 0.0
      %v904 = vsel %vm890, %v862, 0.0
      %v905 = vsel %vm891, %v863, 0.0
      %v906 = vsel %vm892, %v864, 0.0
      %v907 = vsel %vm893, %v865, 0.0
      %v908 = vpack.c.bf16 %v894, %v894
      %v909 = vpack.c.bf16 %v895, %v895
      %v910 = vpack.c.bf16 %v896, %v896
      %v911 = vpack.c.bf16 %v897, %v897
      %v912 = vpack.c.bf16 %v898, %v898
      %v913 = vpack.c.bf16 %v899, %v899
      %v914 = vpack.c.bf16 %v900, %v900
      %v915 = vpack.c.bf16 %v901, %v901
      %v916 = vpack.c.bf16 %v902, %v902
      %v917 = vpack.c.bf16 %v903, %v903
      %v918 = vpack.c.bf16 %v904, %v904
      %v919 = vpack.c.bf16 %v905, %v905
      %v920 = vpack.c.bf16 %v906, %v906
      %v921 = vpack.c.bf16 %v907, %v907
      %vm922 = vcmask 60416
      %923 = vst.msk [vmem:[#allocation2] sm:$0xf] %vm922, %v908
      %924 = vst.msk [vmem:[#allocation2 + $0x4] sm:$0xf] %vm922, %v909
      %925 = vst.msk [vmem:[#allocation2 + $0x8] sm:$0xf] %vm922, %v910
      %926 = vst.msk [vmem:[#allocation2 + $0xc] sm:$0xf] %vm922, %v911
      %927 = vst.msk [vmem:[#allocation2 + $0x10] sm:$0xf] %vm922, %v912
      %928 = vst.msk [vmem:[#allocation2 + $0x14] sm:$0xf] %vm922, %v913
      %929 = vst.msk [vmem:[#allocation2 + $0x18] sm:$0xf] %vm922, %v914
      %930 = vst.msk [vmem:[#allocation2 + $0x1c] sm:$0xf] %vm922, %v915
      %931 = vst.msk [vmem:[#allocation2 + $0x20] sm:$0xf] %vm922, %v916
      %932 = vst.msk [vmem:[#allocation2 + $0x24] sm:$0xf] %vm922, %v917
      %933 = vst.msk [vmem:[#allocation2 + $0x28] sm:$0xf] %vm922, %v918
      %934 = vst.msk [vmem:[#allocation2 + $0x2c] sm:$0xf] %vm922, %v919
      %935 = vst.msk [vmem:[#allocation2 + $0x30] sm:$0xf] %vm922, %v920
      %vm936 = vcmask 59392
      %937 = vst.msk [vmem:[#allocation2 + $0x34] sm:$0x7] %vm936, %v921
      %v938 = vld [vmem:[#allocation2] sm:$0xf]
      %v939 = vld [vmem:[#allocation2 + $0x4] sm:$0xf]
      %v940 = vld [vmem:[#allocation2 + $0x8] sm:$0xf]
      %v941 = vld [vmem:[#allocation2 + $0xc] sm:$0xf]
      %v942 = vld [vmem:[#allocation2 + $0x10] sm:$0xf]
      %v943 = vld [vmem:[#allocation2 + $0x14] sm:$0xf]
      %v944 = vld [vmem:[#allocation2 + $0x18] sm:$0xf]
      %v945 = vld [vmem:[#allocation2 + $0x1c] sm:$0xf]
      %v946 = vld [vmem:[#allocation2 + $0x20] sm:$0xf]
      %v947 = vld [vmem:[#allocation2 + $0x24] sm:$0xf]
      %v948 = vld [vmem:[%s1] sm:$0xf]
      %v949 = vld [vmem:[#allocation2 + $0x28] sm:$0x1]
      %s950 = scalar_lea.vmem %s1, 4
      %v951 = vld [vmem:[%s950] sm:$0xf]
      %v963 = vunpack.c.l.b16 %v938
      %v964 = vunpack.c.l.b16 %v939
      %v965 = vunpack.c.l.b16 %v940
      %v966 = vunpack.c.l.b16 %v941
      %v967 = vunpack.c.l.b16 %v942
      %v968 = vunpack.c.l.b16 %v943
      %v969 = vunpack.c.l.b16 %v944
      %v970 = vunpack.c.l.b16 %v945
      %v971 = vunpack.c.l.b16 %v946
      %v972 = vunpack.c.l.b16 %v947
      %v973 = vunpack.c.l.b16 %v949
      %v974 = vpack.c.b16 %v964, %v963
      %v975 = vpack.c.b16 %v966, %v965
      %v976 = vpack.c.b16 %v968, %v967
      %v977 = vpack.c.b16 %v970, %v969
      %v978 = vpack.c.b16 %v972, %v971
      %v979 = vpack.c.b16 %v973, %v973
      %vm980 = vsmask.f32 7424
      %v982 = vshrl.u32 %v974, 16
      %v984 = vshll.u32 %v974, 16
      %v986 = vrot.slane %v984, 1
      %v987 = vor.u32 %v982, %v986
      %v989 = vshll.u32 %v975, 16
      %v991 = vrot.slane %v989, 1
      %v992 = vsel %vm980, %v987, %v991
      %v993 = vshrl.u32 %v975, 16
      %v995 = vor.u32 %v993, %v991
      %v997 = vshll.u32 %v976, 16
      %v999 = vrot.slane %v997, 1
      %v1000 = vsel %vm980, %v995, %v999
      %v1001 = vshrl.u32 %v976, 16
      %v1003 = vor.u32 %v1001, %v999
      %v1005 = vshll.u32 %v977, 16
      %v1007 = vrot.slane %v1005, 1
      %v1008 = vsel %vm980, %v1003, %v1007
      %v1009 = vshrl.u32 %v977, 16
      %v1011 = vor.u32 %v1009, %v1007
      %v1013 = vshll.u32 %v978, 16
      %v1015 = vrot.slane %v1013, 1
      %v1016 = vsel %vm980, %v1011, %v1015
      %v1017 = vshrl.u32 %v978, 16
      %v1019 = vor.u32 %v1017, %v1015
      %v1021 = vshll.u32 %v979, 16
      %v1023 = vrot.slane %v1021, 1
      %v1024 = vsel %vm980, %v1019, %v1023
      %vm1025 = vcmask 64512
      %v1027 = vsel %vm1025, %v992, 0
      %v1030 = vsel %vm1025, %v1000, 0
      %v1033 = vsel %vm1025, %v1008, 0
      %v1036 = vsel %vm1025, %v1016, 0
      %v1039 = vsel %vm1025, %v1024, 0
      %vm1041 = vcmask 1043456
      %v1043 = vsel %vm1041, %v951, 0
      %1045 = vmatpush.bf16.msra.mxu0 0
      %1046 = vmatpush.bf16.msra.mxu0 0
      %1047 = vmatpush.bf16.msra.mxu0 0
      %1048 = vmatpush.bf16.msra.mxu0 0
      %1049 = vmatpush.bf16.msra.mxu0 0
      %1050 = vmatpush.bf16.msra.mxu0 0
      %1051 = vmatpush.bf16.msra.mxu0 0
      %1052 = vmatpush.bf16.msra.mxu0 %v1043
      %1053 = vmatmul.bf16.gmra.mxu0 %v1027
      %v1054 = vpop.f32.mrf.mxu0
      %v1055 = vadd.f32 0.0, %v1054
      %v1056 = vpop.f32.mrf.mxu0
      %v1057 = vadd.f32 0.0, %v1056
      %1058 = vmatmul.bf16.gmra.mxu0 %v1030
      %v1059 = vpop.f32.mrf.mxu0
      %v1060 = vadd.f32 0.0, %v1059
      %v1061 = vpop.f32.mrf.mxu0
      %v1062 = vadd.f32 0.0, %v1061
      %1063 = vmatmul.bf16.gmra.mxu0 %v1033
      %v1064 = vpop.f32.mrf.mxu0
      %v1065 = vadd.f32 0.0, %v1064
      %v1066 = vpop.f32.mrf.mxu0
      %v1067 = vadd.f32 0.0, %v1066
      %1068 = vmatmul.bf16.gmra.mxu0 %v1036
      %v1069 = vpop.f32.mrf.mxu0
      %v1070 = vadd.f32 0.0, %v1069
      %v1071 = vpop.f32.mrf.mxu0
      %v1072 = vadd.f32 0.0, %v1071
      %1073 = vmatmul.bf16.gmra.mxu0 %v1039
      %v1074 = vpop.f32.mrf.mxu0
      %v1075 = vadd.f32 0.0, %v1074
      %v1076 = vpop.f32.mrf.mxu0
      %v1077 = vadd.f32 0.0, %v1076
      %1078 = vdwg.mxu0
      %v1079 = vsel %vm1025, %v974, 0
      %v1081 = vsel %vm1025, %v975, 0
      %v1083 = vsel %vm1025, %v976, 0
      %v1085 = vsel %vm1025, %v977, 0
      %v1087 = vsel %vm1025, %v978, 0
      %v1090 = vsel %vm1041, %v948, 0
      %1092 = vmatpush.bf16.msra.mxu0 0
      %1093 = vmatpush.bf16.msra.mxu0 0
      %1094 = vmatpush.bf16.msra.mxu0 0
      %1095 = vmatpush.bf16.msra.mxu0 0
      %1096 = vmatpush.bf16.msra.mxu0 0
      %1097 = vmatpush.bf16.msra.mxu0 0
      %1098 = vmatpush.bf16.msra.mxu0 0
      %1099 = vmatpush.bf16.msra.mxu0 %v1090
      %1100 = vmatmul.bf16.gmra.mxu0 %v1079
      %v1101 = vpop.f32.mrf.mxu0
      %v1102 = vadd.f32 %v1055, %v1101
      %v1103 = vpop.f32.mrf.mxu0
      %v1104 = vadd.f32 %v1057, %v1103
      %1105 = vmatmul.bf16.gmra.mxu0 %v1081
      %v1106 = vpop.f32.mrf.mxu0
      %v1107 = vadd.f32 %v1060, %v1106
      %v1108 = vpop.f32.mrf.mxu0
      %v1109 = vadd.f32 %v1062, %v1108
      %1110 = vmatmul.bf16.gmra.mxu0 %v1083
      %v1111 = vpop.f32.mrf.mxu0
      %v1112 = vadd.f32 %v1065, %v1111
      %v1113 = vpop.f32.mrf.mxu0
      %v1114 = vadd.f32 %v1067, %v1113
      %1115 = vmatmul.bf16.gmra.mxu0 %v1085
      %v1116 = vpop.f32.mrf.mxu0
      %v1117 = vadd.f32 %v1070, %v1116
      %v1118 = vpop.f32.mrf.mxu0
      %v1119 = vadd.f32 %v1072, %v1118
      %1120 = vmatmul.bf16.gmra.mxu0 %v1087
      %v1121 = vpop.f32.mrf.mxu0
      %v1122 = vadd.f32 %v1075, %v1121
      %v1123 = vpop.f32.mrf.mxu0
      %v1124 = vadd.f32 %v1077, %v1123
      %1125 = vdwg.mxu0
      %v1126 = vld [vmem:[#allocation2] sm:$0xe]
      %s1127 = scalar_lea.vmem %s1, 8
      %v1128 = vld [vmem:[%s1127] sm:$0xf]
      %v1130 = vunpack.c.l.b16 %v1126
      %v1131 = vpack.c.b16 %v964, %v1130
      %vm1132 = vcmask 1046528
      %v1133 = vrot.slane %v1131, 1
      %v1134 = vrot.slane %v975, 1
      %v1135 = vsel %vm1132, %v1133, %v1134
      %v1136 = vrot.slane %v976, 1
      %v1137 = vsel %vm1132, %v1134, %v1136
      %v1138 = vrot.slane %v977, 1
      %v1139 = vsel %vm1132, %v1136, %v1138
      %v1140 = vrot.slane %v978, 1
      %v1141 = vsel %vm1132, %v1138, %v1140
      %v1142 = vrot.slane %v979, 1
      %v1143 = vsel %vm1132, %v1140, %v1142
      %v1145 = vsel %vm1025, %v1135, 0
      %v1148 = vsel %vm1025, %v1137, 0
      %v1151 = vsel %vm1025, %v1139, 0
      %v1154 = vsel %vm1025, %v1141, 0
      %v1157 = vsel %vm1025, %v1143, 0
      %v1160 = vsel %vm1041, %v1128, 0
      %1162 = vmatpush.bf16.msra.mxu0 0
      %1163 = vmatpush.bf16.msra.mxu0 0
      %1164 = vmatpush.bf16.msra.mxu0 0
      %1165 = vmatpush.bf16.msra.mxu0 0
      %1166 = vmatpush.bf16.msra.mxu0 0
      %1167 = vmatpush.bf16.msra.mxu0 0
      %1168 = vmatpush.bf16.msra.mxu0 0
      %1169 = vmatpush.bf16.msra.mxu0 %v1160
      %1170 = vmatmul.bf16.gmra.mxu0 %v1145
      %v1171 = vpop.f32.mrf.mxu0
      %v1172 = vadd.f32 0.0, %v1171
      %v1173 = vpop.f32.mrf.mxu0
      %v1174 = vadd.f32 0.0, %v1173
      %1175 = vmatmul.bf16.gmra.mxu0 %v1148
      %v1176 = vpop.f32.mrf.mxu0
      %v1177 = vadd.f32 0.0, %v1176
      %v1178 = vpop.f32.mrf.mxu0
      %v1179 = vadd.f32 0.0, %v1178
      %1180 = vmatmul.bf16.gmra.mxu0 %v1151
      %v1181 = vpop.f32.mrf.mxu0
      %v1182 = vadd.f32 0.0, %v1181
      %v1183 = vpop.f32.mrf.mxu0
      %v1184 = vadd.f32 0.0, %v1183
      %1185 = vmatmul.bf16.gmra.mxu0 %v1154
      %v1186 = vpop.f32.mrf.mxu0
      %v1187 = vadd.f32 0.0, %v1186
      %v1188 = vpop.f32.mrf.mxu0
      %v1189 = vadd.f32 0.0, %v1188
      %1190 = vmatmul.bf16.gmra.mxu0 %v1157
      %v1191 = vpop.f32.mrf.mxu0
      %v1192 = vadd.f32 0.0, %v1191
      %v1193 = vpop.f32.mrf.mxu0
      %v1194 = vadd.f32 0.0, %v1193
      %1195 = vdwg.mxu0
      %v1196 = vadd.f32 %v1102, %v1172
      %v1197 = vadd.f32 %v1104, %v1174
      %v1198 = vadd.f32 %v1107, %v1177
      %v1199 = vadd.f32 %v1109, %v1179
      %v1200 = vadd.f32 %v1112, %v1182
      %v1201 = vadd.f32 %v1114, %v1184
      %v1202 = vadd.f32 %v1117, %v1187
      %v1203 = vadd.f32 %v1119, %v1189
      %v1204 = vadd.f32 %v1122, %v1192
      %v1205 = vadd.f32 %v1124, %v1194
      %v1206 = vld [vmem:[#allocation2 + $0x4] sm:$0xe]
      %v1207 = vld [vmem:[#allocation2 + $0x8] sm:$0xf]
      %v1208 = vld [vmem:[#allocation2 + $0xc] sm:$0xf]
      %v1209 = vld [vmem:[#allocation2 + $0x10] sm:$0xf]
      %v1210 = vld [vmem:[#allocation2 + $0x14] sm:$0xf]
      %v1211 = vld [vmem:[#allocation2 + $0x18] sm:$0xf]
      %v1212 = vld [vmem:[#allocation2 + $0x1c] sm:$0xf]
      %v1213 = vld [vmem:[#allocation2 + $0x20] sm:$0xf]
      %v1214 = vld [vmem:[#allocation2 + $0x24] sm:$0xf]
      %v1215 = vld [vmem:[#allocation2 + $0x28] sm:$0xf]
      %v1216 = vld [vmem:[#allocation2 + $0x2c] sm:$0x1]
      %s1217 = scalar_lea.vmem %s1, 12
      %v1218 = vld [vmem:[%s1217] sm:$0xf]
      %v1230 = vunpack.c.l.b16 %v1206
      %v1231 = vunpack.c.l.b16 %v1207
      %v1232 = vunpack.c.l.b16 %v1208
      %v1233 = vunpack.c.l.b16 %v1209
      %v1234 = vunpack.c.l.b16 %v1210
      %v1235 = vunpack.c.l.b16 %v1211
      %v1236 = vunpack.c.l.b16 %v1212
      %v1237 = vunpack.c.l.b16 %v1213
      %v1238 = vunpack.c.l.b16 %v1214
      %v1239 = vunpack.c.l.b16 %v1215
      %v1240 = vunpack.c.l.b16 %v1216
      %v1241 = vpack.c.b16 %v1231, %v1230
      %v1242 = vpack.c.b16 %v1233, %v1232
      %v1243 = vpack.c.b16 %v1235, %v1234
      %v1244 = vpack.c.b16 %v1237, %v1236
      %v1245 = vpack.c.b16 %v1239, %v1238
      %v1246 = vpack.c.b16 %v1240, %v1240
      %v1247 = vrot.slane %v1241, 1
      %v1248 = vrot.slane %v1242, 1
      %v1249 = vsel %vm1132, %v1247, %v1248
      %v1250 = vrot.slane %v1243, 1
      %v1251 = vsel %vm1132, %v1248, %v1250
      %v1252 = vrot.slane %v1244, 1
      %v1253 = vsel %vm1132, %v1250, %v1252
      %v1254 = vrot.slane %v1245, 1
      %v1255 = vsel %vm1132, %v1252, %v1254
      %v1256 = vrot.slane %v1246, 1
      %v1257 = vsel %vm1132, %v1254, %v1256
      %v1259 = vsel %vm1025, %v1249, 0
      %v1262 = vsel %vm1025, %v1251, 0
      %v1265 = vsel %vm1025, %v1253, 0
      %v1268 = vsel %vm1025, %v1255, 0
      %v1271 = vsel %vm1025, %v1257, 0
      %v1274 = vsel %vm1041, %v1218, 0
      %1276 = vmatpush.bf16.msra.mxu0 0
      %1277 = vmatpush.bf16.msra.mxu0 0
      %1278 = vmatpush.bf16.msra.mxu0 0
      %1279 = vmatpush.bf16.msra.mxu0 0
      %1280 = vmatpush.bf16.msra.mxu0 0
      %1281 = vmatpush.bf16.msra.mxu0 0
      %1282 = vmatpush.bf16.msra.mxu0 0
      %1283 = vmatpush.bf16.msra.mxu0 %v1274
      %1284 = vmatmul.bf16.gmra.mxu0 %v1259
      %v1285 = vpop.f32.mrf.mxu0
      %v1286 = vadd.f32 0.0, %v1285
      %v1287 = vpop.f32.mrf.mxu0
      %v1288 = vadd.f32 0.0, %v1287
      %1289 = vmatmul.bf16.gmra.mxu0 %v1262
      %v1290 = vpop.f32.mrf.mxu0
      %v1291 = vadd.f32 0.0, %v1290
      %v1292 = vpop.f32.mrf.mxu0
      %v1293 = vadd.f32 0.0, %v1292
      %1294 = vmatmul.bf16.gmra.mxu0 %v1265
      %v1295 = vpop.f32.mrf.mxu0
      %v1296 = vadd.f32 0.0, %v1295
      %v1297 = vpop.f32.mrf.mxu0
      %v1298 = vadd.f32 0.0, %v1297
      %1299 = vmatmul.bf16.gmra.mxu0 %v1268
      %v1300 = vpop.f32.mrf.mxu0
      %v1301 = vadd.f32 0.0, %v1300
      %v1302 = vpop.f32.mrf.mxu0
      %v1303 = vadd.f32 0.0, %v1302
      %1304 = vmatmul.bf16.gmra.mxu0 %v1271
      %v1305 = vpop.f32.mrf.mxu0
      %v1306 = vadd.f32 0.0, %v1305
      %v1307 = vpop.f32.mrf.mxu0
      %v1308 = vadd.f32 0.0, %v1307
      %1309 = vdwg.mxu0
      %v1310 = vadd.f32 %v1196, %v1286
      %v1311 = vadd.f32 %v1197, %v1288
      %v1312 = vadd.f32 %v1198, %v1291
      %v1313 = vadd.f32 %v1199, %v1293
      %v1314 = vadd.f32 %v1200, %v1296
      %v1315 = vadd.f32 %v1201, %v1298
      %v1316 = vadd.f32 %v1202, %v1301
      %v1317 = vadd.f32 %v1203, %v1303
      %v1318 = vadd.f32 %v1204, %v1306
      %v1319 = vadd.f32 %v1205, %v1308
      %v1320 = vld [vmem:[#allocation2 + $0x2c] sm:$0x3]
      %s1321 = scalar_lea.vmem %s1, 16
      %v1322 = vld [vmem:[%s1321] sm:$0xf]
      %v1324 = vunpack.c.l.b16 %v1320
      %v1325 = vpack.c.b16 %v1324, %v1324
      %vm1326 = vsmask.f32 6400
      %v1328 = vshrl.u32 %v1241, 16
      %v1330 = vrot.slane %v1328, 1
      %v1331 = vshll.u32 %v1241, 16
      %v1333 = vrot.slane %v1331, 2
      %v1334 = vor.u32 %v1330, %v1333
      %v1336 = vshrl.u32 %v1242, 16
      %v1338 = vrot.slane %v1336, 1
      %v1339 = vshll.u32 %v1242, 16
      %v1341 = vrot.slane %v1339, 2
      %v1342 = vor.u32 %v1338, %v1341
      %v1343 = vsel %vm1326, %v1334, %v1342
      %v1345 = vshrl.u32 %v1243, 16
      %v1347 = vrot.slane %v1345, 1
      %v1348 = vshll.u32 %v1243, 16
      %v1350 = vrot.slane %v1348, 2
      %v1351 = vor.u32 %v1347, %v1350
      %v1352 = vsel %vm1326, %v1342, %v1351
      %v1354 = vshrl.u32 %v1244, 16
      %v1356 = vrot.slane %v1354, 1
      %v1357 = vshll.u32 %v1244, 16
      %v1359 = vrot.slane %v1357, 2
      %v1360 = vor.u32 %v1356, %v1359
      %v1361 = vsel %vm1326, %v1351, %v1360
      %v1363 = vshrl.u32 %v1245, 16
      %v1365 = vrot.slane %v1363, 1
      %v1366 = vshll.u32 %v1245, 16
      %v1368 = vrot.slane %v1366, 2
      %v1369 = vor.u32 %v1365, %v1368
      %v1370 = vsel %vm1326, %v1360, %v1369
      %v1372 = vshrl.u32 %v1325, 16
      %v1374 = vrot.slane %v1372, 1
      %v1375 = vshll.u32 %v1325, 16
      %v1377 = vrot.slane %v1375, 2
      %v1378 = vor.u32 %v1374, %v1377
      %v1379 = vsel %vm1326, %v1369, %v1378
      %v1381 = vsel %vm1025, %v1343, 0
      %v1384 = vsel %vm1025, %v1352, 0
      %v1387 = vsel %vm1025, %v1361, 0
      %v1390 = vsel %vm1025, %v1370, 0
      %v1393 = vsel %vm1025, %v1379, 0
      %v1396 = vsel %vm1041, %v1322, 0
      %1398 = vmatpush.bf16.msra.mxu0 0
      %1399 = vmatpush.bf16.msra.mxu0 0
      %1400 = vmatpush.bf16.msra.mxu0 0
      %1401 = vmatpush.bf16.msra.mxu0 0
      %1402 = vmatpush.bf16.msra.mxu0 0
      %1403 = vmatpush.bf16.msra.mxu0 0
      %1404 = vmatpush.bf16.msra.mxu0 0
      %1405 = vmatpush.bf16.msra.mxu0 %v1396
      %1406 = vmatmul.bf16.gmra.mxu0 %v1381
      %v1407 = vpop.f32.mrf.mxu0
      %v1408 = vadd.f32 0.0, %v1407
      %v1409 = vpop.f32.mrf.mxu0
      %v1410 = vadd.f32 0.0, %v1409
      %1411 = vmatmul.bf16.gmra.mxu0 %v1384
      %v1412 = vpop.f32.mrf.mxu0
      %v1413 = vadd.f32 0.0, %v1412
      %v1414 = vpop.f32.mrf.mxu0
      %v1415 = vadd.f32 0.0, %v1414
      %1416 = vmatmul.bf16.gmra.mxu0 %v1387
      %v1417 = vpop.f32.mrf.mxu0
      %v1418 = vadd.f32 0.0, %v1417
      %v1419 = vpop.f32.mrf.mxu0
      %v1420 = vadd.f32 0.0, %v1419
      %1421 = vmatmul.bf16.gmra.mxu0 %v1390
      %v1422 = vpop.f32.mrf.mxu0
      %v1423 = vadd.f32 0.0, %v1422
      %v1424 = vpop.f32.mrf.mxu0
      %v1425 = vadd.f32 0.0, %v1424
      %1426 = vmatmul.bf16.gmra.mxu0 %v1393
      %v1427 = vpop.f32.mrf.mxu0
      %v1428 = vadd.f32 0.0, %v1427
      %v1429 = vpop.f32.mrf.mxu0
      %v1430 = vadd.f32 0.0, %v1429
      %1431 = vdwg.mxu0
      %v1432 = vadd.f32 %v1310, %v1408
      %v1433 = vadd.f32 %v1311, %v1410
      %v1434 = vadd.f32 %v1312, %v1413
      %v1435 = vadd.f32 %v1313, %v1415
      %v1436 = vadd.f32 %v1314, %v1418
      %v1437 = vadd.f32 %v1315, %v1420
      %v1438 = vadd.f32 %v1316, %v1423
      %v1439 = vadd.f32 %v1317, %v1425
      %v1440 = vadd.f32 %v1318, %v1428
      %v1441 = vadd.f32 %v1319, %v1430
      %v1442 = vld [vmem:[#allocation2 + $0x4] sm:$0xc]
      %s1443 = scalar_lea.vmem %s1, 20
      %v1444 = vld [vmem:[%s1443] sm:$0xf]
      %v1446 = vunpack.c.l.b16 %v1442
      %v1447 = vpack.c.b16 %v1231, %v1446
      %vm1448 = vcmask 1045504
      %v1449 = vrot.slane %v1447, 2
      %v1450 = vrot.slane %v1242, 2
      %v1451 = vsel %vm1448, %v1449, %v1450
      %v1452 = vrot.slane %v1243, 2
      %v1453 = vsel %vm1448, %v1450, %v1452
      %v1454 = vrot.slane %v1244, 2
      %v1455 = vsel %vm1448, %v1452, %v1454
      %v1456 = vrot.slane %v1245, 2
      %v1457 = vsel %vm1448, %v1454, %v1456
      %v1458 = vrot.slane %v1325, 2
      %v1459 = vsel %vm1448, %v1456, %v1458
      %v1461 = vsel %vm1025, %v1451, 0
      %v1464 = vsel %vm1025, %v1453, 0
      %v1467 = vsel %vm1025, %v1455, 0
      %v1470 = vsel %vm1025, %v1457, 0
      %v1473 = vsel %vm1025, %v1459, 0
      %v1476 = vsel %vm1041, %v1444, 0
      %1478 = vmatpush.bf16.msra.mxu0 0
      %1479 = vmatpush.bf16.msra.mxu0 0
      %1480 = vmatpush.bf16.msra.mxu0 0
      %1481 = vmatpush.bf16.msra.mxu0 0
      %1482 = vmatpush.bf16.msra.mxu0 0
      %1483 = vmatpush.bf16.msra.mxu0 0
      %1484 = vmatpush.bf16.msra.mxu0 0
      %1485 = vmatpush.bf16.msra.mxu0 %v1476
      %1486 = vmatmul.bf16.gmra.mxu0 %v1461
      %v1487 = vpop.f32.mrf.mxu0
      %v1488 = vadd.f32 0.0, %v1487
      %v1489 = vpop.f32.mrf.mxu0
      %v1490 = vadd.f32 0.0, %v1489
      %1491 = vmatmul.bf16.gmra.mxu0 %v1464
      %v1492 = vpop.f32.mrf.mxu0
      %v1493 = vadd.f32 0.0, %v1492
      %v1494 = vpop.f32.mrf.mxu0
      %v1495 = vadd.f32 0.0, %v1494
      %1496 = vmatmul.bf16.gmra.mxu0 %v1467
      %v1497 = vpop.f32.mrf.mxu0
      %v1498 = vadd.f32 0.0, %v1497
      %v1499 = vpop.f32.mrf.mxu0
      %v1500 = vadd.f32 0.0, %v1499
      %1501 = vmatmul.bf16.gmra.mxu0 %v1470
      %v1502 = vpop.f32.mrf.mxu0
      %v1503 = vadd.f32 0.0, %v1502
      %v1504 = vpop.f32.mrf.mxu0
      %v1505 = vadd.f32 0.0, %v1504
      %1506 = vmatmul.bf16.gmra.mxu0 %v1473
      %v1507 = vpop.f32.mrf.mxu0
      %v1508 = vadd.f32 0.0, %v1507
      %v1509 = vpop.f32.mrf.mxu0
      %v1510 = vadd.f32 0.0, %v1509
      %1511 = vdwg.mxu0
      %v1512 = vadd.f32 %v1432, %v1488
      %v1513 = vadd.f32 %v1433, %v1490
      %v1514 = vadd.f32 %v1434, %v1493
      %v1515 = vadd.f32 %v1435, %v1495
      %v1516 = vadd.f32 %v1436, %v1498
      %v1517 = vadd.f32 %v1437, %v1500
      %v1518 = vadd.f32 %v1438, %v1503
      %v1519 = vadd.f32 %v1439, %v1505
      %v1520 = vadd.f32 %v1440, %v1508
      %v1521 = vadd.f32 %v1441, %v1510
      %v1522 = vld [vmem:[#allocation2 + $0x8] sm:$0xc]
      %v1523 = vld [vmem:[#allocation2 + $0xc] sm:$0xf]
      %v1524 = vld [vmem:[#allocation2 + $0x10] sm:$0xf]
      %v1525 = vld [vmem:[#allocation2 + $0x14] sm:$0xf]
      %v1526 = vld [vmem:[#allocation2 + $0x18] sm:$0xf]
      %v1527 = vld [vmem:[#allocation2 + $0x1c] sm:$0xf]
      %v1528 = vld [vmem:[#allocation2 + $0x20] sm:$0xf]
      %v1529 = vld [vmem:[#allocation2 + $0x24] sm:$0xf]
      %v1530 = vld [vmem:[#allocation2 + $0x28] sm:$0xf]
      %v1531 = vld [vmem:[#allocation2 + $0x2c] sm:$0xf]
      %v1532 = vld [vmem:[#allocation2 + $0x30] sm:$0x3]
      %s1533 = scalar_lea.vmem %s1, 24
      %v1534 = vld [vmem:[%s1533] sm:$0xf]
      %v1546 = vunpack.c.l.b16 %v1522
      %v1547 = vunpack.c.l.b16 %v1523
      %v1548 = vunpack.c.l.b16 %v1524
      %v1549 = vunpack.c.l.b16 %v1525
      %v1550 = vunpack.c.l.b16 %v1526
      %v1551 = vunpack.c.l.b16 %v1527
      %v1552 = vunpack.c.l.b16 %v1528
      %v1553 = vunpack.c.l.b16 %v1529
      %v1554 = vunpack.c.l.b16 %v1530
      %v1555 = vunpack.c.l.b16 %v1531
      %v1556 = vunpack.c.l.b16 %v1532
      %v1557 = vpack.c.b16 %v1547, %v1546
      %v1558 = vpack.c.b16 %v1549, %v1548
      %v1559 = vpack.c.b16 %v1551, %v1550
      %v1560 = vpack.c.b16 %v1553, %v1552
      %v1561 = vpack.c.b16 %v1555, %v1554
      %v1562 = vpack.c.b16 %v1556, %v1556
      %v1563 = vrot.slane %v1557, 2
      %v1564 = vrot.slane %v1558, 2
      %v1565 = vsel %vm1448, %v1563, %v1564
      %v1566 = vrot.slane %v1559, 2
      %v1567 = vsel %vm1448, %v1564, %v1566
      %v1568 = vrot.slane %v1560, 2
      %v1569 = vsel %vm1448, %v1566, %v1568
      %v1570 = vrot.slane %v1561, 2
      %v1571 = vsel %vm1448, %v1568, %v1570
      %v1572 = vrot.slane %v1562, 2
      %v1573 = vsel %vm1448, %v1570, %v1572
      %v1575 = vsel %vm1025, %v1565, 0
      %v1578 = vsel %vm1025, %v1567, 0
      %v1581 = vsel %vm1025, %v1569, 0
      %v1584 = vsel %vm1025, %v1571, 0
      %v1587 = vsel %vm1025, %v1573, 0
      %v1590 = vsel %vm1041, %v1534, 0
      %1592 = vmatpush.bf16.msra.mxu0 0
      %1593 = vmatpush.bf16.msra.mxu0 0
      %1594 = vmatpush.bf16.msra.mxu0 0
      %1595 = vmatpush.bf16.msra.mxu0 0
      %1596 = vmatpush.bf16.msra.mxu0 0
      %1597 = vmatpush.bf16.msra.mxu0 0
      %1598 = vmatpush.bf16.msra.mxu0 0
      %1599 = vmatpush.bf16.msra.mxu0 %v1590
      %1600 = vmatmul.bf16.gmra.mxu0 %v1575
      %v1601 = vpop.f32.mrf.mxu0
      %v1602 = vadd.f32 0.0, %v1601
      %v1603 = vpop.f32.mrf.mxu0
      %v1604 = vadd.f32 0.0, %v1603
      %1605 = vmatmul.bf16.gmra.mxu0 %v1578
      %v1606 = vpop.f32.mrf.mxu0
      %v1607 = vadd.f32 0.0, %v1606
      %v1608 = vpop.f32.mrf.mxu0
      %v1609 = vadd.f32 0.0, %v1608
      %1610 = vmatmul.bf16.gmra.mxu0 %v1581
      %v1611 = vpop.f32.mrf.mxu0
      %v1612 = vadd.f32 0.0, %v1611
      %v1613 = vpop.f32.mrf.mxu0
      %v1614 = vadd.f32 0.0, %v1613
      %1615 = vmatmul.bf16.gmra.mxu0 %v1584
      %v1616 = vpop.f32.mrf.mxu0
      %v1617 = vadd.f32 0.0, %v1616
      %v1618 = vpop.f32.mrf.mxu0
      %v1619 = vadd.f32 0.0, %v1618
      %1620 = vmatmul.bf16.gmra.mxu0 %v1587
      %v1621 = vpop.f32.mrf.mxu0
      %v1622 = vadd.f32 0.0, %v1621
      %v1623 = vpop.f32.mrf.mxu0
      %v1624 = vadd.f32 0.0, %v1623
      %1625 = vdwg.mxu0
      %v1626 = vadd.f32 %v1512, %v1602
      %v1627 = vadd.f32 %v1513, %v1604
      %v1628 = vadd.f32 %v1514, %v1607
      %v1629 = vadd.f32 %v1515, %v1609
      %v1630 = vadd.f32 %v1516, %v1612
      %v1631 = vadd.f32 %v1517, %v1614
      %v1632 = vadd.f32 %v1518, %v1617
      %v1633 = vadd.f32 %v1519, %v1619
      %v1634 = vadd.f32 %v1520, %v1622
      %v1635 = vadd.f32 %v1521, %v1624
      %v1636 = vld [vmem:[#allocation2 + $0x30] sm:$0x7]
      %s1637 = scalar_lea.vmem %s1, 28
      %v1638 = vld [vmem:[%s1637] sm:$0xf]
      %v1640 = vunpack.c.l.b16 %v1636
      %v1641 = vpack.c.b16 %v1640, %v1640
      %vm1642 = vsmask.f32 5376
      %v1644 = vshrl.u32 %v1557, 16
      %v1646 = vrot.slane %v1644, 2
      %v1647 = vshll.u32 %v1557, 16
      %v1649 = vrot.slane %v1647, 3
      %v1650 = vor.u32 %v1646, %v1649
      %v1652 = vshrl.u32 %v1558, 16
      %v1654 = vrot.slane %v1652, 2
      %v1655 = vshll.u32 %v1558, 16
      %v1657 = vrot.slane %v1655, 3
      %v1658 = vor.u32 %v1654, %v1657
      %v1659 = vsel %vm1642, %v1650, %v1658
      %v1661 = vshrl.u32 %v1559, 16
      %v1663 = vrot.slane %v1661, 2
      %v1664 = vshll.u32 %v1559, 16
      %v1666 = vrot.slane %v1664, 3
      %v1667 = vor.u32 %v1663, %v1666
      %v1668 = vsel %vm1642, %v1658, %v1667
      %v1670 = vshrl.u32 %v1560, 16
      %v1672 = vrot.slane %v1670, 2
      %v1673 = vshll.u32 %v1560, 16
      %v1675 = vrot.slane %v1673, 3
      %v1676 = vor.u32 %v1672, %v1675
      %v1677 = vsel %vm1642, %v1667, %v1676
      %v1679 = vshrl.u32 %v1561, 16
      %v1681 = vrot.slane %v1679, 2
      %v1682 = vshll.u32 %v1561, 16
      %v1684 = vrot.slane %v1682, 3
      %v1685 = vor.u32 %v1681, %v1684
      %v1686 = vsel %vm1642, %v1676, %v1685
      %v1688 = vshrl.u32 %v1641, 16
      %v1690 = vrot.slane %v1688, 2
      %v1691 = vshll.u32 %v1641, 16
      %v1693 = vrot.slane %v1691, 3
      %v1694 = vor.u32 %v1690, %v1693
      %v1695 = vsel %vm1642, %v1685, %v1694
      %v1697 = vsel %vm1025, %v1659, 0
      %v1700 = vsel %vm1025, %v1668, 0
      %v1703 = vsel %vm1025, %v1677, 0
      %v1706 = vsel %vm1025, %v1686, 0
      %v1709 = vsel %vm1025, %v1695, 0
      %v1712 = vsel %vm1041, %v1638, 0
      %1714 = vmatpush.bf16.msra.mxu0 0
      %1715 = vmatpush.bf16.msra.mxu0 0
      %1716 = vmatpush.bf16.msra.mxu0 0
      %1717 = vmatpush.bf16.msra.mxu0 0
      %1718 = vmatpush.bf16.msra.mxu0 0
      %1719 = vmatpush.bf16.msra.mxu0 0
      %1720 = vmatpush.bf16.msra.mxu0 0
      %1721 = vmatpush.bf16.msra.mxu0 %v1712
      %1722 = vmatmul.bf16.gmra.mxu0 %v1697
      %v1723 = vpop.f32.mrf.mxu0
      %v1724 = vadd.f32 0.0, %v1723
      %v1725 = vpop.f32.mrf.mxu0
      %v1726 = vadd.f32 0.0, %v1725
      %1727 = vmatmul.bf16.gmra.mxu0 %v1700
      %v1728 = vpop.f32.mrf.mxu0
      %v1729 = vadd.f32 0.0, %v1728
      %v1730 = vpop.f32.mrf.mxu0
      %v1731 = vadd.f32 0.0, %v1730
      %1732 = vmatmul.bf16.gmra.mxu0 %v1703
      %v1733 = vpop.f32.mrf.mxu0
      %v1734 = vadd.f32 0.0, %v1733
      %v1735 = vpop.f32.mrf.mxu0
      %v1736 = vadd.f32 0.0, %v1735
      %1737 = vmatmul.bf16.gmra.mxu0 %v1706
      %v1738 = vpop.f32.mrf.mxu0
      %v1739 = vadd.f32 0.0, %v1738
      %v1740 = vpop.f32.mrf.mxu0
      %v1741 = vadd.f32 0.0, %v1740
      %1742 = vmatmul.bf16.gmra.mxu0 %v1709
      %v1743 = vpop.f32.mrf.mxu0
      %v1744 = vadd.f32 0.0, %v1743
      %v1745 = vpop.f32.mrf.mxu0
      %v1746 = vadd.f32 0.0, %v1745
      %1747 = vdwg.mxu0
      %v1748 = vadd.f32 %v1626, %v1724
      %v1749 = vadd.f32 %v1627, %v1726
      %v1750 = vadd.f32 %v1628, %v1729
      %v1751 = vadd.f32 %v1629, %v1731
      %v1752 = vadd.f32 %v1630, %v1734
      %v1753 = vadd.f32 %v1631, %v1736
      %v1754 = vadd.f32 %v1632, %v1739
      %v1755 = vadd.f32 %v1633, %v1741
      %v1756 = vadd.f32 %v1634, %v1744
      %v1757 = vadd.f32 %v1635, %v1746
      %v1758 = vld [vmem:[#allocation2 + $0x8] sm:$0x8]
      %s1759 = scalar_lea.vmem %s1, 32
      %v1760 = vld [vmem:[%s1759] sm:$0xf]
      %v1762 = vunpack.c.l.b16 %v1758
      %v1763 = vpack.c.b16 %v1547, %v1762
      %vm1764 = vcmask 1044480
      %v1765 = vrot.slane %v1763, 3
      %v1766 = vrot.slane %v1558, 3
      %v1767 = vsel %vm1764, %v1765, %v1766
      %v1768 = vrot.slane %v1559, 3
      %v1769 = vsel %vm1764, %v1766, %v1768
      %v1770 = vrot.slane %v1560, 3
      %v1771 = vsel %vm1764, %v1768, %v1770
      %v1772 = vrot.slane %v1561, 3
      %v1773 = vsel %vm1764, %v1770, %v1772
      %v1774 = vrot.slane %v1641, 3
      %v1775 = vsel %vm1764, %v1772, %v1774
      %v1777 = vsel %vm1025, %v1767, 0
      %v1780 = vsel %vm1025, %v1769, 0
      %v1783 = vsel %vm1025, %v1771, 0
      %v1786 = vsel %vm1025, %v1773, 0
      %v1789 = vsel %vm1025, %v1775, 0
      %v1792 = vsel %vm1041, %v1760, 0
      %1794 = vmatpush.bf16.msra.mxu0 0
      %1795 = vmatpush.bf16.msra.mxu0 0
      %1796 = vmatpush.bf16.msra.mxu0 0
      %1797 = vmatpush.bf16.msra.mxu0 0
      %1798 = vmatpush.bf16.msra.mxu0 0
      %1799 = vmatpush.bf16.msra.mxu0 0
      %1800 = vmatpush.bf16.msra.mxu0 0
      %1801 = vmatpush.bf16.msra.mxu0 %v1792
      %1802 = vmatmul.bf16.gmra.mxu0 %v1777
      %v1803 = vpop.f32.mrf.mxu0
      %v1804 = vadd.f32 0.0, %v1803
      %v1805 = vpop.f32.mrf.mxu0
      %v1806 = vadd.f32 0.0, %v1805
      %1807 = vmatmul.bf16.gmra.mxu0 %v1780
      %v1808 = vpop.f32.mrf.mxu0
      %v1809 = vadd.f32 0.0, %v1808
      %v1810 = vpop.f32.mrf.mxu0
      %v1811 = vadd.f32 0.0, %v1810
      %1812 = vmatmul.bf16.gmra.mxu0 %v1783
      %v1813 = vpop.f32.mrf.mxu0
      %v1814 = vadd.f32 0.0, %v1813
      %v1815 = vpop.f32.mrf.mxu0
      %v1816 = vadd.f32 0.0, %v1815
      %1817 = vmatmul.bf16.gmra.mxu0 %v1786
      %v1818 = vpop.f32.mrf.mxu0
      %v1819 = vadd.f32 0.0, %v1818
      %v1820 = vpop.f32.mrf.mxu0
      %v1821 = vadd.f32 0.0, %v1820
      %1822 = vmatmul.bf16.gmra.mxu0 %v1789
      %v1823 = vpop.f32.mrf.mxu0
      %v1824 = vadd.f32 0.0, %v1823
      %v1825 = vpop.f32.mrf.mxu0
      %v1826 = vadd.f32 0.0, %v1825
      %1827 = vdwg.mxu0
      %v1828 = vadd.f32 %v1748, %v1804
      %v1829 = vadd.f32 %v1749, %v1806
      %v1830 = vadd.f32 %v1750, %v1809
      %v1831 = vadd.f32 %v1751, %v1811
      %v1832 = vadd.f32 %v1752, %v1814
      %v1833 = vadd.f32 %v1753, %v1816
      %v1834 = vadd.f32 %v1754, %v1819
      %v1835 = vadd.f32 %v1755, %v1821
      %v1836 = vadd.f32 %v1756, %v1824
      %v1837 = vadd.f32 %v1757, %v1826
      %v1838 = vtanh.pop %v1828
      %v1839 = vtanh.pop %v1829
      %v1840 = vtanh.pop %v1830
      %v1841 = vtanh.pop %v1831
      %v1842 = vtanh.pop %v1832
      %v1843 = vtanh.pop %v1833
      %v1844 = vtanh.pop %v1834
      %v1845 = vtanh.pop %v1835
      %v1846 = vtanh.pop %v1836
      %v1847 = vtanh.pop %v1837
      %vm1848 = vcmask 97280
      %1849 = vst.msk [vmem:[%s197] sm:$0xff] %vm1848, %v1838
      %1850 = vst.msk [vmem:[%s197 + $0x8] sm:$0xff] %vm1848, %v1839
      %1851 = vst.msk [vmem:[%s197 + $0x10] sm:$0xff] %vm1848, %v1840
      %1852 = vst.msk [vmem:[%s197 + $0x18] sm:$0xff] %vm1848, %v1841
      %1853 = vst.msk [vmem:[%s197 + $0x20] sm:$0xff] %vm1848, %v1842
      %1854 = vst.msk [vmem:[%s197 + $0x28] sm:$0xff] %vm1848, %v1843
      %1855 = vst.msk [vmem:[%s197 + $0x30] sm:$0xff] %vm1848, %v1844
      %1856 = vst.msk [vmem:[%s197 + $0x38] sm:$0xff] %vm1848, %v1845
      %1857 = vst.msk [vmem:[%s197 + $0x40] sm:$0xff] %vm1848, %v1846
      %1858 = vst.msk [vmem:[%s197 + $0x48] sm:$0xff] %vm1848, %v1847
      %p1859 = scmp.lt.s32.totalorder %s15, 1
      %s1860 = scalar_select %p1859, %s15, 1
      %s1861 = smul.addr %s1860, 10
      %s1862 = smul.addr %s1861, 8
      %s1863 = scalar_lea.vmem %s4, %s1862
      // Predicated region
      $region37: #{generator_forward.5} parent=35 // pred_check
        %p1864 = pneg %p122
      $region38: #{generator_forward.5} parent=35 // pred_check_branch
        %1866 = sbr.rel (%p1864) target = $region40
      $region39: #{generator_forward.5} parent=35 // pred_region
        _
      $region40: #{generator_forward.5} parent=35 // pred_fallthru
        _
    $region36: #{generator_forward.5} parent=5 // pred_fallthru
      _
    %p1867 = scmp.le.s32.totalorder 2, %s10
    // Predicated region
    $region41: #{generator_forward.5} parent=5 // pred_check
      %p1868 = pneg %p1867
    $region42: #{generator_forward.5} parent=5 // pred_check_branch
      %1870 = sbr.rel (%p1868) target = $region44
    $region43: #{generator_forward.5} parent=5 // pred_region
      %s1871 = ssub.s32 %s10, 2
      // Predicated region
      $region45: #{generator_forward.5} parent=43 // pred_check
        %p1872 = pneg %p128
      $region46: #{generator_forward.5} parent=43 // pred_check_branch
        %1874 = sbr.rel (%p1872) target = $region48
      $region47: #{generator_forward.5} parent=43 // pred_region
        %p1875 = scmp.lt.s32.totalorder %s16, 1
        %s1876 = scalar_select %p1875, %s16, 1
        %s1877 = smul.addr %s1876, 10
        %s1878 = smul.addr %s1877, 8
        %s1879 = scalar_lea.vmem %s4, %s1878
      $region48: #{generator_forward.5} parent=43 // pred_fallthru
        _
    $region44: #{generator_forward.5} parent=5 // pred_fallthru
      _
  $region6: #{generator_forward.5} parent=0 // loop_footer
    %s14 = sadd.s32 1, %s10
  $region7: #{generator_forward.5} parent=0 // loop_footer_branch
    %9 = sbr.rel target = $region3
  $region8: #{generator_forward.5} parent=0 // loop_exit
    _

</llo_original>
